<compile_context>
chip_gen: v7x
topology: tpu7x:2x2x1
jax: 0.10.0
libtpu: 0.0.40
codegen_flags: <defaults>
</compile_context>

<pallas_src>
import numpy as np
import jax
import jax.numpy as jnp
from jax.experimental import pallas as pl
from jax.experimental.pallas import tpu as pltpu


# ------------------------------ small helpers ------------------------------ #

def _pick_row_tile(M, cap=2048):
    """Largest multiple of 8 that divides M, is <= cap, and leaves >= 2 grid steps
    (so v7x's second TensorCore is used); falls back to M if nothing divides."""
    if M % 8 != 0:          # unreachable for this model (M is a multiple of 256)
        return M
    limit = min(cap, M // 2) if M >= 16 else M
    limit = max(8, (limit // 8) * 8)
    t = limit
    while t >= 8:
        if M % t == 0:
            return t
        t -= 8
    return M


# ----------------------------- Pallas kernels ------------------------------ #

def _conv_bn_relu_kernel(x_ref, w_ref, shift_ref, o_ref):
    """o = relu(x @ w + shift) — im2col conv; BN scale already folded into w."""
    acc = jnp.dot(x_ref[...], w_ref[...], preferred_element_type=jnp.float32)
    o_ref[...] = jnp.maximum(acc + shift_ref[...], 0.0).astype(o_ref.dtype)


def conv_bn_relu_matmul(cols, w, shift, *, tm_cap=2048):
    """Row-tiled matmul + shift/ReLU epilogue. cols:(M,K) bf16, w:(K,N) bf16 -> (M,N) bf16."""
    M, K = cols.shape
    N = w.shape[1]
    tm = _pick_row_tile(M, tm_cap)
    return pl.pallas_call(
        _conv_bn_relu_kernel,
        out_shape=jax.ShapeDtypeStruct((M, N), jnp.bfloat16),
        grid=(M // tm,),
        in_specs=[
            pl.BlockSpec((tm, K), lambda i: (i, 0)),   # activations: tiled over rows
            pl.BlockSpec((K, N), lambda i: (0, 0)),    # scale-folded conv weight (resident)
            pl.BlockSpec((1, N), lambda i: (0, 0)),    # BN shift (+ conv bias)
        ],
        out_specs=pl.BlockSpec((tm, N), lambda i: (i, 0)),
        compiler_params=pltpu.CompilerParams(
            dimension_semantics=("parallel",),
            allow_input_fusion=[True, False, False],   # let XLA fuse the im2col into input
        ),
    )(cols, w, shift)


def _conv2_pool_mlp_kernel(cols_ref, w2_ref, t2_ref, w1_ref, b1_ref,
                           w2f_ref, b2_ref, w3_ref, b3_ref,
                           logits_ref, probs_ref):
    """Per-image fused: conv2 (+BN/ReLU) -> exact 2x2 avg pool -> fc1/fc2/fc3 -> softmax.

    The (64, 288) im2col block has its rows pre-ordered (quad q, pool cell p), so the
    AdaptiveAvgPool2d(4) of the 8x8 map is three row-block adds, and fc1's 1024-wide
    contraction is split into 16 per-pool-cell dots (no in-kernel flatten/relayout)."""
    # conv2 im2col matmul, BN scale folded into w2; shift + ReLU epilogue.
    y2 = jnp.dot(cols_ref[0], w2_ref[...], preferred_element_type=jnp.float32)
    y2 = jnp.maximum(y2 + t2_ref[...], 0.0)                                 # (64, 64) f32

    # Exact 2x2 mean pool: rows [q*16 + p] -> mean over q.
    pooled = ((y2[0:16, :] + y2[16:32, :]) + (y2[32:48, :] + y2[48:64, :])) * 0.25
    pooled = pooled.astype(jnp.bfloat16)                                    # (16, 64)

    # fc1 (1024 -> 256): accumulate per pool cell, f32 accumulation.
    acc = b1_ref[...]                                                       # (1, 256) f32
    for p in range(16):
        acc = acc + jnp.dot(pooled[p:p + 1, :], w1_ref[p],
                            preferred_element_type=jnp.float32)
    h1 = jnp.maximum(acc, 0.0).astype(jnp.bfloat16)                         # (1, 256)

    # fc2 (256 -> 64) + ReLU   (Dropout is identity in eval mode.)
    h2 = jnp.dot(h1, w2f_ref[...], preferred_element_type=jnp.float32) + b2_ref[...]
    h2 = jnp.maximum(h2, 0.0).astype(jnp.bfloat16)                          # (1, 64)

    # fc3 padded to 128 output lanes (padded lanes pinned to -1e30 via the bias) + softmax.
    logits = jnp.dot(h2, w3_ref[...], preferred_element_type=jnp.float32) + b3_ref[...]
    m = jnp.max(logits, axis=-1, keepdims=True)
    e = jnp.exp(logits - m)
    probs = e * pl.reciprocal(jnp.sum(e, axis=-1, keepdims=True), approx=True)

    logits_ref[0] = logits
    probs_ref[0] = probs


def conv2_pool_mlp_head(cols2, w2, t2, w1r, b1, w2f, b2, w3p, b3p):
    """cols2: (B, 64, 288) bf16 -> (logits (B,3) f32, probs (B,3) f32), one image/grid step."""
    B = cols2.shape[0]
    logits, probs = pl.pallas_call(
        _conv2_pool_mlp_kernel,
        out_shape=(jax.ShapeDtypeStruct((B, 1, 128), jnp.float32),
                   jax.ShapeDtypeStruct((B, 1, 128), jnp.float32)),
        grid=(B,),
        in_specs=[
            pl.BlockSpec((1, 64, 288), lambda i: (i, 0, 0)),    # this image's conv2 patches
            pl.BlockSpec((288, 64), lambda i: (0, 0)),          # conv2 weight (scale-folded)
            pl.BlockSpec((1, 64), lambda i: (0, 0)),            # conv2 BN shift
            pl.BlockSpec((16, 64, 256), lambda i: (0, 0, 0)),   # fc1 weight (per pool cell)
            pl.BlockSpec((1, 256), lambda i: (0, 0)),           # fc1 bias
            pl.BlockSpec((256, 64), lambda i: (0, 0)),          # fc2 weight
            pl.BlockSpec((1, 64), lambda i: (0, 0)),            # fc2 bias
            pl.BlockSpec((64, 128), lambda i: (0, 0)),          # fc3 weight (lane-padded)
            pl.BlockSpec((1, 128), lambda i: (0, 0)),           # fc3 bias (-1e30 pad lanes)
        ],
        out_specs=(pl.BlockSpec((1, 1, 128), lambda i: (i, 0, 0)),
                   pl.BlockSpec((1, 1, 128), lambda i: (i, 0, 0))),
        compiler_params=pltpu.CompilerParams(
            dimension_semantics=("parallel",),
            allow_input_fusion=[True] + [False] * 8,
        ),
    )(cols2, w2, t2, w1r, b1, w2f, b2, w3p, b3p)
    return logits[:, 0, :3], probs[:, 0, :3]


# ------------------------------- JAX glue ---------------------------------- #

def im2col(x, kh, kw, stride, pad, k_pad_to=None):
    """x: (B, H, W, C) NHWC -> (B*Ho*Wo, K), Ho, Wo. Column order (kh, kw, Cin) matches
    the conv weight flattening; optional zero K-padding fused into the concat."""
    B, H, W, C = x.shape
    xp = jnp.pad(x, ((0, 0), (pad, pad), (pad, pad), (0, 0)))
    Ho = (H + 2 * pad - kh) // stride + 1
    Wo = (W + 2 * pad - kw) // stride + 1
    taps = []
    for i in range(kh):
        for j in range(kw):
            taps.append(xp[:, i:i + (Ho - 1) * stride + 1:stride,
                            j:j + (Wo - 1) * stride + 1:stride, :])
    K = kh * kw * C
    if k_pad_to is not None and k_pad_to > K:
        taps.append(jnp.zeros((B, Ho, Wo, k_pad_to - K), x.dtype))
        K = k_pad_to
    cols = jnp.concatenate(taps, axis=-1)
    return cols.reshape(B * Ho * Wo, K), Ho, Wo


def conv2_cols_pool_order(x):
    """x: (B, 16, 16, 32) conv1 output -> (B, 64, 288) im2col for Conv2d(32,64,3,s=2,p=1).
    The 64 patch rows are ordered (quad q = qh*2+qw inside the 2x2 pool window,
    pool cell p = ph*4+pw) so the fused kernel's average pool is three row-block adds."""
    B = x.shape[0]
    xp = jnp.pad(x, ((0, 0), (1, 1), (1, 1), (0, 0)))
    taps = [xp[:, i:i + 15:2, j:j + 15:2, :] for i in range(3) for j in range(3)]
    cols = jnp.concatenate(taps, axis=-1)               # (B, 8, 8, 288), rows (oh, ow)
    cols = cols.reshape(B, 4, 2, 4, 2, 288)             # (B, ph, qh, pw, qw, K)
    cols = jnp.transpose(cols, (0, 2, 4, 1, 3, 5))      # (B, qh, qw, ph, pw, K)
    return cols.reshape(B, 64, 288)


def init_router_params(key):
    """Deterministic re-creation of the router parameters (same init scheme as
    ImageRouterMoE._initialize_weights: kaiming-normal fan_out convs, xavier-uniform
    linears, zero biases, fresh BatchNorm stats). BN scale is folded into the conv
    weights; matmul operands are bf16, bias/shift epilogues f32."""
    ks = jax.random.split(key, 5)
    eps = 1e-5

    conv1_w = jax.random.normal(ks[0], (32, 3, 7, 7), jnp.float32) * np.sqrt(2.0 / (32 * 7 * 7))
    conv1_b = jnp.zeros((32,), jnp.float32)
    conv2_w = jax.random.normal(ks[1], (64, 32, 3, 3), jnp.float32) * np.sqrt(2.0 / (64 * 3 * 3))
    conv2_b = jnp.zeros((64,), jnp.float32)

    bn1 = (jnp.ones((32,)), jnp.zeros((32,)), jnp.zeros((32,)), jnp.ones((32,)))
    bn2 = (jnp.ones((64,)), jnp.zeros((64,)), jnp.zeros((64,)), jnp.ones((64,)))

    def xavier(k, out_f, in_f):
        lim = np.sqrt(6.0 / (in_f + out_f))
        return jax.random.uniform(k, (out_f, in_f), jnp.float32, -lim, lim)

    fc1_w, fc1_b = xavier(ks[2], 256, 1024), jnp.zeros((256,), jnp.float32)
    fc2_w, fc2_b = xavier(ks[3], 64, 256), jnp.zeros((64,), jnp.float32)
    fc3_w, fc3_b = xavier(ks[4], 3, 64), jnp.zeros((3,), jnp.float32)

    def conv_to_mat(w, k_pad_to=None):   # (Cout, Cin, kh, kw) -> (kh*kw*Cin, Cout)
        Cout, Cin, kh, kw = w.shape
        m = jnp.transpose(w, (2, 3, 1, 0)).reshape(kh * kw * Cin, Cout)
        if k_pad_to is not None and k_pad_to > m.shape[0]:
            m = jnp.pad(m, ((0, k_pad_to - m.shape[0]), (0, 0)))
        return m

    def bn_fold(gamma, beta, mean, var, conv_bias):
        scale = gamma / jnp.sqrt(var + eps)
        shift = scale * (conv_bias - mean) + beta
        return scale, shift

    s1, t1 = bn_fold(*bn1, conv1_b)
    s2, t2 = bn_fold(*bn2, conv2_b)

    bf16 = jnp.bfloat16
    # BN scale folded into the conv weights (shift-only epilogue in-kernel).
    w1c = (conv_to_mat(conv1_w, k_pad_to=160) * s1[None, :]).astype(bf16)   # K 147 -> 160
    w2c = (conv_to_mat(conv2_w) * s2[None, :]).astype(bf16)                 # (288, 64)

    # fc1 re-indexed to the kernel's (pool cell p, channel c) feat ordering:
    # torch input index = c*16 + p  ->  w1r[p, c, :]
    w1r = fc1_w.T.reshape(64, 16, 256).transpose(1, 0, 2).astype(bf16)      # (16, 64, 256)

    # fc3 zero-padded to 128 output lanes; padded logits pinned to -1e30 via the bias.
    w3p = jnp.zeros((64, 128), jnp.float32).at[:, :3].set(fc3_w.T).astype(bf16)
    b3p = jnp.full((1, 128), -1e30, jnp.float32).at[0, :3].set(fc3_b)

    return dict(
        w1c=w1c, t1=t1.reshape(1, 32).astype(jnp.float32),
        w2c=w2c, t2=t2.reshape(1, 64).astype(jnp.float32),
        w1r=w1r, b1=fc1_b.reshape(1, 256),
        w2f=fc2_w.T.astype(bf16), b2=fc2_b.reshape(1, 64),
        w3p=w3p, b3p=b3p,
    )


def image_router_moe_forward(params, pixel_values):
    """Router forward of ImageRouterMoE (inference path).

    pixel_values: (B, 3, H, W) NCHW float32 (PyTorch convention).
    Returns (routing_logits (B,3), routing_probs (B,3), expert_choices (B,)).
    """
    B = pixel_values.shape[0]
    # NCHW -> NHWC + bf16 cast in one fused XLA pass (keeps C lane-dense).
    x = jnp.transpose(pixel_values, (0, 2, 3, 1)).astype(jnp.bfloat16)

    # Conv2d(3, 32, 7, stride=4, pad=3) + BN + ReLU  (im2col matmul, K padded 147->160).
    cols1, Ho, Wo = im2col(x, 7, 7, 4, 3, k_pad_to=160)
    y1 = conv_bn_relu_matmul(cols1, params["w1c"], params["t1"])
    assert (Ho, Wo) == (16, 16), "router kernels assume 64x64 input images"
    x1 = y1.reshape(B, Ho, Wo, 32)

    # Conv2d(32,64,3,s=2,p=1)+BN+ReLU -> AdaptiveAvgPool2d(4) -> Flatten ->
    # Linear(1024,256)+ReLU -> Linear(256,64)+ReLU -> Linear(64,3) -> softmax,
    # fused in one per-image Pallas kernel (intermediates never touch HBM).
    cols2 = conv2_cols_pool_order(x1)
    logits, probs = conv2_pool_mlp_head(
        cols2, params["w2c"], params["t2"], params["w1r"], params["b1"],
        params["w2f"], params["b2"], params["w3p"], params["b3p"])
    choices = jnp.argmax(probs, axis=1)
    return logits, probs, choices


if __name__ == "__main__":
    key = jax.random.PRNGKey(0)
    pkey, xkey = jax.random.split(key)
    params = init_router_params(pkey)
    pixel_values = jax.random.normal(xkey, (2, 3, 64, 64), jnp.float32)

    logits, probs, choices = jax.jit(image_router_moe_forward)(params, pixel_values)
    jax.block_until_ready((logits, probs, choices))

    assert logits.shape == (2, 3) and probs.shape == (2, 3) and choices.shape == (2,)
    assert bool(jnp.all(jnp.isfinite(probs)))
    # approx-reciprocal softmax: sums are 1 to ~1e-4; keep a loose tolerance.
    assert bool(jnp.allclose(jnp.sum(probs, axis=1), 1.0, atol=5e-3))
    print("KERNEL_OK")
</pallas_src>

<mosaic_0001>
module attributes {stable_mosaic.version = 11 : i64} {
  func.func @_conv_bn_relu_kernel(%arg0: i32, %arg1: memref<256x160xbf16, #tpu.memory_space<vmem>>, %arg2: memref<160x32xbf16, #tpu.memory_space<vmem>>, %arg3: memref<1x32xf32, #tpu.memory_space<vmem>>, %arg4: memref<256x32xbf16, #tpu.memory_space<vmem>>) attributes {dimension_semantics = [#tpu.dimension_semantics<parallel>], iteration_bounds = array<i64: 2>, scalar_prefetch = 0 : i64, scratch_operands = 0 : i64, tpu.core_type = #tpu.core_type<tc>, window_params = [{transform_indices = @transform_0, window_bounds = array<i64: 256, 160>}, {pipeline_mode = #tpu.pipeline_mode<synchronous>, transform_indices = @transform_1, window_bounds = array<i64: 160, 32>}, {pipeline_mode = #tpu.pipeline_mode<synchronous>, transform_indices = @transform_2, window_bounds = array<i64: 1, 32>}, {transform_indices = @transform_3, window_bounds = array<i64: 256, 32>}]} {
    %c0 = arith.constant 0 : index
    %c0_0 = arith.constant 0 : index
    %0 = vector.load %arg1[%c0, %c0_0] : memref<256x160xbf16, #tpu.memory_space<vmem>>, vector<256x160xbf16>
    %c0_1 = arith.constant 0 : index
    %c0_2 = arith.constant 0 : index
    %1 = vector.load %arg2[%c0_1, %c0_2] : memref<160x32xbf16, #tpu.memory_space<vmem>>, vector<160x32xbf16>
    %cst = arith.constant dense<0.000000e+00> : vector<256x32xf32>
    %2 = tpu.matmul %0, %1, %cst {dimension_numbers = #tpu.dot_dimension_numbers<[1], [0], [0], [1], [0, 0, 1, 1], [], []>} : vector<256x160xbf16>, vector<160x32xbf16>, vector<256x32xf32> -> vector<256x32xf32>
    %c0_3 = arith.constant 0 : index
    %c0_4 = arith.constant 0 : index
    %3 = vector.load %arg3[%c0_3, %c0_4] : memref<1x32xf32, #tpu.memory_space<vmem>>, vector<1x32xf32>
    %4 = vector.broadcast %3 : vector<1x32xf32> to vector<256x32xf32>
    %5 = arith.addf %2, %4 : vector<256x32xf32>
    %cst_5 = arith.constant 0.000000e+00 : f32
    %6 = vector.broadcast %cst_5 : f32 to vector<256x32xf32>
    %7 = arith.maximumf %5, %6 : vector<256x32xf32>
    %8 = arith.truncf %7 : vector<256x32xf32> to vector<256x32xbf16>
    %c0_6 = arith.constant 0 : index
    %c0_7 = arith.constant 0 : index
    %9 = vector.load %arg4[%c0_6, %c0_7] : memref<256x32xbf16, #tpu.memory_space<vmem>>, vector<256x32xbf16>
    tpu.vector_store %arg4[%c0_6, %c0_7], %8 {strides = array<i32>} : memref<256x32xbf16, #tpu.memory_space<vmem>>, vector<256x32xbf16>,
    return
  }
  func.func @transform_0(%arg0: i32) -> (i32, i32) {
    %c0_i32 = arith.constant 0 : i32
    %c0_i32_0 = arith.constant 0 : i32
    return %arg0, %c0_i32 : i32, i32
  }
  func.func @transform_1(%arg0: i32) -> (i32, i32) {
    %c0_i32 = arith.constant 0 : i32
    %c0_i32_0 = arith.constant 0 : i32
    %c0_i32_1 = arith.constant 0 : i32
    return %c0_i32, %c0_i32_0 : i32, i32
  }
  func.func @transform_2(%arg0: i32) -> (i32, i32) {
    %c0_i32 = arith.constant 0 : i32
    %c0_i32_0 = arith.constant 0 : i32
    %c0_i32_1 = arith.constant 0 : i32
    return %c0_i32, %c0_i32_0 : i32, i32
  }
  func.func @transform_3(%arg0: i32) -> (i32, i32) {
    %c0_i32 = arith.constant 0 : i32
    %c0_i32_0 = arith.constant 0 : i32
    return %arg0, %c0_i32 : i32, i32
  }
}

module attributes {stable_mosaic.version = 11 : i64} {
  func.func @_conv2_pool_mlp_kernel(%arg0: i32, %arg1: memref<1x64x288xbf16, #tpu.memory_space<vmem>>, %arg2: memref<288x64xbf16, #tpu.memory_space<vmem>>, %arg3: memref<1x64xf32, #tpu.memory_space<vmem>>, %arg4: memref<16x64x256xbf16, #tpu.memory_space<vmem>>, %arg5: memref<1x256xf32, #tpu.memory_space<vmem>>, %arg6: memref<256x64xbf16, #tpu.memory_space<vmem>>, %arg7: memref<1x64xf32, #tpu.memory_space<vmem>>, %arg8: memref<64x128xbf16, #tpu.memory_space<vmem>>, %arg9: memref<1x128xf32, #tpu.memory_space<vmem>>, %arg10: memref<1x1x128xf32, #tpu.memory_space<vmem>>, %arg11: memref<1x1x128xf32, #tpu.memory_space<vmem>>) attributes {dimension_semantics = [#tpu.dimension_semantics<parallel>], iteration_bounds = array<i64: 2>, scalar_prefetch = 0 : i64, scratch_operands = 0 : i64, tpu.core_type = #tpu.core_type<tc>, window_params = [{transform_indices = @transform_0, window_bounds = array<i64: 1, 64, 288>}, {pipeline_mode = #tpu.pipeline_mode<synchronous>, transform_indices = @transform_1, window_bounds = array<i64: 288, 64>}, {pipeline_mode = #tpu.pipeline_mode<synchronous>, transform_indices = @transform_2, window_bounds = array<i64: 1, 64>}, {pipeline_mode = #tpu.pipeline_mode<synchronous>, transform_indices = @transform_3, window_bounds = array<i64: 16, 64, 256>}, {pipeline_mode = #tpu.pipeline_mode<synchronous>, transform_indices = @transform_4, window_bounds = array<i64: 1, 256>}, {pipeline_mode = #tpu.pipeline_mode<synchronous>, transform_indices = @transform_5, window_bounds = array<i64: 256, 64>}, {pipeline_mode = #tpu.pipeline_mode<synchronous>, transform_indices = @transform_6, window_bounds = array<i64: 1, 64>}, {pipeline_mode = #tpu.pipeline_mode<synchronous>, transform_indices = @transform_7, window_bounds = array<i64: 64, 128>}, {pipeline_mode = #tpu.pipeline_mode<synchronous>, transform_indices = @transform_8, window_bounds = array<i64: 1, 128>}, {transform_indices = @transform_9, window_bounds = array<i64: 1, 1, 128>}, {transform_indices = @transform_10, window_bounds = array<i64: 1, 1, 128>}]} {
    %c0 = arith.constant 0 : index
    %c0_0 = arith.constant 0 : index
    %c0_1 = arith.constant 0 : index
    %0 = vector.load %arg1[%c0, %c0_0, %c0_1] : memref<1x64x288xbf16, #tpu.memory_space<vmem>>, vector<1x64x288xbf16>
    %1 = vector.shape_cast %0 : vector<1x64x288xbf16> to vector<64x288xbf16>
    %c0_2 = arith.constant 0 : index
    %c0_3 = arith.constant 0 : index
    %2 = vector.load %arg2[%c0_2, %c0_3] : memref<288x64xbf16, #tpu.memory_space<vmem>>, vector<288x64xbf16>
    %cst = arith.constant dense<0.000000e+00> : vector<64x64xf32>
    %3 = tpu.matmul %1, %2, %cst {dimension_numbers = #tpu.dot_dimension_numbers<[1], [0], [0], [1], [0, 0, 1, 1], [], []>} : vector<64x288xbf16>, vector<288x64xbf16>, vector<64x64xf32> -> vector<64x64xf32>
    %c0_4 = arith.constant 0 : index
    %c0_5 = arith.constant 0 : index
    %4 = vector.load %arg3[%c0_4, %c0_5] : memref<1x64xf32, #tpu.memory_space<vmem>>, vector<1x64xf32>
    %5 = vector.broadcast %4 : vector<1x64xf32> to vector<64x64xf32>
    %6 = arith.addf %3, %5 : vector<64x64xf32>
    %cst_6 = arith.constant 0.000000e+00 : f32
    %7 = vector.broadcast %cst_6 : f32 to vector<64x64xf32>
    %8 = arith.maximumf %6, %7 : vector<64x64xf32>
    %9 = vector.extract_strided_slice %8 {offsets = [0, 0], sizes = [16, 64], strides = [1, 1]} : vector<64x64xf32> to vector<16x64xf32>
    %10 = vector.extract_strided_slice %8 {offsets = [16, 0], sizes = [16, 64], strides = [1, 1]} : vector<64x64xf32> to vector<16x64xf32>
    %11 = arith.addf %9, %10 : vector<16x64xf32>
    %12 = vector.extract_strided_slice %8 {offsets = [32, 0], sizes = [16, 64], strides = [1, 1]} : vector<64x64xf32> to vector<16x64xf32>
    %13 = vector.extract_strided_slice %8 {offsets = [48, 0], sizes = [16, 64], strides = [1, 1]} : vector<64x64xf32> to vector<16x64xf32>
    %14 = arith.addf %12, %13 : vector<16x64xf32>
    %15 = arith.addf %11, %14 : vector<16x64xf32>
    %cst_7 = arith.constant 2.500000e-01 : f32
    %16 = vector.broadcast %cst_7 : f32 to vector<16x64xf32>
    %17 = arith.mulf %15, %16 : vector<16x64xf32>
    %18 = arith.truncf %17 : vector<16x64xf32> to vector<16x64xbf16>
    %c0_8 = arith.constant 0 : index
    %c0_9 = arith.constant 0 : index
    %19 = vector.load %arg5[%c0_8, %c0_9] : memref<1x256xf32, #tpu.memory_space<vmem>>, vector<1x256xf32>
    %20 = vector.extract_strided_slice %18 {offsets = [0, 0], sizes = [1, 64], strides = [1, 1]} : vector<16x64xbf16> to vector<1x64xbf16>
    %c0_10 = arith.constant 0 : index
    %c0_11 = arith.constant 0 : index
    %c0_12 = arith.constant 0 : index
    %21 = vector.load %arg4[%c0_10, %c0_11, %c0_12] : memref<16x64x256xbf16, #tpu.memory_space<vmem>>, vector<1x64x256xbf16>
    %22 = vector.shape_cast %21 : vector<1x64x256xbf16> to vector<64x256xbf16>
    %cst_13 = arith.constant dense<0.000000e+00> : vector<1x256xf32>
    %23 = tpu.matmul %20, %22, %cst_13 {dimension_numbers = #tpu.dot_dimension_numbers<[1], [0], [0], [1], [0, 0, 1, 1], [], []>} : vector<1x64xbf16>, vector<64x256xbf16>, vector<1x256xf32> -> vector<1x256xf32>
    %24 = arith.addf %19, %23 : vector<1x256xf32>
    %25 = vector.extract_strided_slice %18 {offsets = [1, 0], sizes = [1, 64], strides = [1, 1]} : vector<16x64xbf16> to vector<1x64xbf16>
    %c1 = arith.constant 1 : index
    %c0_14 = arith.constant 0 : index
    %c0_15 = arith.constant 0 : index
    %26 = vector.load %arg4[%c1, %c0_14, %c0_15] : memref<16x64x256xbf16, #tpu.memory_space<vmem>>, vector<1x64x256xbf16>
    %27 = vector.shape_cast %26 : vector<1x64x256xbf16> to vector<64x256xbf16>
    %cst_16 = arith.constant dense<0.000000e+00> : vector<1x256xf32>
    %28 = tpu.matmul %25, %27, %cst_16 {dimension_numbers = #tpu.dot_dimension_numbers<[1], [0], [0], [1], [0, 0, 1, 1], [], []>} : vector<1x64xbf16>, vector<64x256xbf16>, vector<1x256xf32> -> vector<1x256xf32>
    %29 = arith.addf %24, %28 : vector<1x256xf32>
    %30 = vector.extract_strided_slice %18 {offsets = [2, 0], sizes = [1, 64], strides = [1, 1]} : vector<16x64xbf16> to vector<1x64xbf16>
    %c2 = arith.constant 2 : index
    %c0_17 = arith.constant 0 : index
    %c0_18 = arith.constant 0 : index
    %31 = vector.load %arg4[%c2, %c0_17, %c0_18] : memref<16x64x256xbf16, #tpu.memory_space<vmem>>, vector<1x64x256xbf16>
    %32 = vector.shape_cast %31 : vector<1x64x256xbf16> to vector<64x256xbf16>
    %cst_19 = arith.constant dense<0.000000e+00> : vector<1x256xf32>
    %33 = tpu.matmul %30, %32, %cst_19 {dimension_numbers = #tpu.dot_dimension_numbers<[1], [0], [0], [1], [0, 0, 1, 1], [], []>} : vector<1x64xbf16>, vector<64x256xbf16>, vector<1x256xf32> -> vector<1x256xf32>
    %34 = arith.addf %29, %33 : vector<1x256xf32>
    %35 = vector.extract_strided_slice %18 {offsets = [3, 0], sizes = [1, 64], strides = [1, 1]} : vector<16x64xbf16> to vector<1x64xbf16>
    %c3 = arith.constant 3 : index
    %c0_20 = arith.constant 0 : index
    %c0_21 = arith.constant 0 : index
    %36 = vector.load %arg4[%c3, %c0_20, %c0_21] : memref<16x64x256xbf16, #tpu.memory_space<vmem>>, vector<1x64x256xbf16>
    %37 = vector.shape_cast %36 : vector<1x64x256xbf16> to vector<64x256xbf16>
    %cst_22 = arith.constant dense<0.000000e+00> : vector<1x256xf32>
    %38 = tpu.matmul %35, %37, %cst_22 {dimension_numbers = #tpu.dot_dimension_numbers<[1], [0], [0], [1], [0, 0, 1, 1], [], []>} : vector<1x64xbf16>, vector<64x256xbf16>, vector<1x256xf32> -> vector<1x256xf32>
    %39 = arith.addf %34, %38 : vector<1x256xf32>
    %40 = vector.extract_strided_slice %18 {offsets = [4, 0], sizes = [1, 64], strides = [1, 1]} : vector<16x64xbf16> to vector<1x64xbf16>
    %c4 = arith.constant 4 : index
    %c0_23 = arith.constant 0 : index
    %c0_24 = arith.constant 0 : index
    %41 = vector.load %arg4[%c4, %c0_23, %c0_24] : memref<16x64x256xbf16, #tpu.memory_space<vmem>>, vector<1x64x256xbf16>
    %42 = vector.shape_cast %41 : vector<1x64x256xbf16> to vector<64x256xbf16>
    %cst_25 = arith.constant dense<0.000000e+00> : vector<1x256xf32>
    %43 = tpu.matmul %40, %42, %cst_25 {dimension_numbers = #tpu.dot_dimension_numbers<[1], [0], [0], [1], [0, 0, 1, 1], [], []>} : vector<1x64xbf16>, vector<64x256xbf16>, vector<1x256xf32> -> vector<1x256xf32>
    %44 = arith.addf %39, %43 : vector<1x256xf32>
    %45 = vector.extract_strided_slice %18 {offsets = [5, 0], sizes = [1, 64], strides = [1, 1]} : vector<16x64xbf16> to vector<1x64xbf16>
    %c5 = arith.constant 5 : index
    %c0_26 = arith.constant 0 : index
    %c0_27 = arith.constant 0 : index
    %46 = vector.load %arg4[%c5, %c0_26, %c0_27] : memref<16x64x256xbf16, #tpu.memory_space<vmem>>, vector<1x64x256xbf16>
    %47 = vector.shape_cast %46 : vector<1x64x256xbf16> to vector<64x256xbf16>
    %cst_28 = arith.constant dense<0.000000e+00> : vector<1x256xf32>
    %48 = tpu.matmul %45, %47, %cst_28 {dimension_numbers = #tpu.dot_dimension_numbers<[1], [0], [0], [1], [0, 0, 1, 1], [], []>} : vector<1x64xbf16>, vector<64x256xbf16>, vector<1x256xf32> -> vector<1x256xf32>
    %49 = arith.addf %44, %48 : vector<1x256xf32>
    %50 = vector.extract_strided_slice %18 {offsets = [6, 0], sizes = [1, 64], strides = [1, 1]} : vector<16x64xbf16> to vector<1x64xbf16>
    %c6 = arith.constant 6 : index
    %c0_29 = arith.constant 0 : index
    %c0_30 = arith.constant 0 : index
    %51 = vector.load %arg4[%c6, %c0_29, %c0_30] : memref<16x64x256xbf16, #tpu.memory_space<vmem>>, vector<1x64x256xbf16>
    %52 = vector.shape_cast %51 : vector<1x64x256xbf16> to vector<64x256xbf16>
    %cst_31 = arith.constant dense<0.000000e+00> : vector<1x256xf32>
    %53 = tpu.matmul %50, %52, %cst_31 {dimension_numbers = #tpu.dot_dimension_numbers<[1], [0], [0], [1], [0, 0, 1, 1], [], []>} : vector<1x64xbf16>, vector<64x256xbf16>, vector<1x256xf32> -> vector<1x256xf32>
    %54 = arith.addf %49, %53 : vector<1x256xf32>
    %55 = vector.extract_strided_slice %18 {offsets = [7, 0], sizes = [1, 64], strides = [1, 1]} : vector<16x64xbf16> to vector<1x64xbf16>
    %c7 = arith.constant 7 : index
    %c0_32 = arith.constant 0 : index
    %c0_33 = arith.constant 0 : index
    %56 = vector.load %arg4[%c7, %c0_32, %c0_33] : memref<16x64x256xbf16, #tpu.memory_space<vmem>>, vector<1x64x256xbf16>
    %57 = vector.shape_cast %56 : vector<1x64x256xbf16> to vector<64x256xbf16>
    %cst_34 = arith.constant dense<0.000000e+00> : vector<1x256xf32>
    %58 = tpu.matmul %55, %57, %cst_34 {dimension_numbers = #tpu.dot_dimension_numbers<[1], [0], [0], [1], [0, 0, 1, 1], [], []>} : vector<1x64xbf16>, vector<64x256xbf16>, vector<1x256xf32> -> vector<1x256xf32>
    %59 = arith.addf %54, %58 : vector<1x256xf32>
    %60 = vector.extract_strided_slice %18 {offsets = [8, 0], sizes = [1, 64], strides = [1, 1]} : vector<16x64xbf16> to vector<1x64xbf16>
    %c8 = arith.constant 8 : index
    %c0_35 = arith.constant 0 : index
    %c0_36 = arith.constant 0 : index
    %61 = vector.load %arg4[%c8, %c0_35, %c0_36] : memref<16x64x256xbf16, #tpu.memory_space<vmem>>, vector<1x64x256xbf16>
    %62 = vector.shape_cast %61 : vector<1x64x256xbf16> to vector<64x256xbf16>
    %cst_37 = arith.constant dense<0.000000e+00> : vector<1x256xf32>
    %63 = tpu.matmul %60, %62, %cst_37 {dimension_numbers = #tpu.dot_dimension_numbers<[1], [0], [0], [1], [0, 0, 1, 1], [], []>} : vector<1x64xbf16>, vector<64x256xbf16>, vector<1x256xf32> -> vector<1x256xf32>
    %64 = arith.addf %59, %63 : vector<1x256xf32>
    %65 = vector.extract_strided_slice %18 {offsets = [9, 0], sizes = [1, 64], strides = [1, 1]} : vector<16x64xbf16> to vector<1x64xbf16>
    %c9 = arith.constant 9 : index
    %c0_38 = arith.constant 0 : index
    %c0_39 = arith.constant 0 : index
    %66 = vector.load %arg4[%c9, %c0_38, %c0_39] : memref<16x64x256xbf16, #tpu.memory_space<vmem>>, vector<1x64x256xbf16>
    %67 = vector.shape_cast %66 : vector<1x64x256xbf16> to vector<64x256xbf16>
    %cst_40 = arith.constant dense<0.000000e+00> : vector<1x256xf32>
    %68 = tpu.matmul %65, %67, %cst_40 {dimension_numbers = #tpu.dot_dimension_numbers<[1], [0], [0], [1], [0, 0, 1, 1], [], []>} : vector<1x64xbf16>, vector<64x256xbf16>, vector<1x256xf32> -> vector<1x256xf32>
    %69 = arith.addf %64, %68 : vector<1x256xf32>
    %70 = vector.extract_strided_slice %18 {offsets = [10, 0], sizes = [1, 64], strides = [1, 1]} : vector<16x64xbf16> to vector<1x64xbf16>
    %c10 = arith.constant 10 : index
    %c0_41 = arith.constant 0 : index
    %c0_42 = arith.constant 0 : index
    %71 = vector.load %arg4[%c10, %c0_41, %c0_42] : memref<16x64x256xbf16, #tpu.memory_space<vmem>>, vector<1x64x256xbf16>
    %72 = vector.shape_cast %71 : vector<1x64x256xbf16> to vector<64x256xbf16>
    %cst_43 = arith.constant dense<0.000000e+00> : vector<1x256xf32>
    %73 = tpu.matmul %70, %72, %cst_43 {dimension_numbers = #tpu.dot_dimension_numbers<[1], [0], [0], [1], [0, 0, 1, 1], [], []>} : vector<1x64xbf16>, vector<64x256xbf16>, vector<1x256xf32> -> vector<1x256xf32>
    %74 = arith.addf %69, %73 : vector<1x256xf32>
    %75 = vector.extract_strided_slice %18 {offsets = [11, 0], sizes = [1, 64], strides = [1, 1]} : vector<16x64xbf16> to vector<1x64xbf16>
    %c11 = arith.constant 11 : index
    %c0_44 = arith.constant 0 : index
    %c0_45 = arith.constant 0 : index
    %76 = vector.load %arg4[%c11, %c0_44, %c0_45] : memref<16x64x256xbf16, #tpu.memory_space<vmem>>, vector<1x64x256xbf16>
    %77 = vector.shape_cast %76 : vector<1x64x256xbf16> to vector<64x256xbf16>
    %cst_46 = arith.constant dense<0.000000e+00> : vector<1x256xf32>
    %78 = tpu.matmul %75, %77, %cst_46 {dimension_numbers = #tpu.dot_dimension_numbers<[1], [0], [0], [1], [0, 0, 1, 1], [], []>} : vector<1x64xbf16>, vector<64x256xbf16>, vector<1x256xf32> -> vector<1x256xf32>
    %79 = arith.addf %74, %78 : vector<1x256xf32>
    %80 = vector.extract_strided_slice %18 {offsets = [12, 0], sizes = [1, 64], strides = [1, 1]} : vector<16x64xbf16> to vector<1x64xbf16>
    %c12 = arith.constant 12 : index
    %c0_47 = arith.constant 0 : index
    %c0_48 = arith.constant 0 : index
    %81 = vector.load %arg4[%c12, %c0_47, %c0_48] : memref<16x64x256xbf16, #tpu.memory_space<vmem>>, vector<1x64x256xbf16>
    %82 = vector.shape_cast %81 : vector<1x64x256xbf16> to vector<64x256xbf16>
    %cst_49 = arith.constant dense<0.000000e+00> : vector<1x256xf32>
    %83 = tpu.matmul %80, %82, %cst_49 {dimension_numbers = #tpu.dot_dimension_numbers<[1], [0], [0], [1], [0, 0, 1, 1], [], []>} : vector<1x64xbf16>, vector<64x256xbf16>, vector<1x256xf32> -> vector<1x256xf32>
    %84 = arith.addf %79, %83 : vector<1x256xf32>
    %85 = vector.extract_strided_slice %18 {offsets = [13, 0], sizes = [1, 64], strides = [1, 1]} : vector<16x64xbf16> to vector<1x64xbf16>
    %c13 = arith.constant 13 : index
    %c0_50 = arith.constant 0 : index
    %c0_51 = arith.constant 0 : index
    %86 = vector.load %arg4[%c13, %c0_50, %c0_51] : memref<16x64x256xbf16, #tpu.memory_space<vmem>>, vector<1x64x256xbf16>
    %87 = vector.shape_cast %86 : vector<1x64x256xbf16> to vector<64x256xbf16>
    %cst_52 = arith.constant dense<0.000000e+00> : vector<1x256xf32>
    %88 = tpu.matmul %85, %87, %cst_52 {dimension_numbers = #tpu.dot_dimension_numbers<[1], [0], [0], [1], [0, 0, 1, 1], [], []>} : vector<1x64xbf16>, vector<64x256xbf16>, vector<1x256xf32> -> vector<1x256xf32>
    %89 = arith.addf %84, %88 : vector<1x256xf32>
    %90 = vector.extract_strided_slice %18 {offsets = [14, 0], sizes = [1, 64], strides = [1, 1]} : vector<16x64xbf16> to vector<1x64xbf16>
    %c14 = arith.constant 14 : index
    %c0_53 = arith.constant 0 : index
    %c0_54 = arith.constant 0 : index
    %91 = vector.load %arg4[%c14, %c0_53, %c0_54] : memref<16x64x256xbf16, #tpu.memory_space<vmem>>, vector<1x64x256xbf16>
    %92 = vector.shape_cast %91 : vector<1x64x256xbf16> to vector<64x256xbf16>
    %cst_55 = arith.constant dense<0.000000e+00> : vector<1x256xf32>
    %93 = tpu.matmul %90, %92, %cst_55 {dimension_numbers = #tpu.dot_dimension_numbers<[1], [0], [0], [1], [0, 0, 1, 1], [], []>} : vector<1x64xbf16>, vector<64x256xbf16>, vector<1x256xf32> -> vector<1x256xf32>
    %94 = arith.addf %89, %93 : vector<1x256xf32>
    %95 = vector.extract_strided_slice %18 {offsets = [15, 0], sizes = [1, 64], strides = [1, 1]} : vector<16x64xbf16> to vector<1x64xbf16>
    %c15 = arith.constant 15 : index
    %c0_56 = arith.constant 0 : index
    %c0_57 = arith.constant 0 : index
    %96 = vector.load %arg4[%c15, %c0_56, %c0_57] : memref<16x64x256xbf16, #tpu.memory_space<vmem>>, vector<1x64x256xbf16>
    %97 = vector.shape_cast %96 : vector<1x64x256xbf16> to vector<64x256xbf16>
    %cst_58 = arith.constant dense<0.000000e+00> : vector<1x256xf32>
    %98 = tpu.matmul %95, %97, %cst_58 {dimension_numbers = #tpu.dot_dimension_numbers<[1], [0], [0], [1], [0, 0, 1, 1], [], []>} : vector<1x64xbf16>, vector<64x256xbf16>, vector<1x256xf32> -> vector<1x256xf32>
    %99 = arith.addf %94, %98 : vector<1x256xf32>
    %cst_59 = arith.constant 0.000000e+00 : f32
    %100 = vector.broadcast %cst_59 : f32 to vector<1x256xf32>
    %101 = arith.maximumf %99, %100 : vector<1x256xf32>
    %102 = arith.truncf %101 : vector<1x256xf32> to vector<1x256xbf16>
    %c0_60 = arith.constant 0 : index
    %c0_61 = arith.constant 0 : index
    %103 = vector.load %arg6[%c0_60, %c0_61] : memref<256x64xbf16, #tpu.memory_space<vmem>>, vector<256x64xbf16>
    %cst_62 = arith.constant dense<0.000000e+00> : vector<1x64xf32>
    %104 = tpu.matmul %102, %103, %cst_62 {dimension_numbers = #tpu.dot_dimension_numbers<[1], [0], [0], [1], [0, 0, 1, 1], [], []>} : vector<1x256xbf16>, vector<256x64xbf16>, vector<1x64xf32> -> vector<1x64xf32>
    %c0_63 = arith.constant 0 : index
    %c0_64 = arith.constant 0 : index
    %105 = vector.load %arg7[%c0_63, %c0_64] : memref<1x64xf32, #tpu.memory_space<vmem>>, vector<1x64xf32>
    %106 = arith.addf %104, %105 : vector<1x64xf32>
    %cst_65 = arith.constant 0.000000e+00 : f32
    %107 = vector.broadcast %cst_65 : f32 to vector<1x64xf32>
    %108 = arith.maximumf %106, %107 : vector<1x64xf32>
    %109 = arith.truncf %108 : vector<1x64xf32> to vector<1x64xbf16>
    %c0_66 = arith.constant 0 : index
    %c0_67 = arith.constant 0 : index
    %110 = vector.load %arg8[%c0_66, %c0_67] : memref<64x128xbf16, #tpu.memory_space<vmem>>, vector<64x128xbf16>
    %cst_68 = arith.constant dense<0.000000e+00> : vector<1x128xf32>
    %111 = tpu.matmul %109, %110, %cst_68 {dimension_numbers = #tpu.dot_dimension_numbers<[1], [0], [0], [1], [0, 0, 1, 1], [], []>} : vector<1x64xbf16>, vector<64x128xbf16>, vector<1x128xf32> -> vector<1x128xf32>
    %c0_69 = arith.constant 0 : index
    %c0_70 = arith.constant 0 : index
    %112 = vector.load %arg9[%c0_69, %c0_70] : memref<1x128xf32, #tpu.memory_space<vmem>>, vector<1x128xf32>
    %113 = arith.addf %111, %112 : vector<1x128xf32>
    %cst_71 = arith.constant dense<0xFF800000> : vector<1xf32>
    %114 = vector.multi_reduction <maximumf>, %113, %cst_71 [1] : vector<1x128xf32> to vector<1xf32>
    %115 = vector.shape_cast %114 : vector<1xf32> to vector<1x1xf32>
    %116 = vector.broadcast %115 : vector<1x1xf32> to vector<1x128xf32>
    %117 = arith.subf %113, %116 : vector<1x128xf32>
    %118 = math.exp %117 : vector<1x128xf32>
    %cst_72 = arith.constant dense<0.000000e+00> : vector<1xf32>
    %119 = vector.multi_reduction <add>, %118, %cst_72 [1] : vector<1x128xf32> to vector<1xf32>
    %120 = vector.shape_cast %119 : vector<1xf32> to vector<1x1xf32>
    %121 = tpu.reciprocal %120 {approx = true} : vector<1x1xf32> -> vector<1x1xf32>
    %122 = vector.broadcast %121 : vector<1x1xf32> to vector<1x128xf32>
    %123 = arith.mulf %118, %122 : vector<1x128xf32>
    %c0_73 = arith.constant 0 : index
    %c0_74 = arith.constant 0 : index
    %c0_75 = arith.constant 0 : index
    %124 = vector.load %arg10[%c0_73, %c0_74, %c0_75] : memref<1x1x128xf32, #tpu.memory_space<vmem>>, vector<1x1x128xf32>
    %125 = vector.shape_cast %124 : vector<1x1x128xf32> to vector<1x128xf32>
    %126 = vector.shape_cast %113 : vector<1x128xf32> to vector<1x1x128xf32>
    tpu.vector_store %arg10[%c0_73, %c0_74, %c0_75], %126 {strides = array<i32>} : memref<1x1x128xf32, #tpu.memory_space<vmem>>, vector<1x1x128xf32>,
    %c0_76 = arith.constant 0 : index
    %c0_77 = arith.constant 0 : index
    %c0_78 = arith.constant 0 : index
    %127 = vector.load %arg11[%c0_76, %c0_77, %c0_78] : memref<1x1x128xf32, #tpu.memory_space<vmem>>, vector<1x1x128xf32>
    %128 = vector.shape_cast %127 : vector<1x1x128xf32> to vector<1x128xf32>
    %129 = vector.shape_cast %123 : vector<1x128xf32> to vector<1x1x128xf32>
    tpu.vector_store %arg11[%c0_76, %c0_77, %c0_78], %129 {strides = array<i32>} : memref<1x1x128xf32, #tpu.memory_space<vmem>>, vector<1x1x128xf32>,
    return
  }
  func.func @transform_0(%arg0: i32) -> (i32, i32, i32) {
    %c0_i32 = arith.constant 0 : i32
    %c0_i32_0 = arith.constant 0 : i32
    %c0_i32_1 = arith.constant 0 : i32
    return %arg0, %c0_i32, %c0_i32_0 : i32, i32, i32
  }
  func.func @transform_1(%arg0: i32) -> (i32, i32) {
    %c0_i32 = arith.constant 0 : i32
    %c0_i32_0 = arith.constant 0 : i32
    %c0_i32_1 = arith.constant 0 : i32
    return %c0_i32, %c0_i32_0 : i32, i32
  }
  func.func @transform_2(%arg0: i32) -> (i32, i32) {
    %c0_i32 = arith.constant 0 : i32
    %c0_i32_0 = arith.constant 0 : i32
    %c0_i32_1 = arith.constant 0 : i32
    return %c0_i32, %c0_i32_0 : i32, i32
  }
  func.func @transform_3(%arg0: i32) -> (i32, i32, i32) {
    %c0_i32 = arith.constant 0 : i32
    %c0_i32_0 = arith.constant 0 : i32
    %c0_i32_1 = arith.constant 0 : i32
    %c0_i32_2 = arith.constant 0 : i32
    return %c0_i32, %c0_i32_0, %c0_i32_1 : i32, i32, i32
  }
  func.func @transform_4(%arg0: i32) -> (i32, i32) {
    %c0_i32 = arith.constant 0 : i32
    %c0_i32_0 = arith.constant 0 : i32
    %c0_i32_1 = arith.constant 0 : i32
    return %c0_i32, %c0_i32_0 : i32, i32
  }
  func.func @transform_5(%arg0: i32) -> (i32, i32) {
    %c0_i32 = arith.constant 0 : i32
    %c0_i32_0 = arith.constant 0 : i32
    %c0_i32_1 = arith.constant 0 : i32
    return %c0_i32, %c0_i32_0 : i32, i32
  }
  func.func @transform_6(%arg0: i32) -> (i32, i32) {
    %c0_i32 = arith.constant 0 : i32
    %c0_i32_0 = arith.constant 0 : i32
    %c0_i32_1 = arith.constant 0 : i32
    return %c0_i32, %c0_i32_0 : i32, i32
  }
  func.func @transform_7(%arg0: i32) -> (i32, i32) {
    %c0_i32 = arith.constant 0 : i32
    %c0_i32_0 = arith.constant 0 : i32
    %c0_i32_1 = arith.constant 0 : i32
    return %c0_i32, %c0_i32_0 : i32, i32
  }
  func.func @transform_8(%arg0: i32) -> (i32, i32) {
    %c0_i32 = arith.constant 0 : i32
    %c0_i32_0 = arith.constant 0 : i32
    %c0_i32_1 = arith.constant 0 : i32
    return %c0_i32, %c0_i32_0 : i32, i32
  }
  func.func @transform_9(%arg0: i32) -> (i32, i32, i32) {
    %c0_i32 = arith.constant 0 : i32
    %c0_i32_0 = arith.constant 0 : i32
    %c0_i32_1 = arith.constant 0 : i32
    return %arg0, %c0_i32, %c0_i32_0 : i32, i32, i32
  }
  func.func @transform_10(%arg0: i32) -> (i32, i32, i32) {
    %c0_i32 = arith.constant 0 : i32
    %c0_i32_0 = arith.constant 0 : i32
    %c0_i32_1 = arith.constant 0 : i32
    return %arg0, %c0_i32, %c0_i32_0 : i32, i32, i32
  }
}

</mosaic_0001>

<llo_original>
// kernel: image_router_moe_forward.2
$region0: #{image_router_moe_forward.2}
  #allocation0 [shape = 'u32[]', space=smem, size = 0x4, offset = 0x4, fixed_abs, tag = 'smem constant byte address 0x4 - core index']
  #allocation1 [shape = 'u32[144,128]{1,0:T(1,128)}', space=vmem, size = 0x12000, scoped, tag = 'internal scratch']
  %s0 = inlined_call_operand.vmem [shape: bf16[512,160], index: 0, kind: input, shape index: {}]
  %s1 = inlined_call_operand.vmem [shape: bf16[160,32], index: 1, kind: input, shape index: {}]
  %s2 = inlined_call_operand.vmem [shape: f32[1,32], index: 2, kind: input, shape index: {}]
  %s3 = inlined_call_operand.vmem [shape: bf16[512,32], index: 3, kind: output, shape index: {}]
  %s4 = sld [smem:[#allocation0]]
  $region45: #{image_router_moe_forward.2} parent=0
    _
  %s6 = ssub.s32 1, %s4
  %s7 = scalar_select 0, %s6, %s4
  loop: start=0, step=1, limit=4
  $region2: #{image_router_moe_forward.2} parent=0 // loop_pre_header
    _
  $region3: #{image_router_moe_forward.2} parent=0 // loop_header
    %s9 = sphi 0, %s13
    %p10 = scmp.ge.s32.totalorder %s9, 4
    %s19 = sphi 0, %s21
    %s22 = sphi 0, %s19
    %s23 = sphi 0, %s22
    %s39 = sphi 0, %s23
    %s43 = sphi 0, %s43
    %s45 = sphi 0, %s43
    %s46 = sphi 0, %s45
    %s60 = sphi 0, %s46
    %s64 = sphi 0, %s64
    %s66 = sphi 0, %s64
    %s67 = sphi 0, %s66
    %s81 = sphi 0, %s67
    %s87 = sphi 0, %s89
    %s90 = sphi 0, %s87
    %s91 = sphi 0, %s90
    %s107 = sphi 0, %s91
  $region4: #{image_router_moe_forward.2} parent=0 // loop_header_branch
    %12 = sbr.rel (%p10) target = $region8
  $region5: #{image_router_moe_forward.2} parent=0 // loop_body
    %s14 = ssub.s32 %s9, 1
    %s15 = ssub.s32 %s9, 2
    %s16 = sadd.s32 %s9, 1
    %s17 = ssub.s32 %s9, %s16
    %p18 = scmp.eq.s32.totalorder %s17, 0
    %s20 = sadd.s32 %s19, 1
    %s21 = scalar_select %p18, %s19, %s20
    %p24 = pneg %p18
    %p25 = scmp.eq.s32.totalorder %s9, 1
    %p26 = por %p24, %p25
    %p27 = scmp.ne.s32.totalorder %s19, %s22
    %p28 = scmp.eq.s32.totalorder %s9, 0
    %p29 = por %p27, %p28
    %p30 = scmp.ne.s32.totalorder %s19, %s22
    %p31 = scmp.eq.s32.totalorder %s14, 1
    %p32 = por %p30, %p31
    %p33 = scmp.ne.s32.totalorder %s22, %s23
    %p34 = scmp.eq.s32.totalorder %s14, 0
    %p35 = por %p33, %p34
    %p36 = scmp.ne.s32.totalorder %s22, %s23
    %p37 = scmp.eq.s32.totalorder %s15, 1
    %p38 = por %p36, %p37
    %p40 = scmp.ne.s32.totalorder %s23, %s39
    %p41 = scmp.eq.s32.totalorder %s15, 0
    %p42 = por %p40, %p41
    %s44 = sadd.s32 %s43, 1
    %p47 = scmp.eq.s32.totalorder %s9, 1
    %p48 = scmp.ne.s32.totalorder %s43, %s45
    %p49 = scmp.eq.s32.totalorder %s9, 0
    %p50 = por %p48, %p49
    %p51 = scmp.ne.s32.totalorder %s43, %s45
    %p52 = scmp.eq.s32.totalorder %s14, 1
    %p53 = por %p51, %p52
    %p54 = scmp.ne.s32.totalorder %s45, %s46
    %p55 = scmp.eq.s32.totalorder %s14, 0
    %p56 = por %p54, %p55
    %p57 = scmp.ne.s32.totalorder %s45, %s46
    %p58 = scmp.eq.s32.totalorder %s15, 1
    %p59 = por %p57, %p58
    %p61 = scmp.ne.s32.totalorder %s46, %s60
    %p62 = scmp.eq.s32.totalorder %s15, 0
    %p63 = por %p61, %p62
    %s65 = sadd.s32 %s64, 1
    %p68 = scmp.eq.s32.totalorder %s9, 1
    %p69 = scmp.ne.s32.totalorder %s64, %s66
    %p70 = scmp.eq.s32.totalorder %s9, 0
    %p71 = por %p69, %p70
    %p72 = scmp.ne.s32.totalorder %s64, %s66
    %p73 = scmp.eq.s32.totalorder %s14, 1
    %p74 = por %p72, %p73
    %p75 = scmp.ne.s32.totalorder %s66, %s67
    %p76 = scmp.eq.s32.totalorder %s14, 0
    %p77 = por %p75, %p76
    %p78 = scmp.ne.s32.totalorder %s66, %s67
    %p79 = scmp.eq.s32.totalorder %s15, 1
    %p80 = por %p78, %p79
    %p82 = scmp.ne.s32.totalorder %s67, %s81
    %p83 = scmp.eq.s32.totalorder %s15, 0
    %p84 = por %p82, %p83
    %s85 = ssub.s32 %s9, %s16
    %p86 = scmp.eq.s32.totalorder %s85, 0
    %s88 = sadd.s32 %s87, 1
    %s89 = scalar_select %p86, %s87, %s88
    %p92 = pneg %p86
    %p93 = scmp.eq.s32.totalorder %s9, 1
    %p94 = por %p92, %p93
    %p95 = scmp.ne.s32.totalorder %s87, %s90
    %p96 = scmp.eq.s32.totalorder %s9, 0
    %p97 = por %p95, %p96
    %p98 = scmp.ne.s32.totalorder %s87, %s90
    %p99 = scmp.eq.s32.totalorder %s14, 1
    %p100 = por %p98, %p99
    %p101 = scmp.ne.s32.totalorder %s90, %s91
    %p102 = scmp.eq.s32.totalorder %s14, 0
    %p103 = por %p101, %p102
    %p104 = scmp.ne.s32.totalorder %s90, %s91
    %p105 = scmp.eq.s32.totalorder %s15, 1
    %p106 = por %p104, %p105
    %p108 = scmp.ne.s32.totalorder %s91, %s107
    %p109 = scmp.eq.s32.totalorder %s15, 0
    %p110 = por %p108, %p109
    %p111 = scmp.le.s32.totalorder 1, %s9
    %p112 = scmp.lt.s32.totalorder %s9, 3
    %p113 = pnand %p111, %p112
    %p114 = pneg %p113
    // Predicated region
    $region9: #{image_router_moe_forward.2} parent=5 // pred_check
      _
    $region10: #{image_router_moe_forward.2} parent=5 // pred_check_branch
      %116 = sbr.rel (%p113) target = $region12
    $region11: #{image_router_moe_forward.2} parent=5 // pred_region
      %s117 = ssub.s32 %s9, 1
      // Predicated region
      $region13: #{image_router_moe_forward.2} parent=11 // pred_check
        %p118 = pneg %p56
      $region14: #{image_router_moe_forward.2} parent=11 // pred_check_branch
        %120 = sbr.rel (%p118) target = $region16
      $region15: #{image_router_moe_forward.2} parent=11 // pred_region
        _
      $region16: #{image_router_moe_forward.2} parent=11 // pred_fallthru
        _
      // Predicated region
      $region17: #{image_router_moe_forward.2} parent=11 // pred_check
        %p121 = pneg %p77
      $region18: #{image_router_moe_forward.2} parent=11 // pred_check_branch
        %123 = sbr.rel (%p121) target = $region20
      $region19: #{image_router_moe_forward.2} parent=11 // pred_region
        _
      $region20: #{image_router_moe_forward.2} parent=11 // pred_fallthru
        _
    $region12: #{image_router_moe_forward.2} parent=5 // pred_fallthru
      _
    %p124 = scmp.lt.s32.totalorder %s9, 2
    // Predicated region
    $region21: #{image_router_moe_forward.2} parent=5 // pred_check
      %p125 = pneg %p124
    $region22: #{image_router_moe_forward.2} parent=5 // pred_check_branch
      %127 = sbr.rel (%p125) target = $region24
    $region23: #{image_router_moe_forward.2} parent=5 // pred_region
      // Predicated region
      $region25: #{image_router_moe_forward.2} parent=23 // pred_check
        %p128 = pneg %p29
      $region26: #{image_router_moe_forward.2} parent=23 // pred_check_branch
        %130 = sbr.rel (%p128) target = $region28
      $region27: #{image_router_moe_forward.2} parent=23 // pred_region
        %s131 = smul.u32 32, %s9
        %p132 = scmp.lt.s32.totalorder %s131, 63
        %s133 = scalar_select %p132, %s131, 63
        %s134 = smul.addr %s133, 2
        %s135 = smul.addr %s134, 4
        %s136 = scalar_lea.vmem %s0, %s135
        %s137 = smul.u32 32, %s9
      $region28: #{image_router_moe_forward.2} parent=23 // pred_fallthru
        _
    $region24: #{image_router_moe_forward.2} parent=5 // pred_fallthru
      _
    %p138 = scmp.le.s32.totalorder 1, %s9
    %p139 = scmp.lt.s32.totalorder %s9, 3
    %p140 = pnand %p138, %p139
    %p141 = pneg %p140
    // Predicated region
    $region29: #{image_router_moe_forward.2} parent=5 // pred_check
      _
    $region30: #{image_router_moe_forward.2} parent=5 // pred_check_branch
      %143 = sbr.rel (%p140) target = $region32
    $region31: #{image_router_moe_forward.2} parent=5 // pred_region
      %s144 = ssub.s32 %s9, 1
      %s145 = smul.u32 32, %s14
      %p146 = scmp.lt.s32.totalorder %s145, 63
      %s147 = scalar_select %p146, %s145, 63
      %s148 = smul.addr %s147, 2
      %s149 = smul.addr %s148, 4
      %s150 = scalar_lea.vmem %s0, %s149
      %p151 = pneg %p35
      %p152 = pneg %p32
      %p153 = pneg %p56
      %p154 = pneg %p53
      %p155 = pneg %p77
      %p156 = pneg %p74
      %p157 = pneg %p103
      %p158 = pneg %p100
      %s159 = smul.u32 32, %s14
      %p160 = scmp.lt.s32.totalorder %s159, 63
      %s161 = scalar_select %p160, %s159, 63
      %s162 = smul.addr %s161, 4
      %s163 = scalar_lea.vmem %s3, %s162
      %s164 = smul.u32 32, %s14
      %p165 = scmp.lt.s32.totalorder %s164, 63
      %s166 = scalar_select %p165, %s164, 63
      %s167 = smul.addr %s166, 2
      %s168 = smul.addr %s167, 4
      %s169 = scalar_lea.vmem %s0, %s168
      %s170 = smul.u32 32, %s14
      %s171 = smul.u32 32, %s14
      %p172 = scmp.lt.s32.totalorder %s171, 63
      %s173 = scalar_select %p172, %s171, 63
      %s174 = smul.addr %s173, 4
      %s175 = scalar_lea.vmem %s3, %s174
      %s176 = smul.u32 32, %s14
      %v178 = vld [vmem:[%s169] sm:$0xff]
      %v179 = vld [vmem:[%s169 + $0x8] sm:$0xff]
      %v180 = vld [vmem:[%s169 + $0x10] sm:$0xff]
      %v181 = vld [vmem:[%s169 + $0x18] sm:$0xff]
      %v182 = vld [vmem:[%s169 + $0x20] sm:$0xff]
      %v183 = vld [vmem:[%s169 + $0x28] sm:$0xff]
      %v184 = vld [vmem:[%s169 + $0x30] sm:$0xff]
      %v185 = vld [vmem:[%s169 + $0x38] sm:$0xff]
      %v186 = vld [vmem:[%s169 + $0x40] sm:$0xff]
      %v187 = vld [vmem:[%s169 + $0x48] sm:$0xff]
      %v188 = vld [vmem:[%s169 + $0x50] sm:$0xff]
      %v189 = vld [vmem:[%s169 + $0x58] sm:$0xff]
      %v190 = vld [vmem:[%s169 + $0x60] sm:$0xff]
      %v191 = vld [vmem:[%s169 + $0x68] sm:$0xff]
      %v192 = vld [vmem:[%s169 + $0x70] sm:$0xff]
      %v193 = vld [vmem:[%s169 + $0x78] sm:$0xff]
      %v194 = vld [vmem:[%s169 + $0x80] sm:$0xff]
      %v195 = vld [vmem:[%s169 + $0x88] sm:$0xff]
      %v196 = vld [vmem:[%s169 + $0x90] sm:$0xff]
      %v197 = vld [vmem:[%s169 + $0x98] sm:$0xff]
      %v198 = vld [vmem:[%s169 + $0xa0] sm:$0xff]
      %v199 = vld [vmem:[%s169 + $0xa8] sm:$0xff]
      %v200 = vld [vmem:[%s169 + $0xb0] sm:$0xff]
      %v201 = vld [vmem:[%s169 + $0xb8] sm:$0xff]
      %v202 = vld [vmem:[%s169 + $0xc0] sm:$0xff]
      %v203 = vld [vmem:[%s169 + $0xc8] sm:$0xff]
      %v204 = vld [vmem:[%s169 + $0xd0] sm:$0xff]
      %v205 = vld [vmem:[%s169 + $0xd8] sm:$0xff]
      %v206 = vld [vmem:[%s169 + $0xe0] sm:$0xff]
      %v207 = vld [vmem:[%s169 + $0xe8] sm:$0xff]
      %v208 = vld [vmem:[%s169 + $0xf0] sm:$0xff]
      %v209 = vld [vmem:[%s169 + $0xf8] sm:$0xff]
      %v210 = vld [vmem:[%s1] sm:$0xf]
      %v211 = vld [vmem:[%s1 + $0x4] sm:$0xf]
      %v212 = vld [vmem:[%s1 + $0x8] sm:$0xf]
      %v213 = vld [vmem:[%s1 + $0xc] sm:$0xf]
      %v214 = vld [vmem:[%s1 + $0x10] sm:$0xf]
      %v215 = vld [vmem:[%s1 + $0x14] sm:$0xf]
      %v216 = vld [vmem:[%s1 + $0x18] sm:$0xf]
      %v217 = vld [vmem:[%s1 + $0x1c] sm:$0xf]
      %v218 = vld [vmem:[%s1 + $0x20] sm:$0xf]
      %v219 = vld [vmem:[%s1 + $0x24] sm:$0xf]
      %v220 = vld [vmem:[%s1 + $0x28] sm:$0xf]
      %v221 = vld [vmem:[%s1 + $0x2c] sm:$0xf]
      %v222 = vld [vmem:[%s1 + $0x30] sm:$0xf]
      %v223 = vld [vmem:[%s1 + $0x34] sm:$0xf]
      %v224 = vld [vmem:[%s1 + $0x38] sm:$0xf]
      %v225 = vld [vmem:[%s1 + $0x3c] sm:$0xf]
      %v226 = vld [vmem:[%s1 + $0x40] sm:$0xf]
      %v227 = vld [vmem:[%s1 + $0x44] sm:$0xf]
      %v228 = vld [vmem:[%s1 + $0x48] sm:$0xf]
      %v229 = vld [vmem:[%s1 + $0x4c] sm:$0xf]
      %v230 = vld [vmem:[%s2] sm:$0x1]
      %v232 = vlaneseq
      %v233 = vshrl.u32 %v232, 7
      %v234 = vsub.s32 0, %v233
      %v235 = vrot.slane %v230, %v234
      %v269 = vunpack.c.l.b16 %v178
      %v270 = vunpack.c.h.b16 %v178
      %v271 = vunpack.c.l.b16 %v179
      %v272 = vunpack.c.h.b16 %v179
      %v273 = vunpack.c.l.b16 %v180
      %v274 = vunpack.c.h.b16 %v180
      %v275 = vunpack.c.l.b16 %v181
      %v276 = vunpack.c.h.b16 %v181
      %v277 = vunpack.c.l.b16 %v182
      %v278 = vunpack.c.h.b16 %v182
      %v279 = vunpack.c.l.b16 %v183
      %v280 = vunpack.c.h.b16 %v183
      %v281 = vunpack.c.l.b16 %v184
      %v282 = vunpack.c.h.b16 %v184
      %v283 = vunpack.c.l.b16 %v185
      %v284 = vunpack.c.h.b16 %v185
      %v285 = vunpack.c.l.b16 %v186
      %v286 = vunpack.c.h.b16 %v186
      %v287 = vunpack.c.l.b16 %v187
      %v288 = vunpack.c.h.b16 %v187
      %v289 = vunpack.c.l.b16 %v188
      %v290 = vunpack.c.h.b16 %v188
      %v291 = vunpack.c.l.b16 %v189
      %v292 = vunpack.c.h.b16 %v189
      %v293 = vunpack.c.l.b16 %v190
      %v294 = vunpack.c.h.b16 %v190
      %v295 = vunpack.c.l.b16 %v191
      %v296 = vunpack.c.h.b16 %v191
      %v297 = vunpack.c.l.b16 %v192
      %v298 = vunpack.c.h.b16 %v192
      %v299 = vunpack.c.l.b16 %v193
      %v300 = vunpack.c.h.b16 %v193
      %v301 = vunpack.c.l.b16 %v194
      %v302 = vunpack.c.h.b16 %v194
      %v303 = vunpack.c.l.b16 %v195
      %v304 = vunpack.c.h.b16 %v195
      %v305 = vunpack.c.l.b16 %v196
      %v306 = vunpack.c.h.b16 %v196
      %v307 = vunpack.c.l.b16 %v197
      %v308 = vunpack.c.h.b16 %v197
      %v309 = vunpack.c.l.b16 %v198
      %v310 = vunpack.c.h.b16 %v198
      %v311 = vunpack.c.l.b16 %v199
      %v312 = vunpack.c.h.b16 %v199
      %v313 = vunpack.c.l.b16 %v200
      %v314 = vunpack.c.h.b16 %v200
      %v315 = vunpack.c.l.b16 %v201
      %v316 = vunpack.c.h.b16 %v201
      %v317 = vunpack.c.l.b16 %v202
      %v318 = vunpack.c.h.b16 %v202
      %v319 = vunpack.c.l.b16 %v203
      %v320 = vunpack.c.h.b16 %v203
      %v321 = vunpack.c.l.b16 %v204
      %v322 = vunpack.c.h.b16 %v204
      %v323 = vunpack.c.l.b16 %v205
      %v324 = vunpack.c.h.b16 %v205
      %v325 = vunpack.c.l.b16 %v206
      %v326 = vunpack.c.h.b16 %v206
      %v327 = vunpack.c.l.b16 %v207
      %v328 = vunpack.c.h.b16 %v207
      %v329 = vunpack.c.l.b16 %v208
      %v330 = vunpack.c.h.b16 %v208
      %v331 = vunpack.c.l.b16 %v209
      %v332 = vunpack.c.h.b16 %v209
      %v333 = vpack.c.b16 %v271, %v269
      %v334 = vpack.c.b16 %v272, %v270
      %v335 = vpack.c.b16 %v275, %v273
      %v336 = vpack.c.b16 %v276, %v274
      %v337 = vpack.c.b16 %v279, %v277
      %v338 = vpack.c.b16 %v280, %v278
      %v339 = vpack.c.b16 %v283, %v281
      %v340 = vpack.c.b16 %v284, %v282
      %v341 = vpack.c.b16 %v287, %v285
      %v342 = vpack.c.b16 %v288, %v286
      %v343 = vpack.c.b16 %v291, %v289
      %v344 = vpack.c.b16 %v292, %v290
      %v345 = vpack.c.b16 %v295, %v293
      %v346 = vpack.c.b16 %v296, %v294
      %v347 = vpack.c.b16 %v299, %v297
      %v348 = vpack.c.b16 %v300, %v298
      %v349 = vpack.c.b16 %v303, %v301
      %v350 = vpack.c.b16 %v304, %v302
      %v351 = vpack.c.b16 %v307, %v305
      %v352 = vpack.c.b16 %v308, %v306
      %v353 = vpack.c.b16 %v311, %v309
      %v354 = vpack.c.b16 %v312, %v310
      %v355 = vpack.c.b16 %v315, %v313
      %v356 = vpack.c.b16 %v316, %v314
      %v357 = vpack.c.b16 %v319, %v317
      %v358 = vpack.c.b16 %v320, %v318
      %v359 = vpack.c.b16 %v323, %v321
      %v360 = vpack.c.b16 %v324, %v322
      %v361 = vpack.c.b16 %v327, %v325
      %v362 = vpack.c.b16 %v328, %v326
      %v363 = vpack.c.b16 %v331, %v329
      %v364 = vpack.c.b16 %v332, %v330
      %v401 = vunpack.c.l.b16 %v210
      %v402 = vunpack.c.l.b16 %v211
      %v403 = vunpack.c.l.b16 %v212
      %v404 = vunpack.c.l.b16 %v213
      %v405 = vunpack.c.l.b16 %v214
      %v406 = vunpack.c.l.b16 %v215
      %v407 = vunpack.c.l.b16 %v216
      %v408 = vunpack.c.l.b16 %v217
      %v409 = vunpack.c.l.b16 %v218
      %v410 = vunpack.c.l.b16 %v219
      %v411 = vunpack.c.l.b16 %v220
      %v412 = vunpack.c.l.b16 %v221
      %v413 = vunpack.c.l.b16 %v222
      %v414 = vunpack.c.l.b16 %v223
      %v415 = vunpack.c.l.b16 %v224
      %v416 = vunpack.c.l.b16 %v225
      %v417 = vunpack.c.l.b16 %v226
      %v418 = vunpack.c.l.b16 %v227
      %v419 = vunpack.c.l.b16 %v228
      %v420 = vunpack.c.l.b16 %v229
      %v421 = vpack.c.b16 %v402, %v401
      %v422 = vpack.c.b16 %v404, %v403
      %v423 = vpack.c.b16 %v406, %v405
      %v424 = vpack.c.b16 %v408, %v407
      %v425 = vpack.c.b16 %v410, %v409
      %v426 = vpack.c.b16 %v412, %v411
      %v427 = vpack.c.b16 %v414, %v413
      %v428 = vpack.c.b16 %v416, %v415
      %v429 = vpack.c.b16 %v418, %v417
      %v430 = vpack.c.b16 %v420, %v419
      %vm441 = vcmask 261120
      %v443 = vsel %vm441, %v334, 0
      %v446 = vsel %vm441, %v336, 0
      %v449 = vsel %vm441, %v338, 0
      %v452 = vsel %vm441, %v340, 0
      %v455 = vsel %vm441, %v342, 0
      %v458 = vsel %vm441, %v344, 0
      %v461 = vsel %vm441, %v346, 0
      %v464 = vsel %vm441, %v348, 0
      %v467 = vsel %vm441, %v350, 0
      %v470 = vsel %vm441, %v352, 0
      %v473 = vsel %vm441, %v354, 0
      %v476 = vsel %vm441, %v356, 0
      %v479 = vsel %vm441, %v358, 0
      %v482 = vsel %vm441, %v360, 0
      %v485 = vsel %vm441, %v362, 0
      %v488 = vsel %vm441, %v364, 0
      %490 = vmatprep.subr.bf16.mxu0 0
      %491 = vmatpush1.bf16.msra.mxu0 %v421
      %492 = vmatprep.subr.bf16.mxu0 0
      %493 = vmatpush1.bf16.msra.mxu0 %v422
      %494 = vmatprep.subr.bf16.mxu0 0
      %495 = vmatpush1.bf16.msra.mxu0 %v423
      %496 = vmatprep.subr.bf16.mxu0 0
      %497 = vmatpush1.bf16.msra.mxu0 %v424
      %498 = vmatprep.subr.bf16.mxu0 0
      %499 = vmatpush1.bf16.msra.mxu0 %v425
      %500 = vmatprep.subr.bf16.mxu0 0
      %501 = vmatpush1.bf16.msra.mxu0 %v426
      %502 = vmatprep.subr.bf16.mxu0 0
      %503 = vmatpush1.bf16.msra.mxu0 %v427
      %504 = vmatprep.subr.bf16.mxu0 0
      %505 = vmatpush1.bf16.msra.mxu0 %v428
      %506 = vmatprep.subr.bf16.mxu0 0
      %507 = vmatpush1.bf16.msra.mxu0 %v429
      %508 = vmatprep.subr.bf16.mxu0 0
      %509 = vmatpush1.bf16.msra.mxu0 %v430
      %510 = vmatprep.subr.bf16.mxu0 0
      %511 = vmatpush1.bf16.msra.mxu0 0
      %512 = vmatprep.subr.bf16.mxu0 0
      %513 = vmatpush1.bf16.msra.mxu0 0
      %514 = vmatprep.subr.bf16.mxu0 0
      %515 = vmatpush1.bf16.msra.mxu0 0
      %516 = vmatprep.subr.bf16.mxu0 0
      %517 = vmatpush1.bf16.msra.mxu0 0
      %518 = vmatprep.subr.bf16.mxu0 0
      %519 = vmatpush1.bf16.msra.mxu0 0
      %520 = vmatprep.subr.bf16.mxu0 0
      %521 = vmatpush1.bf16.msra.mxu0 0
      %522 = vmatprep.mubr.bf16.mxu0 %v443
      %523 = vmatmul.mubr.bf16.gmra.mrb[0].mxu0 %v333
      %v524 = vpop.f32.mrb[0].mxu0
      %v525 = vadd.f32 %v235, %v524
      %v526 = vpop.f32.mrb[0].mxu0
      %v527 = vpop.f32.mrb[0].mxu0
      %v528 = vadd.f32 %v235, %v527
      %v529 = vpop.f32.mrb[0].mxu0
      %530 = vmatprep.mubr.bf16.mxu0 %v446
      %531 = vmatmul.mubr.bf16.gmra.mrb[0].mxu0 %v335
      %v532 = vpop.f32.mrb[0].mxu0
      %v533 = vadd.f32 %v235, %v532
      %v534 = vpop.f32.mrb[0].mxu0
      %v535 = vpop.f32.mrb[0].mxu0
      %v536 = vadd.f32 %v235, %v535
      %v537 = vpop.f32.mrb[0].mxu0
      %538 = vmatprep.mubr.bf16.mxu0 %v449
      %539 = vmatmul.mubr.bf16.gmra.mrb[0].mxu0 %v337
      %v540 = vpop.f32.mrb[0].mxu0
      %v541 = vadd.f32 %v235, %v540
      %v542 = vpop.f32.mrb[0].mxu0
      %v543 = vpop.f32.mrb[0].mxu0
      %v544 = vadd.f32 %v235, %v543
      %v545 = vpop.f32.mrb[0].mxu0
      %546 = vmatprep.mubr.bf16.mxu0 %v452
      %547 = vmatmul.mubr.bf16.gmra.mrb[0].mxu0 %v339
      %v548 = vpop.f32.mrb[0].mxu0
      %v549 = vadd.f32 %v235, %v548
      %v550 = vpop.f32.mrb[0].mxu0
      %v551 = vpop.f32.mrb[0].mxu0
      %v552 = vadd.f32 %v235, %v551
      %v553 = vpop.f32.mrb[0].mxu0
      %554 = vmatprep.mubr.bf16.mxu0 %v455
      %555 = vmatmul.mubr.bf16.gmra.mrb[0].mxu0 %v341
      %v556 = vpop.f32.mrb[0].mxu0
      %v557 = vadd.f32 %v235, %v556
      %v558 = vpop.f32.mrb[0].mxu0
      %v559 = vpop.f32.mrb[0].mxu0
      %v560 = vadd.f32 %v235, %v559
      %v561 = vpop.f32.mrb[0].mxu0
      %562 = vmatprep.mubr.bf16.mxu0 %v458
      %563 = vmatmul.mubr.bf16.gmra.mrb[0].mxu0 %v343
      %v564 = vpop.f32.mrb[0].mxu0
      %v565 = vadd.f32 %v235, %v564
      %v566 = vpop.f32.mrb[0].mxu0
      %v567 = vpop.f32.mrb[0].mxu0
      %v568 = vadd.f32 %v235, %v567
      %v569 = vpop.f32.mrb[0].mxu0
      %570 = vmatprep.mubr.bf16.mxu0 %v461
      %571 = vmatmul.mubr.bf16.gmra.mrb[0].mxu0 %v345
      %v572 = vpop.f32.mrb[0].mxu0
      %v573 = vadd.f32 %v235, %v572
      %v574 = vpop.f32.mrb[0].mxu0
      %v575 = vpop.f32.mrb[0].mxu0
      %v576 = vadd.f32 %v235, %v575
      %v577 = vpop.f32.mrb[0].mxu0
      %578 = vmatprep.mubr.bf16.mxu0 %v464
      %579 = vmatmul.mubr.bf16.gmra.mrb[0].mxu0 %v347
      %v580 = vpop.f32.mrb[0].mxu0
      %v581 = vadd.f32 %v235, %v580
      %v582 = vpop.f32.mrb[0].mxu0
      %v583 = vpop.f32.mrb[0].mxu0
      %v584 = vadd.f32 %v235, %v583
      %v585 = vpop.f32.mrb[0].mxu0
      %586 = vmatprep.mubr.bf16.mxu0 %v467
      %587 = vmatmul.mubr.bf16.gmra.mrb[0].mxu0 %v349
      %v588 = vpop.f32.mrb[0].mxu0
      %v589 = vadd.f32 %v235, %v588
      %v590 = vpop.f32.mrb[0].mxu0
      %v591 = vpop.f32.mrb[0].mxu0
      %v592 = vadd.f32 %v235, %v591
      %v593 = vpop.f32.mrb[0].mxu0
      %594 = vmatprep.mubr.bf16.mxu0 %v470
      %595 = vmatmul.mubr.bf16.gmra.mrb[0].mxu0 %v351
      %v596 = vpop.f32.mrb[0].mxu0
      %v597 = vadd.f32 %v235, %v596
      %v598 = vpop.f32.mrb[0].mxu0
      %v599 = vpop.f32.mrb[0].mxu0
      %v600 = vadd.f32 %v235, %v599
      %v601 = vpop.f32.mrb[0].mxu0
      %602 = vmatprep.mubr.bf16.mxu0 %v473
      %603 = vmatmul.mubr.bf16.gmra.mrb[0].mxu0 %v353
      %v604 = vpop.f32.mrb[0].mxu0
      %v605 = vadd.f32 %v235, %v604
      %v606 = vpop.f32.mrb[0].mxu0
      %v607 = vpop.f32.mrb[0].mxu0
      %v608 = vadd.f32 %v235, %v607
      %v609 = vpop.f32.mrb[0].mxu0
      %610 = vmatprep.mubr.bf16.mxu0 %v476
      %611 = vmatmul.mubr.bf16.gmra.mrb[0].mxu0 %v355
      %v612 = vpop.f32.mrb[0].mxu0
      %v613 = vadd.f32 %v235, %v612
      %v614 = vpop.f32.mrb[0].mxu0
      %v615 = vpop.f32.mrb[0].mxu0
      %v616 = vadd.f32 %v235, %v615
      %v617 = vpop.f32.mrb[0].mxu0
      %618 = vmatprep.mubr.bf16.mxu0 %v479
      %619 = vmatmul.mubr.bf16.gmra.mrb[0].mxu0 %v357
      %v620 = vpop.f32.mrb[0].mxu0
      %v621 = vadd.f32 %v235, %v620
      %v622 = vpop.f32.mrb[0].mxu0
      %v623 = vpop.f32.mrb[0].mxu0
      %v624 = vadd.f32 %v235, %v623
      %v625 = vpop.f32.mrb[0].mxu0
      %626 = vmatprep.mubr.bf16.mxu0 %v482
      %627 = vmatmul.mubr.bf16.gmra.mrb[0].mxu0 %v359
      %v628 = vpop.f32.mrb[0].mxu0
      %v629 = vadd.f32 %v235, %v628
      %v630 = vpop.f32.mrb[0].mxu0
      %v631 = vpop.f32.mrb[0].mxu0
      %v632 = vadd.f32 %v235, %v631
      %v633 = vpop.f32.mrb[0].mxu0
      %634 = vmatprep.mubr.bf16.mxu0 %v485
      %635 = vmatmul.mubr.bf16.gmra.mrb[0].mxu0 %v361
      %v636 = vpop.f32.mrb[0].mxu0
      %v637 = vadd.f32 %v235, %v636
      %v638 = vpop.f32.mrb[0].mxu0
      %v639 = vpop.f32.mrb[0].mxu0
      %v640 = vadd.f32 %v235, %v639
      %v641 = vpop.f32.mrb[0].mxu0
      %642 = vmatprep.mubr.bf16.mxu0 %v488
      %643 = vmatmul.mubr.bf16.gmra.mrb[0].mxu0 %v363
      %v644 = vpop.f32.mrb[0].mxu0
      %v645 = vadd.f32 %v235, %v644
      %v646 = vpop.f32.mrb[0].mxu0
      %v647 = vpop.f32.mrb[0].mxu0
      %v648 = vadd.f32 %v235, %v647
      %v649 = vpop.f32.mrb[0].mxu0
      %650 = vdwg.mxu0
      %v651 = vmax.f32 %v525, 0.0
      %v652 = vmax.f32 %v528, 0.0
      %v653 = vmax.f32 %v533, 0.0
      %v654 = vmax.f32 %v536, 0.0
      %v655 = vmax.f32 %v541, 0.0
      %v656 = vmax.f32 %v544, 0.0
      %v657 = vmax.f32 %v549, 0.0
      %v658 = vmax.f32 %v552, 0.0
      %v659 = vmax.f32 %v557, 0.0
      %v660 = vmax.f32 %v560, 0.0
      %v661 = vmax.f32 %v565, 0.0
      %v662 = vmax.f32 %v568, 0.0
      %v663 = vmax.f32 %v573, 0.0
      %v664 = vmax.f32 %v576, 0.0
      %v665 = vmax.f32 %v581, 0.0
      %v666 = vmax.f32 %v584, 0.0
      %v667 = vmax.f32 %v589, 0.0
      %v668 = vmax.f32 %v592, 0.0
      %v669 = vmax.f32 %v597, 0.0
      %v670 = vmax.f32 %v600, 0.0
      %v671 = vmax.f32 %v605, 0.0
      %v672 = vmax.f32 %v608, 0.0
      %v673 = vmax.f32 %v613, 0.0
      %v674 = vmax.f32 %v616, 0.0
      %v675 = vmax.f32 %v621, 0.0
      %v676 = vmax.f32 %v624, 0.0
      %v677 = vmax.f32 %v629, 0.0
      %v678 = vmax.f32 %v632, 0.0
      %v679 = vmax.f32 %v637, 0.0
      %v680 = vmax.f32 %v640, 0.0
      %v681 = vmax.f32 %v645, 0.0
      %v682 = vmax.f32 %v648, 0.0
      %v683 = vpack.c.bf16 %v652, %v651
      %v684 = vpack.c.bf16 %v654, %v653
      %v685 = vpack.c.bf16 %v656, %v655
      %v686 = vpack.c.bf16 %v658, %v657
      %v687 = vpack.c.bf16 %v660, %v659
      %v688 = vpack.c.bf16 %v662, %v661
      %v689 = vpack.c.bf16 %v664, %v663
      %v690 = vpack.c.bf16 %v666, %v665
      %v691 = vpack.c.bf16 %v668, %v667
      %v692 = vpack.c.bf16 %v670, %v669
      %v693 = vpack.c.bf16 %v672, %v671
      %v694 = vpack.c.bf16 %v674, %v673
      %v695 = vpack.c.bf16 %v676, %v675
      %v696 = vpack.c.bf16 %v678, %v677
      %v697 = vpack.c.bf16 %v680, %v679
      %v698 = vpack.c.bf16 %v682, %v681
      %v715 = vunpack.c.l.b16 %v683
      %v716 = vunpack.c.h.b16 %v683
      %v717 = vunpack.c.l.b16 %v684
      %v718 = vunpack.c.h.b16 %v684
      %v719 = vunpack.c.l.b16 %v685
      %v720 = vunpack.c.h.b16 %v685
      %v721 = vunpack.c.l.b16 %v686
      %v722 = vunpack.c.h.b16 %v686
      %v723 = vunpack.c.l.b16 %v687
      %v724 = vunpack.c.h.b16 %v687
      %v725 = vunpack.c.l.b16 %v688
      %v726 = vunpack.c.h.b16 %v688
      %v727 = vunpack.c.l.b16 %v689
      %v728 = vunpack.c.h.b16 %v689
      %v729 = vunpack.c.l.b16 %v690
      %v730 = vunpack.c.h.b16 %v690
      %v731 = vunpack.c.l.b16 %v691
      %v732 = vunpack.c.h.b16 %v691
      %v733 = vunpack.c.l.b16 %v692
      %v734 = vunpack.c.h.b16 %v692
      %v735 = vunpack.c.l.b16 %v693
      %v736 = vunpack.c.h.b16 %v693
      %v737 = vunpack.c.l.b16 %v694
      %v738 = vunpack.c.h.b16 %v694
      %v739 = vunpack.c.l.b16 %v695
      %v740 = vunpack.c.h.b16 %v695
      %v741 = vunpack.c.l.b16 %v696
      %v742 = vunpack.c.h.b16 %v696
      %v743 = vunpack.c.l.b16 %v697
      %v744 = vunpack.c.h.b16 %v697
      %v745 = vunpack.c.l.b16 %v698
      %v746 = vunpack.c.h.b16 %v698
      %v747 = vpack.c.b16 %v715, %v715
      %v748 = vpack.c.b16 %v716, %v716
      %v749 = vpack.c.b16 %v717, %v717
      %v750 = vpack.c.b16 %v718, %v718
      %v751 = vpack.c.b16 %v719, %v719
      %v752 = vpack.c.b16 %v720, %v720
      %v753 = vpack.c.b16 %v721, %v721
      %v754 = vpack.c.b16 %v722, %v722
      %v755 = vpack.c.b16 %v723, %v723
      %v756 = vpack.c.b16 %v724, %v724
      %v757 = vpack.c.b16 %v725, %v725
      %v758 = vpack.c.b16 %v726, %v726
      %v759 = vpack.c.b16 %v727, %v727
      %v760 = vpack.c.b16 %v728, %v728
      %v761 = vpack.c.b16 %v729, %v729
      %v762 = vpack.c.b16 %v730, %v730
      %v763 = vpack.c.b16 %v731, %v731
      %v764 = vpack.c.b16 %v732, %v732
      %v765 = vpack.c.b16 %v733, %v733
      %v766 = vpack.c.b16 %v734, %v734
      %v767 = vpack.c.b16 %v735, %v735
      %v768 = vpack.c.b16 %v736, %v736
      %v769 = vpack.c.b16 %v737, %v737
      %v770 = vpack.c.b16 %v738, %v738
      %v771 = vpack.c.b16 %v739, %v739
      %v772 = vpack.c.b16 %v740, %v740
      %v773 = vpack.c.b16 %v741, %v741
      %v774 = vpack.c.b16 %v742, %v742
      %v775 = vpack.c.b16 %v743, %v743
      %v776 = vpack.c.b16 %v744, %v744
      %v777 = vpack.c.b16 %v745, %v745
      %v778 = vpack.c.b16 %v746, %v746
      %vm811 = vcmask 257024
      %812 = vst.msk [vmem:[%s175] sm:$0xf] %vm811, %v747
      %813 = vst.msk [vmem:[%s175 + $0x4] sm:$0xf] %vm811, %v748
      %814 = vst.msk [vmem:[%s175 + $0x8] sm:$0xf] %vm811, %v749
      %815 = vst.msk [vmem:[%s175 + $0xc] sm:$0xf] %vm811, %v750
      %816 = vst.msk [vmem:[%s175 + $0x10] sm:$0xf] %vm811, %v751
      %817 = vst.msk [vmem:[%s175 + $0x14] sm:$0xf] %vm811, %v752
      %818 = vst.msk [vmem:[%s175 + $0x18] sm:$0xf] %vm811, %v753
      %819 = vst.msk [vmem:[%s175 + $0x1c] sm:$0xf] %vm811, %v754
      %820 = vst.msk [vmem:[%s175 + $0x20] sm:$0xf] %vm811, %v755
      %821 = vst.msk [vmem:[%s175 + $0x24] sm:$0xf] %vm811, %v756
      %822 = vst.msk [vmem:[%s175 + $0x28] sm:$0xf] %vm811, %v757
      %823 = vst.msk [vmem:[%s175 + $0x2c] sm:$0xf] %vm811, %v758
      %824 = vst.msk [vmem:[%s175 + $0x30] sm:$0xf] %vm811, %v759
      %825 = vst.msk [vmem:[%s175 + $0x34] sm:$0xf] %vm811, %v760
      %826 = vst.msk [vmem:[%s175 + $0x38] sm:$0xf] %vm811, %v761
      %827 = vst.msk [vmem:[%s175 + $0x3c] sm:$0xf] %vm811, %v762
      %828 = vst.msk [vmem:[%s175 + $0x40] sm:$0xf] %vm811, %v763
      %829 = vst.msk [vmem:[%s175 + $0x44] sm:$0xf] %vm811, %v764
      %830 = vst.msk [vmem:[%s175 + $0x48] sm:$0xf] %vm811, %v765
      %831 = vst.msk [vmem:[%s175 + $0x4c] sm:$0xf] %vm811, %v766
      %832 = vst.msk [vmem:[%s175 + $0x50] sm:$0xf] %vm811, %v767
      %833 = vst.msk [vmem:[%s175 + $0x54] sm:$0xf] %vm811, %v768
      %834 = vst.msk [vmem:[%s175 + $0x58] sm:$0xf] %vm811, %v769
      %835 = vst.msk [vmem:[%s175 + $0x5c] sm:$0xf] %vm811, %v770
      %836 = vst.msk [vmem:[%s175 + $0x60] sm:$0xf] %vm811, %v771
      %837 = vst.msk [vmem:[%s175 + $0x64] sm:$0xf] %vm811, %v772
      %838 = vst.msk [vmem:[%s175 + $0x68] sm:$0xf] %vm811, %v773
      %839 = vst.msk [vmem:[%s175 + $0x6c] sm:$0xf] %vm811, %v774
      %840 = vst.msk [vmem:[%s175 + $0x70] sm:$0xf] %vm811, %v775
      %841 = vst.msk [vmem:[%s175 + $0x74] sm:$0xf] %vm811, %v776
      %842 = vst.msk [vmem:[%s175 + $0x78] sm:$0xf] %vm811, %v777
      %843 = vst.msk [vmem:[%s175 + $0x7c] sm:$0xf] %vm811, %v778
      %s844 = smul.u32 32, %s14
      %p845 = scmp.lt.s32.totalorder %s844, 63
      %s846 = scalar_select %p845, %s844, 63
      %s847 = smul.addr %s846, 4
      %s848 = scalar_lea.vmem %s3, %s847
      // Predicated region
      $region33: #{image_router_moe_forward.2} parent=31 // pred_check
        %p849 = pneg %p100
      $region34: #{image_router_moe_forward.2} parent=31 // pred_check_branch
        %851 = sbr.rel (%p849) target = $region36
      $region35: #{image_router_moe_forward.2} parent=31 // pred_region
        %s852 = smul.u32 32, %s14
      $region36: #{image_router_moe_forward.2} parent=31 // pred_fallthru
        _
    $region32: #{image_router_moe_forward.2} parent=5 // pred_fallthru
      _
    %p853 = scmp.le.s32.totalorder 2, %s9
    // Predicated region
    $region37: #{image_router_moe_forward.2} parent=5 // pred_check
      %p854 = pneg %p853
    $region38: #{image_router_moe_forward.2} parent=5 // pred_check_branch
      %856 = sbr.rel (%p854) target = $region40
    $region39: #{image_router_moe_forward.2} parent=5 // pred_region
      %s857 = ssub.s32 %s9, 2
      // Predicated region
      $region41: #{image_router_moe_forward.2} parent=39 // pred_check
        %p858 = pneg %p106
      $region42: #{image_router_moe_forward.2} parent=39 // pred_check_branch
        %860 = sbr.rel (%p858) target = $region44
      $region43: #{image_router_moe_forward.2} parent=39 // pred_region
        %s861 = smul.u32 32, %s15
        %p862 = scmp.lt.s32.totalorder %s861, 63
        %s863 = scalar_select %p862, %s861, 63
        %s864 = smul.addr %s863, 4
        %s865 = scalar_lea.vmem %s3, %s864
      $region44: #{image_router_moe_forward.2} parent=39 // pred_fallthru
        _
    $region40: #{image_router_moe_forward.2} parent=5 // pred_fallthru
      _
  $region6: #{image_router_moe_forward.2} parent=0 // loop_footer
    %s13 = sadd.s32 1, %s9
  $region7: #{image_router_moe_forward.2} parent=0 // loop_footer_branch
    %8 = sbr.rel target = $region3
  $region8: #{image_router_moe_forward.2} parent=0 // loop_exit
    _

// kernel: image_router_moe_forward.3
$region0: #{image_router_moe_forward.3}
  #allocation0 [shape = 'u32[]', space=smem, size = 0x4, offset = 0x4, fixed_abs, tag = 'smem constant byte address 0x4 - core index']
  #allocation1 [shape = 'u32[144,128]{1,0:T(1,128)}', space=vmem, size = 0x12000, scoped, tag = 'internal scratch']
  %s0 = inlined_call_operand.vmem [shape: bf16[2,64,288], index: 0, kind: input, shape index: {}]
  %s1 = inlined_call_operand.vmem [shape: bf16[288,64], index: 1, kind: input, shape index: {}]
  %s2 = inlined_call_operand.vmem [shape: f32[1,64], index: 2, kind: input, shape index: {}]
  %s3 = inlined_call_operand.vmem [shape: bf16[16,64,256], index: 3, kind: input, shape index: {}]
  %s4 = inlined_call_operand.vmem [shape: f32[1,256], index: 4, kind: input, shape index: {}]
  %s5 = inlined_call_operand.vmem [shape: bf16[256,64], index: 5, kind: input, shape index: {}]
  %s6 = inlined_call_operand.vmem [shape: f32[1,64], index: 6, kind: input, shape index: {}]
  %s7 = inlined_call_operand.vmem [shape: bf16[64,128], index: 7, kind: input, shape index: {}]
  %s8 = inlined_call_operand.vmem [shape: f32[1,128], index: 8, kind: input, shape index: {}]
  %s9 = inlined_call_operand.hbm [shape: f32[2,1,128], index: 9, kind: output, shape index: {0}]
  %s10 = inlined_call_operand.vmem [shape: f32[2,1,128], index: 10, kind: output, shape index: {1}]
  %11 = xla_tuple %s9, %s10
  %s12 = sld [smem:[#allocation0]]
  $region77: #{image_router_moe_forward.3} parent=0
    _
  %s14 = ssub.s32 1, %s12
  %s15 = scalar_select 0, %s14, %s12
  $region1: #{image_router_moe_forward.3} parent=0
    #allocation2 [shape = 'u8[1024]{0}', space=vmem, size = 0x400, scoped, tag = 'output window, operand 0']
    #allocation3 [shape = 's32[2]{0}', space=sflag, size = 0x8, scoped, tag = 'scoped memory for image_router_moe_forward.3']
    %16 = vsyncpa [#allocation3], 0
    %s17 = scalar_lea.sflag [#allocation3], 1
    %18 = vsyncpa %s17, 0
    loop: start=0, step=1, limit=4
    $region2: #{image_router_moe_forward.3} parent=1 // loop_pre_header
      _
    $region3: #{image_router_moe_forward.3} parent=1 // loop_header
      %s20 = sphi 0, %s24
      %p21 = scmp.ge.s32.totalorder %s20, 4
      %s30 = sphi 0, %s32
      %s33 = sphi 0, %s30
      %s34 = sphi 0, %s33
      %s50 = sphi 0, %s34
      %s54 = sphi 0, %s54
      %s56 = sphi 0, %s54
      %s57 = sphi 0, %s56
      %s71 = sphi 0, %s57
      %s75 = sphi 0, %s75
      %s77 = sphi 0, %s75
      %s78 = sphi 0, %s77
      %s92 = sphi 0, %s78
      %s96 = sphi 0, %s96
      %s98 = sphi 0, %s96
      %s99 = sphi 0, %s98
      %s113 = sphi 0, %s99
      %s117 = sphi 0, %s117
      %s119 = sphi 0, %s117
      %s120 = sphi 0, %s119
      %s134 = sphi 0, %s120
      %s138 = sphi 0, %s138
      %s140 = sphi 0, %s138
      %s141 = sphi 0, %s140
      %s155 = sphi 0, %s141
      %s159 = sphi 0, %s159
      %s161 = sphi 0, %s159
      %s162 = sphi 0, %s161
      %s176 = sphi 0, %s162
      %s180 = sphi 0, %s180
      %s182 = sphi 0, %s180
      %s183 = sphi 0, %s182
      %s197 = sphi 0, %s183
      %s201 = sphi 0, %s201
      %s203 = sphi 0, %s201
      %s204 = sphi 0, %s203
      %s218 = sphi 0, %s204
      %s224 = sphi 0, %s226
      %s227 = sphi 0, %s224
      %s228 = sphi 0, %s227
      %s244 = sphi 0, %s228
      %s250 = sphi 0, %s252
      %s253 = sphi 0, %s250
      %s254 = sphi 0, %s253
      %s270 = sphi 0, %s254
    $region4: #{image_router_moe_forward.3} parent=1 // loop_header_branch
      %23 = sbr.rel (%p21) target = $region8
    $region5: #{image_router_moe_forward.3} parent=1 // loop_body
      %s25 = ssub.s32 %s20, 1
      %s26 = ssub.s32 %s20, 2
      %s27 = sadd.s32 %s20, 1
      %s28 = ssub.s32 %s20, %s27
      %p29 = scmp.eq.s32.totalorder %s28, 0
      %s31 = sadd.s32 %s30, 1
      %s32 = scalar_select %p29, %s30, %s31
      %p35 = pneg %p29
      %p36 = scmp.eq.s32.totalorder %s20, 1
      %p37 = por %p35, %p36
      %p38 = scmp.ne.s32.totalorder %s30, %s33
      %p39 = scmp.eq.s32.totalorder %s20, 0
      %p40 = por %p38, %p39
      %p41 = scmp.ne.s32.totalorder %s30, %s33
      %p42 = scmp.eq.s32.totalorder %s25, 1
      %p43 = por %p41, %p42
      %p44 = scmp.ne.s32.totalorder %s33, %s34
      %p45 = scmp.eq.s32.totalorder %s25, 0
      %p46 = por %p44, %p45
      %p47 = scmp.ne.s32.totalorder %s33, %s34
      %p48 = scmp.eq.s32.totalorder %s26, 1
      %p49 = por %p47, %p48
      %p51 = scmp.ne.s32.totalorder %s34, %s50
      %p52 = scmp.eq.s32.totalorder %s26, 0
      %p53 = por %p51, %p52
      %s55 = sadd.s32 %s54, 1
      %p58 = scmp.eq.s32.totalorder %s20, 1
      %p59 = scmp.ne.s32.totalorder %s54, %s56
      %p60 = scmp.eq.s32.totalorder %s20, 0
      %p61 = por %p59, %p60
      %p62 = scmp.ne.s32.totalorder %s54, %s56
      %p63 = scmp.eq.s32.totalorder %s25, 1
      %p64 = por %p62, %p63
      %p65 = scmp.ne.s32.totalorder %s56, %s57
      %p66 = scmp.eq.s32.totalorder %s25, 0
      %p67 = por %p65, %p66
      %p68 = scmp.ne.s32.totalorder %s56, %s57
      %p69 = scmp.eq.s32.totalorder %s26, 1
      %p70 = por %p68, %p69
      %p72 = scmp.ne.s32.totalorder %s57, %s71
      %p73 = scmp.eq.s32.totalorder %s26, 0
      %p74 = por %p72, %p73
      %s76 = sadd.s32 %s75, 1
      %p79 = scmp.eq.s32.totalorder %s20, 1
      %p80 = scmp.ne.s32.totalorder %s75, %s77
      %p81 = scmp.eq.s32.totalorder %s20, 0
      %p82 = por %p80, %p81
      %p83 = scmp.ne.s32.totalorder %s75, %s77
      %p84 = scmp.eq.s32.totalorder %s25, 1
      %p85 = por %p83, %p84
      %p86 = scmp.ne.s32.totalorder %s77, %s78
      %p87 = scmp.eq.s32.totalorder %s25, 0
      %p88 = por %p86, %p87
      %p89 = scmp.ne.s32.totalorder %s77, %s78
      %p90 = scmp.eq.s32.totalorder %s26, 1
      %p91 = por %p89, %p90
      %p93 = scmp.ne.s32.totalorder %s78, %s92
      %p94 = scmp.eq.s32.totalorder %s26, 0
      %p95 = por %p93, %p94
      %s97 = sadd.s32 %s96, 1
      %p100 = scmp.eq.s32.totalorder %s20, 1
      %p101 = scmp.ne.s32.totalorder %s96, %s98
      %p102 = scmp.eq.s32.totalorder %s20, 0
      %p103 = por %p101, %p102
      %p104 = scmp.ne.s32.totalorder %s96, %s98
      %p105 = scmp.eq.s32.totalorder %s25, 1
      %p106 = por %p104, %p105
      %p107 = scmp.ne.s32.totalorder %s98, %s99
      %p108 = scmp.eq.s32.totalorder %s25, 0
      %p109 = por %p107, %p108
      %p110 = scmp.ne.s32.totalorder %s98, %s99
      %p111 = scmp.eq.s32.totalorder %s26, 1
      %p112 = por %p110, %p111
      %p114 = scmp.ne.s32.totalorder %s99, %s113
      %p115 = scmp.eq.s32.totalorder %s26, 0
      %p116 = por %p114, %p115
      %s118 = sadd.s32 %s117, 1
      %p121 = scmp.eq.s32.totalorder %s20, 1
      %p122 = scmp.ne.s32.totalorder %s117, %s119
      %p123 = scmp.eq.s32.totalorder %s20, 0
      %p124 = por %p122, %p123
      %p125 = scmp.ne.s32.totalorder %s117, %s119
      %p126 = scmp.eq.s32.totalorder %s25, 1
      %p127 = por %p125, %p126
      %p128 = scmp.ne.s32.totalorder %s119, %s120
      %p129 = scmp.eq.s32.totalorder %s25, 0
      %p130 = por %p128, %p129
      %p131 = scmp.ne.s32.totalorder %s119, %s120
      %p132 = scmp.eq.s32.totalorder %s26, 1
      %p133 = por %p131, %p132
      %p135 = scmp.ne.s32.totalorder %s120, %s134
      %p136 = scmp.eq.s32.totalorder %s26, 0
      %p137 = por %p135, %p136
      %s139 = sadd.s32 %s138, 1
      %p142 = scmp.eq.s32.totalorder %s20, 1
      %p143 = scmp.ne.s32.totalorder %s138, %s140
      %p144 = scmp.eq.s32.totalorder %s20, 0
      %p145 = por %p143, %p144
      %p146 = scmp.ne.s32.totalorder %s138, %s140
      %p147 = scmp.eq.s32.totalorder %s25, 1
      %p148 = por %p146, %p147
      %p149 = scmp.ne.s32.totalorder %s140, %s141
      %p150 = scmp.eq.s32.totalorder %s25, 0
      %p151 = por %p149, %p150
      %p152 = scmp.ne.s32.totalorder %s140, %s141
      %p153 = scmp.eq.s32.totalorder %s26, 1
      %p154 = por %p152, %p153
      %p156 = scmp.ne.s32.totalorder %s141, %s155
      %p157 = scmp.eq.s32.totalorder %s26, 0
      %p158 = por %p156, %p157
      %s160 = sadd.s32 %s159, 1
      %p163 = scmp.eq.s32.totalorder %s20, 1
      %p164 = scmp.ne.s32.totalorder %s159, %s161
      %p165 = scmp.eq.s32.totalorder %s20, 0
      %p166 = por %p164, %p165
      %p167 = scmp.ne.s32.totalorder %s159, %s161
      %p168 = scmp.eq.s32.totalorder %s25, 1
      %p169 = por %p167, %p168
      %p170 = scmp.ne.s32.totalorder %s161, %s162
      %p171 = scmp.eq.s32.totalorder %s25, 0
      %p172 = por %p170, %p171
      %p173 = scmp.ne.s32.totalorder %s161, %s162
      %p174 = scmp.eq.s32.totalorder %s26, 1
      %p175 = por %p173, %p174
      %p177 = scmp.ne.s32.totalorder %s162, %s176
      %p178 = scmp.eq.s32.totalorder %s26, 0
      %p179 = por %p177, %p178
      %s181 = sadd.s32 %s180, 1
      %p184 = scmp.eq.s32.totalorder %s20, 1
      %p185 = scmp.ne.s32.totalorder %s180, %s182
      %p186 = scmp.eq.s32.totalorder %s20, 0
      %p187 = por %p185, %p186
      %p188 = scmp.ne.s32.totalorder %s180, %s182
      %p189 = scmp.eq.s32.totalorder %s25, 1
      %p190 = por %p188, %p189
      %p191 = scmp.ne.s32.totalorder %s182, %s183
      %p192 = scmp.eq.s32.totalorder %s25, 0
      %p193 = por %p191, %p192
      %p194 = scmp.ne.s32.totalorder %s182, %s183
      %p195 = scmp.eq.s32.totalorder %s26, 1
      %p196 = por %p194, %p195
      %p198 = scmp.ne.s32.totalorder %s183, %s197
      %p199 = scmp.eq.s32.totalorder %s26, 0
      %p200 = por %p198, %p199
      %s202 = sadd.s32 %s201, 1
      %p205 = scmp.eq.s32.totalorder %s20, 1
      %p206 = scmp.ne.s32.totalorder %s201, %s203
      %p207 = scmp.eq.s32.totalorder %s20, 0
      %p208 = por %p206, %p207
      %p209 = scmp.ne.s32.totalorder %s201, %s203
      %p210 = scmp.eq.s32.totalorder %s25, 1
      %p211 = por %p209, %p210
      %p212 = scmp.ne.s32.totalorder %s203, %s204
      %p213 = scmp.eq.s32.totalorder %s25, 0
      %p214 = por %p212, %p213
      %p215 = scmp.ne.s32.totalorder %s203, %s204
      %p216 = scmp.eq.s32.totalorder %s26, 1
      %p217 = por %p215, %p216
      %p219 = scmp.ne.s32.totalorder %s204, %s218
      %p220 = scmp.eq.s32.totalorder %s26, 0
      %p221 = por %p219, %p220
      %s222 = ssub.s32 %s20, %s27
      %p223 = scmp.eq.s32.totalorder %s222, 0
      %s225 = sadd.s32 %s224, 1
      %s226 = scalar_select %p223, %s224, %s225
      %p229 = pneg %p223
      %p230 = scmp.eq.s32.totalorder %s20, 1
      %p231 = por %p229, %p230
      %p232 = scmp.ne.s32.totalorder %s224, %s227
      %p233 = scmp.eq.s32.totalorder %s20, 0
      %p234 = por %p232, %p233
      %p235 = scmp.ne.s32.totalorder %s224, %s227
      %p236 = scmp.eq.s32.totalorder %s25, 1
      %p237 = por %p235, %p236
      %p238 = scmp.ne.s32.totalorder %s227, %s228
      %p239 = scmp.eq.s32.totalorder %s25, 0
      %p240 = por %p238, %p239
      %p241 = scmp.ne.s32.totalorder %s227, %s228
      %p242 = scmp.eq.s32.totalorder %s26, 1
      %p243 = por %p241, %p242
      %p245 = scmp.ne.s32.totalorder %s228, %s244
      %p246 = scmp.eq.s32.totalorder %s26, 0
      %p247 = por %p245, %p246
      %s248 = ssub.s32 %s20, %s27
      %p249 = scmp.eq.s32.totalorder %s248, 0
      %s251 = sadd.s32 %s250, 1
      %s252 = scalar_select %p249, %s250, %s251
      %p255 = pneg %p249
      %p256 = scmp.eq.s32.totalorder %s20, 1
      %p257 = por %p255, %p256
      %p258 = scmp.ne.s32.totalorder %s250, %s253
      %p259 = scmp.eq.s32.totalorder %s20, 0
      %p260 = por %p258, %p259
      %p261 = scmp.ne.s32.totalorder %s250, %s253
      %p262 = scmp.eq.s32.totalorder %s25, 1
      %p263 = por %p261, %p262
      %p264 = scmp.ne.s32.totalorder %s253, %s254
      %p265 = scmp.eq.s32.totalorder %s25, 0
      %p266 = por %p264, %p265
      %p267 = scmp.ne.s32.totalorder %s253, %s254
      %p268 = scmp.eq.s32.totalorder %s26, 1
      %p269 = por %p267, %p268
      %p271 = scmp.ne.s32.totalorder %s254, %s270
      %p272 = scmp.eq.s32.totalorder %s26, 0
      %p273 = por %p271, %p272
      %p274 = scmp.le.s32.totalorder 1, %s20
      %p275 = scmp.lt.s32.totalorder %s20, 3
      %p276 = pnand %p274, %p275
      %p277 = pneg %p276
      // Predicated region
      $region9: #{image_router_moe_forward.3} parent=5 // pred_check
        _
      $region10: #{image_router_moe_forward.3} parent=5 // pred_check_branch
        %279 = sbr.rel (%p276) target = $region12
      $region11: #{image_router_moe_forward.3} parent=5 // pred_region
        %s280 = ssub.s32 %s20, 1
        // Predicated region
        $region13: #{image_router_moe_forward.3} parent=11 // pred_check
          %p281 = pneg %p67
        $region14: #{image_router_moe_forward.3} parent=11 // pred_check_branch
          %283 = sbr.rel (%p281) target = $region16
        $region15: #{image_router_moe_forward.3} parent=11 // pred_region
          _
        $region16: #{image_router_moe_forward.3} parent=11 // pred_fallthru
          _
        // Predicated region
        $region17: #{image_router_moe_forward.3} parent=11 // pred_check
          %p284 = pneg %p88
        $region18: #{image_router_moe_forward.3} parent=11 // pred_check_branch
          %286 = sbr.rel (%p284) target = $region20
        $region19: #{image_router_moe_forward.3} parent=11 // pred_region
          _
        $region20: #{image_router_moe_forward.3} parent=11 // pred_fallthru
          _
        // Predicated region
        $region21: #{image_router_moe_forward.3} parent=11 // pred_check
          %p287 = pneg %p109
        $region22: #{image_router_moe_forward.3} parent=11 // pred_check_branch
          %289 = sbr.rel (%p287) target = $region24
        $region23: #{image_router_moe_forward.3} parent=11 // pred_region
          _
        $region24: #{image_router_moe_forward.3} parent=11 // pred_fallthru
          _
        // Predicated region
        $region25: #{image_router_moe_forward.3} parent=11 // pred_check
          %p290 = pneg %p130
        $region26: #{image_router_moe_forward.3} parent=11 // pred_check_branch
          %292 = sbr.rel (%p290) target = $region28
        $region27: #{image_router_moe_forward.3} parent=11 // pred_region
          _
        $region28: #{image_router_moe_forward.3} parent=11 // pred_fallthru
          _
        // Predicated region
        $region29: #{image_router_moe_forward.3} parent=11 // pred_check
          %p293 = pneg %p151
        $region30: #{image_router_moe_forward.3} parent=11 // pred_check_branch
          %295 = sbr.rel (%p293) target = $region32
        $region31: #{image_router_moe_forward.3} parent=11 // pred_region
          _
        $region32: #{image_router_moe_forward.3} parent=11 // pred_fallthru
          _
        // Predicated region
        $region33: #{image_router_moe_forward.3} parent=11 // pred_check
          %p296 = pneg %p172
        $region34: #{image_router_moe_forward.3} parent=11 // pred_check_branch
          %298 = sbr.rel (%p296) target = $region36
        $region35: #{image_router_moe_forward.3} parent=11 // pred_region
          _
        $region36: #{image_router_moe_forward.3} parent=11 // pred_fallthru
          _
        // Predicated region
        $region37: #{image_router_moe_forward.3} parent=11 // pred_check
          %p299 = pneg %p193
        $region38: #{image_router_moe_forward.3} parent=11 // pred_check_branch
          %301 = sbr.rel (%p299) target = $region40
        $region39: #{image_router_moe_forward.3} parent=11 // pred_region
          _
        $region40: #{image_router_moe_forward.3} parent=11 // pred_fallthru
          _
        // Predicated region
        $region41: #{image_router_moe_forward.3} parent=11 // pred_check
          %p302 = pneg %p214
        $region42: #{image_router_moe_forward.3} parent=11 // pred_check_branch
          %304 = sbr.rel (%p302) target = $region44
        $region43: #{image_router_moe_forward.3} parent=11 // pred_region
          _
        $region44: #{image_router_moe_forward.3} parent=11 // pred_fallthru
          _
      $region12: #{image_router_moe_forward.3} parent=5 // pred_fallthru
        _
      %p305 = scmp.lt.s32.totalorder %s20, 2
      // Predicated region
      $region45: #{image_router_moe_forward.3} parent=5 // pred_check
        %p306 = pneg %p305
      $region46: #{image_router_moe_forward.3} parent=5 // pred_check_branch
        %308 = sbr.rel (%p306) target = $region48
      $region47: #{image_router_moe_forward.3} parent=5 // pred_region
        // Predicated region
        $region49: #{image_router_moe_forward.3} parent=47 // pred_check
          %p309 = pneg %p40
        $region50: #{image_router_moe_forward.3} parent=47 // pred_check_branch
          %311 = sbr.rel (%p309) target = $region52
        $region51: #{image_router_moe_forward.3} parent=47 // pred_region
          %p312 = scmp.lt.s32.totalorder %s20, 1
          %s313 = scalar_select %p312, %s20, 1
          %s314 = smul.addr %s313, 24
          %s315 = smul.addr %s314, 4
          %s316 = scalar_lea.vmem %s0, %s315
        $region52: #{image_router_moe_forward.3} parent=47 // pred_fallthru
          _
      $region48: #{image_router_moe_forward.3} parent=5 // pred_fallthru
        _
      %p317 = scmp.le.s32.totalorder 1, %s20
      %p318 = scmp.lt.s32.totalorder %s20, 3
      %p319 = pnand %p317, %p318
      %p320 = pneg %p319
      // Predicated region
      $region53: #{image_router_moe_forward.3} parent=5 // pred_check
        _
      $region54: #{image_router_moe_forward.3} parent=5 // pred_check_branch
        %322 = sbr.rel (%p319) target = $region56
      $region55: #{image_router_moe_forward.3} parent=5 // pred_region
        %s323 = ssub.s32 %s20, 1
        %p324 = scmp.lt.s32.totalorder %s25, 1
        %s325 = scalar_select %p324, %s25, 1
        %s326 = smul.addr %s325, 24
        %s327 = smul.addr %s326, 4
        %s328 = scalar_lea.vmem %s0, %s327
        %p329 = pneg %p46
        %p330 = pneg %p43
        %p331 = pneg %p67
        %p332 = pneg %p64
        %p333 = pneg %p88
        %p334 = pneg %p85
        %p335 = pneg %p109
        %p336 = pneg %p106
        %p337 = pneg %p130
        %p338 = pneg %p127
        %p339 = pneg %p151
        %p340 = pneg %p148
        %p341 = pneg %p172
        %p342 = pneg %p169
        %p343 = pneg %p193
        %p344 = pneg %p190
        %p345 = pneg %p214
        %p346 = pneg %p211
        %p347 = pneg %p240
        %p348 = pneg %p237
        %s349 = sand.u32 %s227, 1
        %s350 = scalar_lea.sflag [#allocation3], %s349
        %s351 = sand.u32 %s227, 1
        %s352 = scalar_lea.vmem [#allocation2], %s351
        %p353 = pneg %p266
        %p354 = pneg %p263
        %p355 = scmp.lt.s32.totalorder %s25, 1
        %s356 = scalar_select %p355, %s25, 1
        %s357 = scalar_lea.vmem %s10, %s356
        %p358 = scmp.lt.s32.totalorder %s25, 1
        %s359 = scalar_select %p358, %s25, 1
        %s360 = smul.addr %s359, 24
        %s361 = smul.addr %s360, 4
        %s362 = scalar_lea.vmem %s0, %s361
        %p363 = scmp.lt.s32.totalorder %s25, 1
        %s364 = scalar_select %p363, %s25, 1
        %s365 = scalar_lea.vmem %s10, %s364
        %v367 = vld [vmem:[%s362] sm:$0xff]
        %v368 = vld [vmem:[%s362 + $0x8] sm:$0xf]
        %v369 = vld [vmem:[%s362 + $0xc] sm:$0xff]
        %v370 = vld [vmem:[%s362 + $0x14] sm:$0xf]
        %v371 = vld [vmem:[%s362 + $0x18] sm:$0xff]
        %v372 = vld [vmem:[%s362 + $0x20] sm:$0xf]
        %v373 = vld [vmem:[%s362 + $0x24] sm:$0xff]
        %v374 = vld [vmem:[%s362 + $0x2c] sm:$0xf]
        %v375 = vld [vmem:[%s362 + $0x30] sm:$0xff]
        %v376 = vld [vmem:[%s362 + $0x38] sm:$0xf]
        %v377 = vld [vmem:[%s362 + $0x3c] sm:$0xff]
        %v378 = vld [vmem:[%s362 + $0x44] sm:$0xf]
        %v379 = vld [vmem:[%s362 + $0x48] sm:$0xff]
        %v380 = vld [vmem:[%s362 + $0x50] sm:$0xf]
        %v381 = vld [vmem:[%s362 + $0x54] sm:$0xff]
        %v382 = vld [vmem:[%s362 + $0x5c] sm:$0xf]
        %v383 = vld [vmem:[%s1] sm:$0xf]
        %v384 = vld [vmem:[%s1 + $0x4] sm:$0xf]
        %v385 = vld [vmem:[%s1 + $0x8] sm:$0xf]
        %v386 = vld [vmem:[%s1 + $0xc] sm:$0xf]
        %v387 = vld [vmem:[%s1 + $0x10] sm:$0xf]
        %v388 = vld [vmem:[%s1 + $0x14] sm:$0xf]
        %v389 = vld [vmem:[%s1 + $0x18] sm:$0xf]
        %v390 = vld [vmem:[%s1 + $0x1c] sm:$0xf]
        %v391 = vld [vmem:[%s1 + $0x20] sm:$0xf]
        %v392 = vld [vmem:[%s1 + $0x24] sm:$0xf]
        %v393 = vld [vmem:[%s1 + $0x28] sm:$0xf]
        %v394 = vld [vmem:[%s1 + $0x2c] sm:$0xf]
        %v395 = vld [vmem:[%s1 + $0x30] sm:$0xf]
        %v396 = vld [vmem:[%s1 + $0x34] sm:$0xf]
        %v397 = vld [vmem:[%s1 + $0x38] sm:$0xf]
        %v398 = vld [vmem:[%s1 + $0x3c] sm:$0xf]
        %v399 = vld [vmem:[%s1 + $0x40] sm:$0xf]
        %v400 = vld [vmem:[%s1 + $0x44] sm:$0xf]
        %v401 = vld [vmem:[%s1 + $0x48] sm:$0xf]
        %v402 = vld [vmem:[%s1 + $0x4c] sm:$0xf]
        %v403 = vld [vmem:[%s1 + $0x50] sm:$0xf]
        %v404 = vld [vmem:[%s1 + $0x54] sm:$0xf]
        %v405 = vld [vmem:[%s1 + $0x58] sm:$0xf]
        %v406 = vld [vmem:[%s1 + $0x5c] sm:$0xf]
        %v407 = vld [vmem:[%s1 + $0x60] sm:$0xf]
        %v408 = vld [vmem:[%s1 + $0x64] sm:$0xf]
        %v409 = vld [vmem:[%s1 + $0x68] sm:$0xf]
        %v410 = vld [vmem:[%s1 + $0x6c] sm:$0xf]
        %v411 = vld [vmem:[%s1 + $0x70] sm:$0xf]
        %v412 = vld [vmem:[%s1 + $0x74] sm:$0xf]
        %v413 = vld [vmem:[%s1 + $0x78] sm:$0xf]
        %v414 = vld [vmem:[%s1 + $0x7c] sm:$0xf]
        %v415 = vld [vmem:[%s1 + $0x80] sm:$0xf]
        %v416 = vld [vmem:[%s1 + $0x84] sm:$0xf]
        %v417 = vld [vmem:[%s1 + $0x88] sm:$0xf]
        %v418 = vld [vmem:[%s1 + $0x8c] sm:$0xf]
        %v419 = vld [vmem:[%s2] sm:$0x1]
        %v421 = vlaneseq
        %v422 = vshrl.u32 %v421, 7
        %v423 = vsub.s32 0, %v422
        %v424 = vrot.slane %v419, %v423
        %v442 = vunpack.c.l.b16 %v367
        %v443 = vunpack.c.h.b16 %v367
        %v444 = vunpack.c.l.b16 %v368
        %v445 = vunpack.c.l.b16 %v369
        %v446 = vunpack.c.h.b16 %v369
        %v447 = vunpack.c.l.b16 %v370
        %v448 = vunpack.c.l.b16 %v371
        %v449 = vunpack.c.h.b16 %v371
        %v450 = vunpack.c.l.b16 %v372
        %v451 = vunpack.c.l.b16 %v373
        %v452 = vunpack.c.h.b16 %v373
        %v453 = vunpack.c.l.b16 %v374
        %v454 = vunpack.c.l.b16 %v375
        %v455 = vunpack.c.h.b16 %v375
        %v456 = vunpack.c.l.b16 %v376
        %v457 = vunpack.c.l.b16 %v377
        %v458 = vunpack.c.h.b16 %v377
        %v459 = vunpack.c.l.b16 %v378
        %v460 = vunpack.c.l.b16 %v379
        %v461 = vunpack.c.h.b16 %v379
        %v462 = vunpack.c.l.b16 %v380
        %v463 = vunpack.c.l.b16 %v381
        %v464 = vunpack.c.h.b16 %v381
        %v465 = vunpack.c.l.b16 %v382
        %v466 = vpack.c.b16 %v445, %v442
        %v467 = vpack.c.b16 %v446, %v443
        %v468 = vpack.c.b16 %v447, %v444
        %v469 = vpack.c.b16 %v451, %v448
        %v470 = vpack.c.b16 %v452, %v449
        %v471 = vpack.c.b16 %v453, %v450
        %v472 = vpack.c.b16 %v457, %v454
        %v473 = vpack.c.b16 %v458, %v455
        %v474 = vpack.c.b16 %v459, %v456
        %v475 = vpack.c.b16 %v463, %v460
        %v476 = vpack.c.b16 %v464, %v461
        %v477 = vpack.c.b16 %v465, %v462
        %v522 = vunpack.c.l.b16 %v383
        %v523 = vunpack.c.l.b16 %v384
        %v524 = vunpack.c.l.b16 %v385
        %v525 = vunpack.c.l.b16 %v386
        %v526 = vunpack.c.l.b16 %v387
        %v527 = vunpack.c.l.b16 %v388
        %v528 = vunpack.c.l.b16 %v389
        %v529 = vunpack.c.l.b16 %v390
        %v530 = vunpack.c.l.b16 %v391
        %v531 = vunpack.c.l.b16 %v392
        %v532 = vunpack.c.l.b16 %v393
        %v533 = vunpack.c.l.b16 %v394
        %v534 = vunpack.c.l.b16 %v395
        %v535 = vunpack.c.l.b16 %v396
        %v536 = vunpack.c.l.b16 %v397
        %v537 = vunpack.c.l.b16 %v398
        %v538 = vunpack.c.l.b16 %v399
        %v539 = vunpack.c.l.b16 %v400
        %v540 = vunpack.c.l.b16 %v401
        %v541 = vunpack.c.l.b16 %v402
        %v542 = vunpack.c.l.b16 %v403
        %v543 = vunpack.c.l.b16 %v404
        %v544 = vunpack.c.l.b16 %v405
        %v545 = vunpack.c.l.b16 %v406
        %v546 = vunpack.c.l.b16 %v407
        %v547 = vunpack.c.l.b16 %v408
        %v548 = vunpack.c.l.b16 %v409
        %v549 = vunpack.c.l.b16 %v410
        %v550 = vunpack.c.l.b16 %v411
        %v551 = vunpack.c.l.b16 %v412
        %v552 = vunpack.c.l.b16 %v413
        %v553 = vunpack.c.l.b16 %v414
        %v554 = vunpack.c.l.b16 %v415
        %v555 = vunpack.c.l.b16 %v416
        %v556 = vunpack.c.l.b16 %v417
        %v557 = vunpack.c.l.b16 %v418
        %v558 = vpack.c.b16 %v523, %v522
        %v559 = vpack.c.b16 %v525, %v524
        %v560 = vpack.c.b16 %v527, %v526
        %v561 = vpack.c.b16 %v529, %v528
        %v562 = vpack.c.b16 %v531, %v530
        %v563 = vpack.c.b16 %v533, %v532
        %v564 = vpack.c.b16 %v535, %v534
        %v565 = vpack.c.b16 %v537, %v536
        %v566 = vpack.c.b16 %v539, %v538
        %v567 = vpack.c.b16 %v541, %v540
        %v568 = vpack.c.b16 %v543, %v542
        %v569 = vpack.c.b16 %v545, %v544
        %v570 = vpack.c.b16 %v547, %v546
        %v571 = vpack.c.b16 %v549, %v548
        %v572 = vpack.c.b16 %v551, %v550
        %v573 = vpack.c.b16 %v553, %v552
        %v574 = vpack.c.b16 %v555, %v554
        %v575 = vpack.c.b16 %v557, %v556
        %vm594 = vcmask 261120
        %v596 = vsel %vm594, %v468, 0
        %v599 = vsel %vm594, %v471, 0
        %v602 = vsel %vm594, %v474, 0
        %v605 = vsel %vm594, %v477, 0
        %607 = vmatprep.subr.bf16.mxu0 0
        %608 = vmatpush1.bf16.msra.mxu0 %v558
        %609 = vmatprep.subr.bf16.mxu0 0
        %610 = vmatpush1.bf16.msra.mxu0 %v559
        %611 = vmatprep.subr.bf16.mxu0 0
        %612 = vmatpush1.bf16.msra.mxu0 %v560
        %613 = vmatprep.subr.bf16.mxu0 0
        %614 = vmatpush1.bf16.msra.mxu0 %v561
        %615 = vmatprep.subr.bf16.mxu0 0
        %616 = vmatpush1.bf16.msra.mxu0 %v562
        %617 = vmatprep.subr.bf16.mxu0 0
        %618 = vmatpush1.bf16.msra.mxu0 %v563
        %619 = vmatprep.subr.bf16.mxu0 0
        %620 = vmatpush1.bf16.msra.mxu0 %v564
        %621 = vmatprep.subr.bf16.mxu0 0
        %622 = vmatpush1.bf16.msra.mxu0 %v565
        %623 = vmatprep.subr.bf16.mxu0 0
        %624 = vmatpush1.bf16.msra.mxu0 %v566
        %625 = vmatprep.subr.bf16.mxu0 0
        %626 = vmatpush1.bf16.msra.mxu0 %v567
        %627 = vmatprep.subr.bf16.mxu0 0
        %628 = vmatpush1.bf16.msra.mxu0 %v568
        %629 = vmatprep.subr.bf16.mxu0 0
        %630 = vmatpush1.bf16.msra.mxu0 %v569
        %631 = vmatprep.subr.bf16.mxu0 0
        %632 = vmatpush1.bf16.msra.mxu0 %v570
        %633 = vmatprep.subr.bf16.mxu0 0
        %634 = vmatpush1.bf16.msra.mxu0 %v571
        %635 = vmatprep.subr.bf16.mxu0 0
        %636 = vmatpush1.bf16.msra.mxu0 %v572
        %637 = vmatprep.subr.bf16.mxu0 0
        %638 = vmatpush1.bf16.msra.mxu0 %v573
        %639 = vmatprep.mubr.bf16.mxu0 %v467
        %640 = vmatmul.mubr.bf16.gmra.mrb[0].mxu0 %v466
        %v641 = vpop.f32.mrb[0].mxu0
        %v642 = vadd.f32 %v424, %v641
        %v643 = vpop.f32.mrb[0].mxu0
        %v644 = vpop.f32.mrb[0].mxu0
        %v645 = vadd.f32 %v424, %v644
        %v646 = vpop.f32.mrb[0].mxu0
        %647 = vmatprep.mubr.bf16.mxu0 %v470
        %648 = vmatmul.mubr.bf16.gmra.mrb[0].mxu0 %v469
        %v649 = vpop.f32.mrb[0].mxu0
        %v650 = vadd.f32 %v424, %v649
        %v651 = vpop.f32.mrb[0].mxu0
        %v652 = vpop.f32.mrb[0].mxu0
        %v653 = vadd.f32 %v424, %v652
        %v654 = vpop.f32.mrb[0].mxu0
        %655 = vmatprep.mubr.bf16.mxu0 %v473
        %656 = vmatmul.mubr.bf16.gmra.mrb[0].mxu0 %v472
        %v657 = vpop.f32.mrb[0].mxu0
        %v658 = vadd.f32 %v424, %v657
        %v659 = vpop.f32.mrb[0].mxu0
        %v660 = vpop.f32.mrb[0].mxu0
        %v661 = vadd.f32 %v424, %v660
        %v662 = vpop.f32.mrb[0].mxu0
        %663 = vmatprep.mubr.bf16.mxu0 %v476
        %664 = vmatmul.mubr.bf16.gmra.mrb[0].mxu0 %v475
        %v665 = vpop.f32.mrb[0].mxu0
        %v666 = vadd.f32 %v424, %v665
        %v667 = vpop.f32.mrb[0].mxu0
        %v668 = vpop.f32.mrb[0].mxu0
        %v669 = vadd.f32 %v424, %v668
        %v670 = vpop.f32.mrb[0].mxu0
        %671 = vdwg.mxu0
        %672 = vmatprep.subr.bf16.mxu0 0
        %673 = vmatpush1.bf16.msra.mxu0 %v574
        %674 = vmatprep.subr.bf16.mxu0 0
        %675 = vmatpush1.bf16.msra.mxu0 %v575
        %676 = vmatprep.subr.bf16.mxu0 0
        %677 = vmatpush1.bf16.msra.mxu0 0
        %678 = vmatprep.subr.bf16.mxu0 0
        %679 = vmatpush1.bf16.msra.mxu0 0
        %680 = vmatprep.subr.bf16.mxu0 0
        %681 = vmatpush1.bf16.msra.mxu0 0
        %682 = vmatprep.subr.bf16.mxu0 0
        %683 = vmatpush1.bf16.msra.mxu0 0
        %684 = vmatprep.subr.bf16.mxu0 0
        %685 = vmatpush1.bf16.msra.mxu0 0
        %686 = vmatprep.subr.bf16.mxu0 0
        %687 = vmatpush1.bf16.msra.mxu0 0
        %688 = vmatprep.subr.bf16.mxu0 0
        %689 = vmatpush1.bf16.msra.mxu0 0
        %690 = vmatprep.subr.bf16.mxu0 0
        %691 = vmatpush1.bf16.msra.mxu0 0
        %692 = vmatprep.subr.bf16.mxu0 0
        %693 = vmatpush1.bf16.msra.mxu0 0
        %694 = vmatprep.subr.bf16.mxu0 0
        %695 = vmatpush1.bf16.msra.mxu0 0
        %696 = vmatprep.subr.bf16.mxu0 0
        %697 = vmatpush1.bf16.msra.mxu0 0
        %698 = vmatprep.subr.bf16.mxu0 0
        %699 = vmatpush1.bf16.msra.mxu0 0
        %700 = vmatprep.subr.bf16.mxu0 0
        %701 = vmatpush1.bf16.msra.mxu0 0
        %702 = vmatprep.subr.bf16.mxu0 0
        %703 = vmatpush1.bf16.msra.mxu0 0
        %704 = vmatprep.mubr.bf16.mxu0 0
        %705 = vmatmul.mubr.bf16.gmra.mrb[0].mxu0 %v596
        %v706 = vpop.f32.mrb[0].mxu0
        %v707 = vadd.f32 %v642, %v706
        %v708 = vpop.f32.mrb[0].mxu0
        %v709 = vpop.f32.mrb[0].mxu0
        %v710 = vadd.f32 %v645, %v709
        %v711 = vpop.f32.mrb[0].mxu0
        %712 = vmatprep.mubr.bf16.mxu0 0
        %713 = vmatmul.mubr.bf16.gmra.mrb[0].mxu0 %v599
        %v714 = vpop.f32.mrb[0].mxu0
        %v715 = vadd.f32 %v650, %v714
        %v716 = vpop.f32.mrb[0].mxu0
        %v717 = vpop.f32.mrb[0].mxu0
        %v718 = vadd.f32 %v653, %v717
        %v719 = vpop.f32.mrb[0].mxu0
        %720 = vmatprep.mubr.bf16.mxu0 0
        %721 = vmatmul.mubr.bf16.gmra.mrb[0].mxu0 %v602
        %v722 = vpop.f32.mrb[0].mxu0
        %v723 = vadd.f32 %v658, %v722
        %v724 = vpop.f32.mrb[0].mxu0
        %v725 = vpop.f32.mrb[0].mxu0
        %v726 = vadd.f32 %v661, %v725
        %v727 = vpop.f32.mrb[0].mxu0
        %728 = vmatprep.mubr.bf16.mxu0 0
        %729 = vmatmul.mubr.bf16.gmra.mrb[0].mxu0 %v605
        %v730 = vpop.f32.mrb[0].mxu0
        %v731 = vadd.f32 %v666, %v730
        %v732 = vpop.f32.mrb[0].mxu0
        %v733 = vpop.f32.mrb[0].mxu0
        %v734 = vadd.f32 %v669, %v733
        %v735 = vpop.f32.mrb[0].mxu0
        %736 = vdwg.mxu0
        %v737 = vmax.f32 %v707, 0.0
        %v738 = vmax.f32 %v710, 0.0
        %v739 = vmax.f32 %v715, 0.0
        %v740 = vmax.f32 %v718, 0.0
        %v741 = vmax.f32 %v723, 0.0
        %v742 = vmax.f32 %v726, 0.0
        %v743 = vmax.f32 %v731, 0.0
        %v744 = vmax.f32 %v734, 0.0
        %v745 = vadd.f32 %v737, %v739
        %v746 = vadd.f32 %v738, %v740
        %v747 = vadd.f32 %v741, %v743
        %v748 = vadd.f32 %v742, %v744
        %v749 = vadd.f32 %v745, %v747
        %v750 = vadd.f32 %v746, %v748
        %v751 = vmul.f32 %v749, 0.25
        %v752 = vmul.f32 %v750, 0.25
        %v753 = vpack.c.bf16 %v752, %v751
        %v754 = vld [vmem:[%s4] sm:$0x3]
        %v755 = vld [vmem:[%s3] sm:$0xff]
        %v756 = vld [vmem:[%s3 + $0x8] sm:$0xff]
        %v757 = vld [vmem:[%s3 + $0x10] sm:$0xff]
        %v758 = vld [vmem:[%s3 + $0x18] sm:$0xff]
        %v759 = vld [vmem:[%s3 + $0x20] sm:$0xff]
        %v760 = vld [vmem:[%s3 + $0x28] sm:$0xff]
        %v761 = vld [vmem:[%s3 + $0x30] sm:$0xff]
        %v762 = vld [vmem:[%s3 + $0x38] sm:$0xff]
        %v771 = vunpack.c.l.b16 %v755
        %v772 = vunpack.c.h.b16 %v755
        %v773 = vunpack.c.l.b16 %v756
        %v774 = vunpack.c.h.b16 %v756
        %v775 = vunpack.c.l.b16 %v757
        %v776 = vunpack.c.h.b16 %v757
        %v777 = vunpack.c.l.b16 %v758
        %v778 = vunpack.c.h.b16 %v758
        %v779 = vunpack.c.l.b16 %v759
        %v780 = vunpack.c.h.b16 %v759
        %v781 = vunpack.c.l.b16 %v760
        %v782 = vunpack.c.h.b16 %v760
        %v783 = vunpack.c.l.b16 %v761
        %v784 = vunpack.c.h.b16 %v761
        %v785 = vunpack.c.l.b16 %v762
        %v786 = vunpack.c.h.b16 %v762
        %v787 = vpack.c.b16 %v773, %v771
        %v788 = vpack.c.b16 %v774, %v772
        %v789 = vpack.c.b16 %v777, %v775
        %v790 = vpack.c.b16 %v778, %v776
        %v791 = vpack.c.b16 %v781, %v779
        %v792 = vpack.c.b16 %v782, %v780
        %v793 = vpack.c.b16 %v785, %v783
        %v794 = vpack.c.b16 %v786, %v784
        %vm803 = vcmask 523264
        %v805 = vsel %vm803, %v753, 0
        %807 = vmatprep.subr.bf16.mxu0 %v788
        %808 = vmatpush1.bf16.msra.mxu0 %v787
        %809 = vmatprep.subr.bf16.mxu0 %v790
        %810 = vmatpush1.bf16.msra.mxu0 %v789
        %811 = vmatprep.subr.bf16.mxu0 %v792
        %812 = vmatpush1.bf16.msra.mxu0 %v791
        %813 = vmatprep.subr.bf16.mxu0 %v794
        %814 = vmatpush1.bf16.msra.mxu0 %v793
        %815 = vmatprep.subr.bf16.mxu0 0
        %816 = vmatpush1.bf16.msra.mxu0 0
        %817 = vmatprep.subr.bf16.mxu0 0
        %818 = vmatpush1.bf16.msra.mxu0 0
        %819 = vmatprep.subr.bf16.mxu0 0
        %820 = vmatpush1.bf16.msra.mxu0 0
        %821 = vmatprep.subr.bf16.mxu0 0
        %822 = vmatpush1.bf16.msra.mxu0 0
        %823 = vmatprep.subr.bf16.mxu0 0
        %824 = vmatpush1.bf16.msra.mxu0 0
        %825 = vmatprep.subr.bf16.mxu0 0
        %826 = vmatpush1.bf16.msra.mxu0 0
        %827 = vmatprep.subr.bf16.mxu0 0
        %828 = vmatpush1.bf16.msra.mxu0 0
        %829 = vmatprep.subr.bf16.mxu0 0
        %830 = vmatpush1.bf16.msra.mxu0 0
        %831 = vmatprep.subr.bf16.mxu0 0
        %832 = vmatpush1.bf16.msra.mxu0 0
        %833 = vmatprep.subr.bf16.mxu0 0
        %834 = vmatpush1.bf16.msra.mxu0 0
        %835 = vmatprep.subr.bf16.mxu0 0
        %836 = vmatpush1.bf16.msra.mxu0 0
        %837 = vmatprep.subr.bf16.mxu0 0
        %838 = vmatpush1.bf16.msra.mxu0 0
        %839 = vmatprep.mubr.bf16.mxu0 0
        %840 = vmatmul.mubr.bf16.gmra.mrb[0].mxu0 %v805
        %v841 = vpop.f32.mrb[0].mxu0
        %v842 = vadd.f32 0.0, %v841
        %v843 = vpop.f32.mrb[0].mxu0
        %v844 = vadd.f32 0.0, %v843
        %v845 = vpop.f32.mrb[0].mxu0
        %v846 = vpop.f32.mrb[0].mxu0
        %847 = vdwg.mxu0
        %v850 = vcombine.low %v842, %v844
        %v852 = vunpack.c.l.s4 1966171168
        %v853 = vunpack.c.0.s8 %v852
        %v854 = vlaneseq
        %v855 = vshrl.u32 %v854, 7
        %v856 = vsub.s32 %v853, %v855
        %v857 = vrot.slane %v850, %v856
        %v859 = vunpack.c.l.s4 1966171168
        %v860 = vunpack.c.0.s8 %v859
        %v861 = vlaneseq
        %v862 = vshrl.u32 %v861, 7
        %v863 = vsub.s32 %v860, %v862
        %v864 = vrot.slane %v857, %v863
        %v866 = vadd.f32 %v754, %v864
        %s867 = scalar_lea.vmem %s3, 64
        %v868 = vld [vmem:[%s867] sm:$0xff]
        %v869 = vld [vmem:[%s867 + $0x8] sm:$0xff]
        %v870 = vld [vmem:[%s867 + $0x10] sm:$0xff]
        %v871 = vld [vmem:[%s867 + $0x18] sm:$0xff]
        %v872 = vld [vmem:[%s867 + $0x20] sm:$0xff]
        %v873 = vld [vmem:[%s867 + $0x28] sm:$0xff]
        %v874 = vld [vmem:[%s867 + $0x30] sm:$0xff]
        %v875 = vld [vmem:[%s867 + $0x38] sm:$0xff]
        %v876 = vshrl.u32 %v753, 16
        %v886 = vunpack.c.l.b16 %v868
        %v887 = vunpack.c.h.b16 %v868
        %v888 = vunpack.c.l.b16 %v869
        %v889 = vunpack.c.h.b16 %v869
        %v890 = vunpack.c.l.b16 %v870
        %v891 = vunpack.c.h.b16 %v870
        %v892 = vunpack.c.l.b16 %v871
        %v893 = vunpack.c.h.b16 %v871
        %v894 = vunpack.c.l.b16 %v872
        %v895 = vunpack.c.h.b16 %v872
        %v896 = vunpack.c.l.b16 %v873
        %v897 = vunpack.c.h.b16 %v873
        %v898 = vunpack.c.l.b16 %v874
        %v899 = vunpack.c.h.b16 %v874
        %v900 = vunpack.c.l.b16 %v875
        %v901 = vunpack.c.h.b16 %v875
        %v902 = vpack.c.b16 %v888, %v886
        %v903 = vpack.c.b16 %v889, %v887
        %v904 = vpack.c.b16 %v892, %v890
        %v905 = vpack.c.b16 %v893, %v891
        %v906 = vpack.c.b16 %v896, %v894
        %v907 = vpack.c.b16 %v897, %v895
        %v908 = vpack.c.b16 %v900, %v898
        %v909 = vpack.c.b16 %v901, %v899
        %v919 = vsel %vm803, %v876, 0
        %921 = vmatprep.subr.bf16.mxu0 %v903
        %922 = vmatpush1.bf16.msra.mxu0 %v902
        %923 = vmatprep.subr.bf16.mxu0 %v905
        %924 = vmatpush1.bf16.msra.mxu0 %v904
        %925 = vmatprep.subr.bf16.mxu0 %v907
        %926 = vmatpush1.bf16.msra.mxu0 %v906
        %927 = vmatprep.subr.bf16.mxu0 %v909
        %928 = vmatpush1.bf16.msra.mxu0 %v908
        %929 = vmatprep.subr.bf16.mxu0 0
        %930 = vmatpush1.bf16.msra.mxu0 0
        %931 = vmatprep.subr.bf16.mxu0 0
        %932 = vmatpush1.bf16.msra.mxu0 0
        %933 = vmatprep.subr.bf16.mxu0 0
        %934 = vmatpush1.bf16.msra.mxu0 0
        %935 = vmatprep.subr.bf16.mxu0 0
        %936 = vmatpush1.bf16.msra.mxu0 0
        %937 = vmatprep.subr.bf16.mxu0 0
        %938 = vmatpush1.bf16.msra.mxu0 0
        %939 = vmatprep.subr.bf16.mxu0 0
        %940 = vmatpush1.bf16.msra.mxu0 0
        %941 = vmatprep.subr.bf16.mxu0 0
        %942 = vmatpush1.bf16.msra.mxu0 0
        %943 = vmatprep.subr.bf16.mxu0 0
        %944 = vmatpush1.bf16.msra.mxu0 0
        %945 = vmatprep.subr.bf16.mxu0 0
        %946 = vmatpush1.bf16.msra.mxu0 0
        %947 = vmatprep.subr.bf16.mxu0 0
        %948 = vmatpush1.bf16.msra.mxu0 0
        %949 = vmatprep.subr.bf16.mxu0 0
        %950 = vmatpush1.bf16.msra.mxu0 0
        %951 = vmatprep.subr.bf16.mxu0 0
        %952 = vmatpush1.bf16.msra.mxu0 0
        %953 = vmatprep.mubr.bf16.mxu0 0
        %954 = vmatmul.mubr.bf16.gmra.mrb[0].mxu0 %v919
        %v955 = vpop.f32.mrb[0].mxu0
        %v956 = vadd.f32 0.0, %v955
        %v957 = vpop.f32.mrb[0].mxu0
        %v958 = vadd.f32 0.0, %v957
        %v959 = vpop.f32.mrb[0].mxu0
        %v960 = vpop.f32.mrb[0].mxu0
        %961 = vdwg.mxu0
        %v964 = vcombine.low %v956, %v958
        %v966 = vunpack.c.l.s4 1966171168
        %v967 = vunpack.c.0.s8 %v966
        %v968 = vlaneseq
        %v969 = vshrl.u32 %v968, 7
        %v970 = vsub.s32 %v967, %v969
        %v971 = vrot.slane %v964, %v970
        %v973 = vunpack.c.l.s4 1966171168
        %v974 = vunpack.c.0.s8 %v973
        %v975 = vlaneseq
        %v976 = vshrl.u32 %v975, 7
        %v977 = vsub.s32 %v974, %v976
        %v978 = vrot.slane %v971, %v977
        %v980 = vadd.f32 %v866, %v978
        %s981 = scalar_lea.vmem %s3, 128
        %v982 = vld [vmem:[%s981] sm:$0xff]
        %v983 = vld [vmem:[%s981 + $0x8] sm:$0xff]
        %v984 = vld [vmem:[%s981 + $0x10] sm:$0xff]
        %v985 = vld [vmem:[%s981 + $0x18] sm:$0xff]
        %v986 = vld [vmem:[%s981 + $0x20] sm:$0xff]
        %v987 = vld [vmem:[%s981 + $0x28] sm:$0xff]
        %v988 = vld [vmem:[%s981 + $0x30] sm:$0xff]
        %v989 = vld [vmem:[%s981 + $0x38] sm:$0xff]
        %v991 = vrot.slane %v753, 1
        %v1000 = vunpack.c.l.b16 %v982
        %v1001 = vunpack.c.h.b16 %v982
        %v1002 = vunpack.c.l.b16 %v983
        %v1003 = vunpack.c.h.b16 %v983
        %v1004 = vunpack.c.l.b16 %v984
        %v1005 = vunpack.c.h.b16 %v984
        %v1006 = vunpack.c.l.b16 %v985
        %v1007 = vunpack.c.h.b16 %v985
        %v1008 = vunpack.c.l.b16 %v986
        %v1009 = vunpack.c.h.b16 %v986
        %v1010 = vunpack.c.l.b16 %v987
        %v1011 = vunpack.c.h.b16 %v987
        %v1012 = vunpack.c.l.b16 %v988
        %v1013 = vunpack.c.h.b16 %v988
        %v1014 = vunpack.c.l.b16 %v989
        %v1015 = vunpack.c.h.b16 %v989
        %v1016 = vpack.c.b16 %v1002, %v1000
        %v1017 = vpack.c.b16 %v1003, %v1001
        %v1018 = vpack.c.b16 %v1006, %v1004
        %v1019 = vpack.c.b16 %v1007, %v1005
        %v1020 = vpack.c.b16 %v1010, %v1008
        %v1021 = vpack.c.b16 %v1011, %v1009
        %v1022 = vpack.c.b16 %v1014, %v1012
        %v1023 = vpack.c.b16 %v1015, %v1013
        %v1033 = vsel %vm803, %v991, 0
        %1035 = vmatprep.subr.bf16.mxu0 %v1017
        %1036 = vmatpush1.bf16.msra.mxu0 %v1016
        %1037 = vmatprep.subr.bf16.mxu0 %v1019
        %1038 = vmatpush1.bf16.msra.mxu0 %v1018
        %1039 = vmatprep.subr.bf16.mxu0 %v1021
        %1040 = vmatpush1.bf16.msra.mxu0 %v1020
        %1041 = vmatprep.subr.bf16.mxu0 %v1023
        %1042 = vmatpush1.bf16.msra.mxu0 %v1022
        %1043 = vmatprep.subr.bf16.mxu0 0
        %1044 = vmatpush1.bf16.msra.mxu0 0
        %1045 = vmatprep.subr.bf16.mxu0 0
        %1046 = vmatpush1.bf16.msra.mxu0 0
        %1047 = vmatprep.subr.bf16.mxu0 0
        %1048 = vmatpush1.bf16.msra.mxu0 0
        %1049 = vmatprep.subr.bf16.mxu0 0
        %1050 = vmatpush1.bf16.msra.mxu0 0
        %1051 = vmatprep.subr.bf16.mxu0 0
        %1052 = vmatpush1.bf16.msra.mxu0 0
        %1053 = vmatprep.subr.bf16.mxu0 0
        %1054 = vmatpush1.bf16.msra.mxu0 0
        %1055 = vmatprep.subr.bf16.mxu0 0
        %1056 = vmatpush1.bf16.msra.mxu0 0
        %1057 = vmatprep.subr.bf16.mxu0 0
        %1058 = vmatpush1.bf16.msra.mxu0 0
        %1059 = vmatprep.subr.bf16.mxu0 0
        %1060 = vmatpush1.bf16.msra.mxu0 0
        %1061 = vmatprep.subr.bf16.mxu0 0
        %1062 = vmatpush1.bf16.msra.mxu0 0
        %1063 = vmatprep.subr.bf16.mxu0 0
        %1064 = vmatpush1.bf16.msra.mxu0 0
        %1065 = vmatprep.subr.bf16.mxu0 0
        %1066 = vmatpush1.bf16.msra.mxu0 0
        %1067 = vmatprep.mubr.bf16.mxu0 0
        %1068 = vmatmul.mubr.bf16.gmra.mrb[0].mxu0 %v1033
        %v1069 = vpop.f32.mrb[0].mxu0
        %v1070 = vadd.f32 0.0, %v1069
        %v1071 = vpop.f32.mrb[0].mxu0
        %v1072 = vadd.f32 0.0, %v1071
        %v1073 = vpop.f32.mrb[0].mxu0
        %v1074 = vpop.f32.mrb[0].mxu0
        %1075 = vdwg.mxu0
        %v1078 = vcombine.low %v1070, %v1072
        %v1080 = vunpack.c.l.s4 1966171168
        %v1081 = vunpack.c.0.s8 %v1080
        %v1082 = vlaneseq
        %v1083 = vshrl.u32 %v1082, 7
        %v1084 = vsub.s32 %v1081, %v1083
        %v1085 = vrot.slane %v1078, %v1084
        %v1087 = vunpack.c.l.s4 1966171168
        %v1088 = vunpack.c.0.s8 %v1087
        %v1089 = vlaneseq
        %v1090 = vshrl.u32 %v1089, 7
        %v1091 = vsub.s32 %v1088, %v1090
        %v1092 = vrot.slane %v1085, %v1091
        %v1094 = vadd.f32 %v980, %v1092
        %s1095 = scalar_lea.vmem %s3, 192
        %v1096 = vld [vmem:[%s1095] sm:$0xff]
        %v1097 = vld [vmem:[%s1095 + $0x8] sm:$0xff]
        %v1098 = vld [vmem:[%s1095 + $0x10] sm:$0xff]
        %v1099 = vld [vmem:[%s1095 + $0x18] sm:$0xff]
        %v1100 = vld [vmem:[%s1095 + $0x20] sm:$0xff]
        %v1101 = vld [vmem:[%s1095 + $0x28] sm:$0xff]
        %v1102 = vld [vmem:[%s1095 + $0x30] sm:$0xff]
        %v1103 = vld [vmem:[%s1095 + $0x38] sm:$0xff]
        %v1104 = vrot.slane %v876, 1
        %v1113 = vunpack.c.l.b16 %v1096
        %v1114 = vunpack.c.h.b16 %v1096
        %v1115 = vunpack.c.l.b16 %v1097
        %v1116 = vunpack.c.h.b16 %v1097
        %v1117 = vunpack.c.l.b16 %v1098
        %v1118 = vunpack.c.h.b16 %v1098
        %v1119 = vunpack.c.l.b16 %v1099
        %v1120 = vunpack.c.h.b16 %v1099
        %v1121 = vunpack.c.l.b16 %v1100
        %v1122 = vunpack.c.h.b16 %v1100
        %v1123 = vunpack.c.l.b16 %v1101
        %v1124 = vunpack.c.h.b16 %v1101
        %v1125 = vunpack.c.l.b16 %v1102
        %v1126 = vunpack.c.h.b16 %v1102
        %v1127 = vunpack.c.l.b16 %v1103
        %v1128 = vunpack.c.h.b16 %v1103
        %v1129 = vpack.c.b16 %v1115, %v1113
        %v1130 = vpack.c.b16 %v1116, %v1114
        %v1131 = vpack.c.b16 %v1119, %v1117
        %v1132 = vpack.c.b16 %v1120, %v1118
        %v1133 = vpack.c.b16 %v1123, %v1121
        %v1134 = vpack.c.b16 %v1124, %v1122
        %v1135 = vpack.c.b16 %v1127, %v1125
        %v1136 = vpack.c.b16 %v1128, %v1126
        %v1146 = vsel %vm803, %v1104, 0
        %1148 = vmatprep.subr.bf16.mxu0 %v1130
        %1149 = vmatpush1.bf16.msra.mxu0 %v1129
        %1150 = vmatprep.subr.bf16.mxu0 %v1132
        %1151 = vmatpush1.bf16.msra.mxu0 %v1131
        %1152 = vmatprep.subr.bf16.mxu0 %v1134
        %1153 = vmatpush1.bf16.msra.mxu0 %v1133
        %1154 = vmatprep.subr.bf16.mxu0 %v1136
        %1155 = vmatpush1.bf16.msra.mxu0 %v1135
        %1156 = vmatprep.subr.bf16.mxu0 0
        %1157 = vmatpush1.bf16.msra.mxu0 0
        %1158 = vmatprep.subr.bf16.mxu0 0
        %1159 = vmatpush1.bf16.msra.mxu0 0
        %1160 = vmatprep.subr.bf16.mxu0 0
        %1161 = vmatpush1.bf16.msra.mxu0 0
        %1162 = vmatprep.subr.bf16.mxu0 0
        %1163 = vmatpush1.bf16.msra.mxu0 0
        %1164 = vmatprep.subr.bf16.mxu0 0
        %1165 = vmatpush1.bf16.msra.mxu0 0
        %1166 = vmatprep.subr.bf16.mxu0 0
        %1167 = vmatpush1.bf16.msra.mxu0 0
        %1168 = vmatprep.subr.bf16.mxu0 0
        %1169 = vmatpush1.bf16.msra.mxu0 0
        %1170 = vmatprep.subr.bf16.mxu0 0
        %1171 = vmatpush1.bf16.msra.mxu0 0
        %1172 = vmatprep.subr.bf16.mxu0 0
        %1173 = vmatpush1.bf16.msra.mxu0 0
        %1174 = vmatprep.subr.bf16.mxu0 0
        %1175 = vmatpush1.bf16.msra.mxu0 0
        %1176 = vmatprep.subr.bf16.mxu0 0
        %1177 = vmatpush1.bf16.msra.mxu0 0
        %1178 = vmatprep.subr.bf16.mxu0 0
        %1179 = vmatpush1.bf16.msra.mxu0 0
        %1180 = vmatprep.mubr.bf16.mxu0 0
        %1181 = vmatmul.mubr.bf16.gmra.mrb[0].mxu0 %v1146
        %v1182 = vpop.f32.mrb[0].mxu0
        %v1183 = vadd.f32 0.0, %v1182
        %v1184 = vpop.f32.mrb[0].mxu0
        %v1185 = vadd.f32 0.0, %v1184
        %v1186 = vpop.f32.mrb[0].mxu0
        %v1187 = vpop.f32.mrb[0].mxu0
        %1188 = vdwg.mxu0
        %v1191 = vcombine.low %v1183, %v1185
        %v1193 = vunpack.c.l.s4 1966171168
        %v1194 = vunpack.c.0.s8 %v1193
        %v1195 = vlaneseq
        %v1196 = vshrl.u32 %v1195, 7
        %v1197 = vsub.s32 %v1194, %v1196
        %v1198 = vrot.slane %v1191, %v1197
        %v1200 = vunpack.c.l.s4 1966171168
        %v1201 = vunpack.c.0.s8 %v1200
        %v1202 = vlaneseq
        %v1203 = vshrl.u32 %v1202, 7
        %v1204 = vsub.s32 %v1201, %v1203
        %v1205 = vrot.slane %v1198, %v1204
        %v1207 = vadd.f32 %v1094, %v1205
        %s1208 = scalar_lea.vmem %s3, 256
        %v1209 = vld [vmem:[%s1208] sm:$0xff]
        %v1210 = vld [vmem:[%s1208 + $0x8] sm:$0xff]
        %v1211 = vld [vmem:[%s1208 + $0x10] sm:$0xff]
        %v1212 = vld [vmem:[%s1208 + $0x18] sm:$0xff]
        %v1213 = vld [vmem:[%s1208 + $0x20] sm:$0xff]
        %v1214 = vld [vmem:[%s1208 + $0x28] sm:$0xff]
        %v1215 = vld [vmem:[%s1208 + $0x30] sm:$0xff]
        %v1216 = vld [vmem:[%s1208 + $0x38] sm:$0xff]
        %v1217 = vrot.slane %v753, 2
        %v1226 = vunpack.c.l.b16 %v1209
        %v1227 = vunpack.c.h.b16 %v1209
        %v1228 = vunpack.c.l.b16 %v1210
        %v1229 = vunpack.c.h.b16 %v1210
        %v1230 = vunpack.c.l.b16 %v1211
        %v1231 = vunpack.c.h.b16 %v1211
        %v1232 = vunpack.c.l.b16 %v1212
        %v1233 = vunpack.c.h.b16 %v1212
        %v1234 = vunpack.c.l.b16 %v1213
        %v1235 = vunpack.c.h.b16 %v1213
        %v1236 = vunpack.c.l.b16 %v1214
        %v1237 = vunpack.c.h.b16 %v1214
        %v1238 = vunpack.c.l.b16 %v1215
        %v1239 = vunpack.c.h.b16 %v1215
        %v1240 = vunpack.c.l.b16 %v1216
        %v1241 = vunpack.c.h.b16 %v1216
        %v1242 = vpack.c.b16 %v1228, %v1226
        %v1243 = vpack.c.b16 %v1229, %v1227
        %v1244 = vpack.c.b16 %v1232, %v1230
        %v1245 = vpack.c.b16 %v1233, %v1231
        %v1246 = vpack.c.b16 %v1236, %v1234
        %v1247 = vpack.c.b16 %v1237, %v1235
        %v1248 = vpack.c.b16 %v1240, %v1238
        %v1249 = vpack.c.b16 %v1241, %v1239
        %v1259 = vsel %vm803, %v1217, 0
        %1261 = vmatprep.subr.bf16.mxu0 %v1243
        %1262 = vmatpush1.bf16.msra.mxu0 %v1242
        %1263 = vmatprep.subr.bf16.mxu0 %v1245
        %1264 = vmatpush1.bf16.msra.mxu0 %v1244
        %1265 = vmatprep.subr.bf16.mxu0 %v1247
        %1266 = vmatpush1.bf16.msra.mxu0 %v1246
        %1267 = vmatprep.subr.bf16.mxu0 %v1249
        %1268 = vmatpush1.bf16.msra.mxu0 %v1248
        %1269 = vmatprep.subr.bf16.mxu0 0
        %1270 = vmatpush1.bf16.msra.mxu0 0
        %1271 = vmatprep.subr.bf16.mxu0 0
        %1272 = vmatpush1.bf16.msra.mxu0 0
        %1273 = vmatprep.subr.bf16.mxu0 0
        %1274 = vmatpush1.bf16.msra.mxu0 0
        %1275 = vmatprep.subr.bf16.mxu0 0
        %1276 = vmatpush1.bf16.msra.mxu0 0
        %1277 = vmatprep.subr.bf16.mxu0 0
        %1278 = vmatpush1.bf16.msra.mxu0 0
        %1279 = vmatprep.subr.bf16.mxu0 0
        %1280 = vmatpush1.bf16.msra.mxu0 0
        %1281 = vmatprep.subr.bf16.mxu0 0
        %1282 = vmatpush1.bf16.msra.mxu0 0
        %1283 = vmatprep.subr.bf16.mxu0 0
        %1284 = vmatpush1.bf16.msra.mxu0 0
        %1285 = vmatprep.subr.bf16.mxu0 0
        %1286 = vmatpush1.bf16.msra.mxu0 0
        %1287 = vmatprep.subr.bf16.mxu0 0
        %1288 = vmatpush1.bf16.msra.mxu0 0
        %1289 = vmatprep.subr.bf16.mxu0 0
        %1290 = vmatpush1.bf16.msra.mxu0 0
        %1291 = vmatprep.subr.bf16.mxu0 0
        %1292 = vmatpush1.bf16.msra.mxu0 0
        %1293 = vmatprep.mubr.bf16.mxu0 0
        %1294 = vmatmul.mubr.bf16.gmra.mrb[0].mxu0 %v1259
        %v1295 = vpop.f32.mrb[0].mxu0
        %v1296 = vadd.f32 0.0, %v1295
        %v1297 = vpop.f32.mrb[0].mxu0
        %v1298 = vadd.f32 0.0, %v1297
        %v1299 = vpop.f32.mrb[0].mxu0
        %v1300 = vpop.f32.mrb[0].mxu0
        %1301 = vdwg.mxu0
        %v1304 = vcombine.low %v1296, %v1298
        %v1306 = vunpack.c.l.s4 1966171168
        %v1307 = vunpack.c.0.s8 %v1306
        %v1308 = vlaneseq
        %v1309 = vshrl.u32 %v1308, 7
        %v1310 = vsub.s32 %v1307, %v1309
        %v1311 = vrot.slane %v1304, %v1310
        %v1313 = vunpack.c.l.s4 1966171168
        %v1314 = vunpack.c.0.s8 %v1313
        %v1315 = vlaneseq
        %v1316 = vshrl.u32 %v1315, 7
        %v1317 = vsub.s32 %v1314, %v1316
        %v1318 = vrot.slane %v1311, %v1317
        %v1320 = vadd.f32 %v1207, %v1318
        %s1321 = scalar_lea.vmem %s3, 320
        %v1322 = vld [vmem:[%s1321] sm:$0xff]
        %v1323 = vld [vmem:[%s1321 + $0x8] sm:$0xff]
        %v1324 = vld [vmem:[%s1321 + $0x10] sm:$0xff]
        %v1325 = vld [vmem:[%s1321 + $0x18] sm:$0xff]
        %v1326 = vld [vmem:[%s1321 + $0x20] sm:$0xff]
        %v1327 = vld [vmem:[%s1321 + $0x28] sm:$0xff]
        %v1328 = vld [vmem:[%s1321 + $0x30] sm:$0xff]
        %v1329 = vld [vmem:[%s1321 + $0x38] sm:$0xff]
        %v1330 = vrot.slane %v876, 2
        %v1339 = vunpack.c.l.b16 %v1322
        %v1340 = vunpack.c.h.b16 %v1322
        %v1341 = vunpack.c.l.b16 %v1323
        %v1342 = vunpack.c.h.b16 %v1323
        %v1343 = vunpack.c.l.b16 %v1324
        %v1344 = vunpack.c.h.b16 %v1324
        %v1345 = vunpack.c.l.b16 %v1325
        %v1346 = vunpack.c.h.b16 %v1325
        %v1347 = vunpack.c.l.b16 %v1326
        %v1348 = vunpack.c.h.b16 %v1326
        %v1349 = vunpack.c.l.b16 %v1327
        %v1350 = vunpack.c.h.b16 %v1327
        %v1351 = vunpack.c.l.b16 %v1328
        %v1352 = vunpack.c.h.b16 %v1328
        %v1353 = vunpack.c.l.b16 %v1329
        %v1354 = vunpack.c.h.b16 %v1329
        %v1355 = vpack.c.b16 %v1341, %v1339
        %v1356 = vpack.c.b16 %v1342, %v1340
        %v1357 = vpack.c.b16 %v1345, %v1343
        %v1358 = vpack.c.b16 %v1346, %v1344
        %v1359 = vpack.c.b16 %v1349, %v1347
        %v1360 = vpack.c.b16 %v1350, %v1348
        %v1361 = vpack.c.b16 %v1353, %v1351
        %v1362 = vpack.c.b16 %v1354, %v1352
        %v1372 = vsel %vm803, %v1330, 0
        %1374 = vmatprep.subr.bf16.mxu0 %v1356
        %1375 = vmatpush1.bf16.msra.mxu0 %v1355
        %1376 = vmatprep.subr.bf16.mxu0 %v1358
        %1377 = vmatpush1.bf16.msra.mxu0 %v1357
        %1378 = vmatprep.subr.bf16.mxu0 %v1360
        %1379 = vmatpush1.bf16.msra.mxu0 %v1359
        %1380 = vmatprep.subr.bf16.mxu0 %v1362
        %1381 = vmatpush1.bf16.msra.mxu0 %v1361
        %1382 = vmatprep.subr.bf16.mxu0 0
        %1383 = vmatpush1.bf16.msra.mxu0 0
        %1384 = vmatprep.subr.bf16.mxu0 0
        %1385 = vmatpush1.bf16.msra.mxu0 0
        %1386 = vmatprep.subr.bf16.mxu0 0
        %1387 = vmatpush1.bf16.msra.mxu0 0
        %1388 = vmatprep.subr.bf16.mxu0 0
        %1389 = vmatpush1.bf16.msra.mxu0 0
        %1390 = vmatprep.subr.bf16.mxu0 0
        %1391 = vmatpush1.bf16.msra.mxu0 0
        %1392 = vmatprep.subr.bf16.mxu0 0
        %1393 = vmatpush1.bf16.msra.mxu0 0
        %1394 = vmatprep.subr.bf16.mxu0 0
        %1395 = vmatpush1.bf16.msra.mxu0 0
        %1396 = vmatprep.subr.bf16.mxu0 0
        %1397 = vmatpush1.bf16.msra.mxu0 0
        %1398 = vmatprep.subr.bf16.mxu0 0
        %1399 = vmatpush1.bf16.msra.mxu0 0
        %1400 = vmatprep.subr.bf16.mxu0 0
        %1401 = vmatpush1.bf16.msra.mxu0 0
        %1402 = vmatprep.subr.bf16.mxu0 0
        %1403 = vmatpush1.bf16.msra.mxu0 0
        %1404 = vmatprep.subr.bf16.mxu0 0
        %1405 = vmatpush1.bf16.msra.mxu0 0
        %1406 = vmatprep.mubr.bf16.mxu0 0
        %1407 = vmatmul.mubr.bf16.gmra.mrb[0].mxu0 %v1372
        %v1408 = vpop.f32.mrb[0].mxu0
        %v1409 = vadd.f32 0.0, %v1408
        %v1410 = vpop.f32.mrb[0].mxu0
        %v1411 = vadd.f32 0.0, %v1410
        %v1412 = vpop.f32.mrb[0].mxu0
        %v1413 = vpop.f32.mrb[0].mxu0
        %1414 = vdwg.mxu0
        %v1417 = vcombine.low %v1409, %v1411
        %v1419 = vunpack.c.l.s4 1966171168
        %v1420 = vunpack.c.0.s8 %v1419
        %v1421 = vlaneseq
        %v1422 = vshrl.u32 %v1421, 7
        %v1423 = vsub.s32 %v1420, %v1422
        %v1424 = vrot.slane %v1417, %v1423
        %v1426 = vunpack.c.l.s4 1966171168
        %v1427 = vunpack.c.0.s8 %v1426
        %v1428 = vlaneseq
        %v1429 = vshrl.u32 %v1428, 7
        %v1430 = vsub.s32 %v1427, %v1429
        %v1431 = vrot.slane %v1424, %v1430
        %v1433 = vadd.f32 %v1320, %v1431
        %s1434 = scalar_lea.vmem %s3, 384
        %v1435 = vld [vmem:[%s1434] sm:$0xff]
        %v1436 = vld [vmem:[%s1434 + $0x8] sm:$0xff]
        %v1437 = vld [vmem:[%s1434 + $0x10] sm:$0xff]
        %v1438 = vld [vmem:[%s1434 + $0x18] sm:$0xff]
        %v1439 = vld [vmem:[%s1434 + $0x20] sm:$0xff]
        %v1440 = vld [vmem:[%s1434 + $0x28] sm:$0xff]
        %v1441 = vld [vmem:[%s1434 + $0x30] sm:$0xff]
        %v1442 = vld [vmem:[%s1434 + $0x38] sm:$0xff]
        %v1443 = vrot.slane %v753, 3
        %v1452 = vunpack.c.l.b16 %v1435
        %v1453 = vunpack.c.h.b16 %v1435
        %v1454 = vunpack.c.l.b16 %v1436
        %v1455 = vunpack.c.h.b16 %v1436
        %v1456 = vunpack.c.l.b16 %v1437
        %v1457 = vunpack.c.h.b16 %v1437
        %v1458 = vunpack.c.l.b16 %v1438
        %v1459 = vunpack.c.h.b16 %v1438
        %v1460 = vunpack.c.l.b16 %v1439
        %v1461 = vunpack.c.h.b16 %v1439
        %v1462 = vunpack.c.l.b16 %v1440
        %v1463 = vunpack.c.h.b16 %v1440
        %v1464 = vunpack.c.l.b16 %v1441
        %v1465 = vunpack.c.h.b16 %v1441
        %v1466 = vunpack.c.l.b16 %v1442
        %v1467 = vunpack.c.h.b16 %v1442
        %v1468 = vpack.c.b16 %v1454, %v1452
        %v1469 = vpack.c.b16 %v1455, %v1453
        %v1470 = vpack.c.b16 %v1458, %v1456
        %v1471 = vpack.c.b16 %v1459, %v1457
        %v1472 = vpack.c.b16 %v1462, %v1460
        %v1473 = vpack.c.b16 %v1463, %v1461
        %v1474 = vpack.c.b16 %v1466, %v1464
        %v1475 = vpack.c.b16 %v1467, %v1465
        %v1485 = vsel %vm803, %v1443, 0
        %1487 = vmatprep.subr.bf16.mxu0 %v1469
        %1488 = vmatpush1.bf16.msra.mxu0 %v1468
        %1489 = vmatprep.subr.bf16.mxu0 %v1471
        %1490 = vmatpush1.bf16.msra.mxu0 %v1470
        %1491 = vmatprep.subr.bf16.mxu0 %v1473
        %1492 = vmatpush1.bf16.msra.mxu0 %v1472
        %1493 = vmatprep.subr.bf16.mxu0 %v1475
        %1494 = vmatpush1.bf16.msra.mxu0 %v1474
        %1495 = vmatprep.subr.bf16.mxu0 0
        %1496 = vmatpush1.bf16.msra.mxu0 0
        %1497 = vmatprep.subr.bf16.mxu0 0
        %1498 = vmatpush1.bf16.msra.mxu0 0
        %1499 = vmatprep.subr.bf16.mxu0 0
        %1500 = vmatpush1.bf16.msra.mxu0 0
        %1501 = vmatprep.subr.bf16.mxu0 0
        %1502 = vmatpush1.bf16.msra.mxu0 0
        %1503 = vmatprep.subr.bf16.mxu0 0
        %1504 = vmatpush1.bf16.msra.mxu0 0
        %1505 = vmatprep.subr.bf16.mxu0 0
        %1506 = vmatpush1.bf16.msra.mxu0 0
        %1507 = vmatprep.subr.bf16.mxu0 0
        %1508 = vmatpush1.bf16.msra.mxu0 0
        %1509 = vmatprep.subr.bf16.mxu0 0
        %1510 = vmatpush1.bf16.msra.mxu0 0
        %1511 = vmatprep.subr.bf16.mxu0 0
        %1512 = vmatpush1.bf16.msra.mxu0 0
        %1513 = vmatprep.subr.bf16.mxu0 0
        %1514 = vmatpush1.bf16.msra.mxu0 0
        %1515 = vmatprep.subr.bf16.mxu0 0
        %1516 = vmatpush1.bf16.msra.mxu0 0
        %1517 = vmatprep.subr.bf16.mxu0 0
        %1518 = vmatpush1.bf16.msra.mxu0 0
        %1519 = vmatprep.mubr.bf16.mxu0 0
        %1520 = vmatmul.mubr.bf16.gmra.mrb[0].mxu0 %v1485
        %v1521 = vpop.f32.mrb[0].mxu0
        %v1522 = vadd.f32 0.0, %v1521
        %v1523 = vpop.f32.mrb[0].mxu0
        %v1524 = vadd.f32 0.0, %v1523
        %v1525 = vpop.f32.mrb[0].mxu0
        %v1526 = vpop.f32.mrb[0].mxu0
        %1527 = vdwg.mxu0
        %v1530 = vcombine.low %v1522, %v1524
        %v1532 = vunpack.c.l.s4 1966171168
        %v1533 = vunpack.c.0.s8 %v1532
        %v1534 = vlaneseq
        %v1535 = vshrl.u32 %v1534, 7
        %v1536 = vsub.s32 %v1533, %v1535
        %v1537 = vrot.slane %v1530, %v1536
        %v1539 = vunpack.c.l.s4 1966171168
        %v1540 = vunpack.c.0.s8 %v1539
        %v1541 = vlaneseq
        %v1542 = vshrl.u32 %v1541, 7
        %v1543 = vsub.s32 %v1540, %v1542
        %v1544 = vrot.slane %v1537, %v1543
        %v1546 = vadd.f32 %v1433, %v1544
        %s1547 = scalar_lea.vmem %s3, 448
        %v1548 = vld [vmem:[%s1547] sm:$0xff]
        %v1549 = vld [vmem:[%s1547 + $0x8] sm:$0xff]
        %v1550 = vld [vmem:[%s1547 + $0x10] sm:$0xff]
        %v1551 = vld [vmem:[%s1547 + $0x18] sm:$0xff]
        %v1552 = vld [vmem:[%s1547 + $0x20] sm:$0xff]
        %v1553 = vld [vmem:[%s1547 + $0x28] sm:$0xff]
        %v1554 = vld [vmem:[%s1547 + $0x30] sm:$0xff]
        %v1555 = vld [vmem:[%s1547 + $0x38] sm:$0xff]
        %v1556 = vrot.slane %v876, 3
        %v1565 = vunpack.c.l.b16 %v1548
        %v1566 = vunpack.c.h.b16 %v1548
        %v1567 = vunpack.c.l.b16 %v1549
        %v1568 = vunpack.c.h.b16 %v1549
        %v1569 = vunpack.c.l.b16 %v1550
        %v1570 = vunpack.c.h.b16 %v1550
        %v1571 = vunpack.c.l.b16 %v1551
        %v1572 = vunpack.c.h.b16 %v1551
        %v1573 = vunpack.c.l.b16 %v1552
        %v1574 = vunpack.c.h.b16 %v1552
        %v1575 = vunpack.c.l.b16 %v1553
        %v1576 = vunpack.c.h.b16 %v1553
        %v1577 = vunpack.c.l.b16 %v1554
        %v1578 = vunpack.c.h.b16 %v1554
        %v1579 = vunpack.c.l.b16 %v1555
        %v1580 = vunpack.c.h.b16 %v1555
        %v1581 = vpack.c.b16 %v1567, %v1565
        %v1582 = vpack.c.b16 %v1568, %v1566
        %v1583 = vpack.c.b16 %v1571, %v1569
        %v1584 = vpack.c.b16 %v1572, %v1570
        %v1585 = vpack.c.b16 %v1575, %v1573
        %v1586 = vpack.c.b16 %v1576, %v1574
        %v1587 = vpack.c.b16 %v1579, %v1577
        %v1588 = vpack.c.b16 %v1580, %v1578
        %v1598 = vsel %vm803, %v1556, 0
        %1600 = vmatprep.subr.bf16.mxu0 %v1582
        %1601 = vmatpush1.bf16.msra.mxu0 %v1581
        %1602 = vmatprep.subr.bf16.mxu0 %v1584
        %1603 = vmatpush1.bf16.msra.mxu0 %v1583
        %1604 = vmatprep.subr.bf16.mxu0 %v1586
        %1605 = vmatpush1.bf16.msra.mxu0 %v1585
        %1606 = vmatprep.subr.bf16.mxu0 %v1588
        %1607 = vmatpush1.bf16.msra.mxu0 %v1587
        %1608 = vmatprep.subr.bf16.mxu0 0
        %1609 = vmatpush1.bf16.msra.mxu0 0
        %1610 = vmatprep.subr.bf16.mxu0 0
        %1611 = vmatpush1.bf16.msra.mxu0 0
        %1612 = vmatprep.subr.bf16.mxu0 0
        %1613 = vmatpush1.bf16.msra.mxu0 0
        %1614 = vmatprep.subr.bf16.mxu0 0
        %1615 = vmatpush1.bf16.msra.mxu0 0
        %1616 = vmatprep.subr.bf16.mxu0 0
        %1617 = vmatpush1.bf16.msra.mxu0 0
        %1618 = vmatprep.subr.bf16.mxu0 0
        %1619 = vmatpush1.bf16.msra.mxu0 0
        %1620 = vmatprep.subr.bf16.mxu0 0
        %1621 = vmatpush1.bf16.msra.mxu0 0
        %1622 = vmatprep.subr.bf16.mxu0 0
        %1623 = vmatpush1.bf16.msra.mxu0 0
        %1624 = vmatprep.subr.bf16.mxu0 0
        %1625 = vmatpush1.bf16.msra.mxu0 0
        %1626 = vmatprep.subr.bf16.mxu0 0
        %1627 = vmatpush1.bf16.msra.mxu0 0
        %1628 = vmatprep.subr.bf16.mxu0 0
        %1629 = vmatpush1.bf16.msra.mxu0 0
        %1630 = vmatprep.subr.bf16.mxu0 0
        %1631 = vmatpush1.bf16.msra.mxu0 0
        %1632 = vmatprep.mubr.bf16.mxu0 0
        %1633 = vmatmul.mubr.bf16.gmra.mrb[0].mxu0 %v1598
        %v1634 = vpop.f32.mrb[0].mxu0
        %v1635 = vadd.f32 0.0, %v1634
        %v1636 = vpop.f32.mrb[0].mxu0
        %v1637 = vadd.f32 0.0, %v1636
        %v1638 = vpop.f32.mrb[0].mxu0
        %v1639 = vpop.f32.mrb[0].mxu0
        %1640 = vdwg.mxu0
        %v1643 = vcombine.low %v1635, %v1637
        %v1645 = vunpack.c.l.s4 1966171168
        %v1646 = vunpack.c.0.s8 %v1645
        %v1647 = vlaneseq
        %v1648 = vshrl.u32 %v1647, 7
        %v1649 = vsub.s32 %v1646, %v1648
        %v1650 = vrot.slane %v1643, %v1649
        %v1652 = vunpack.c.l.s4 1966171168
        %v1653 = vunpack.c.0.s8 %v1652
        %v1654 = vlaneseq
        %v1655 = vshrl.u32 %v1654, 7
        %v1656 = vsub.s32 %v1653, %v1655
        %v1657 = vrot.slane %v1650, %v1656
        %v1659 = vadd.f32 %v1546, %v1657
        %s1660 = scalar_lea.vmem %s3, 512
        %v1661 = vld [vmem:[%s1660] sm:$0xff]
        %v1662 = vld [vmem:[%s1660 + $0x8] sm:$0xff]
        %v1663 = vld [vmem:[%s1660 + $0x10] sm:$0xff]
        %v1664 = vld [vmem:[%s1660 + $0x18] sm:$0xff]
        %v1665 = vld [vmem:[%s1660 + $0x20] sm:$0xff]
        %v1666 = vld [vmem:[%s1660 + $0x28] sm:$0xff]
        %v1667 = vld [vmem:[%s1660 + $0x30] sm:$0xff]
        %v1668 = vld [vmem:[%s1660 + $0x38] sm:$0xff]
        %v1669 = vrot.slane %v753, 4
        %v1678 = vunpack.c.l.b16 %v1661
        %v1679 = vunpack.c.h.b16 %v1661
        %v1680 = vunpack.c.l.b16 %v1662
        %v1681 = vunpack.c.h.b16 %v1662
        %v1682 = vunpack.c.l.b16 %v1663
        %v1683 = vunpack.c.h.b16 %v1663
        %v1684 = vunpack.c.l.b16 %v1664
        %v1685 = vunpack.c.h.b16 %v1664
        %v1686 = vunpack.c.l.b16 %v1665
        %v1687 = vunpack.c.h.b16 %v1665
        %v1688 = vunpack.c.l.b16 %v1666
        %v1689 = vunpack.c.h.b16 %v1666
        %v1690 = vunpack.c.l.b16 %v1667
        %v1691 = vunpack.c.h.b16 %v1667
        %v1692 = vunpack.c.l.b16 %v1668
        %v1693 = vunpack.c.h.b16 %v1668
        %v1694 = vpack.c.b16 %v1680, %v1678
        %v1695 = vpack.c.b16 %v1681, %v1679
        %v1696 = vpack.c.b16 %v1684, %v1682
        %v1697 = vpack.c.b16 %v1685, %v1683
        %v1698 = vpack.c.b16 %v1688, %v1686
        %v1699 = vpack.c.b16 %v1689, %v1687
        %v1700 = vpack.c.b16 %v1692, %v1690
        %v1701 = vpack.c.b16 %v1693, %v1691
        %v1711 = vsel %vm803, %v1669, 0
        %1713 = vmatprep.subr.bf16.mxu0 %v1695
        %1714 = vmatpush1.bf16.msra.mxu0 %v1694
        %1715 = vmatprep.subr.bf16.mxu0 %v1697
        %1716 = vmatpush1.bf16.msra.mxu0 %v1696
        %1717 = vmatprep.subr.bf16.mxu0 %v1699
        %1718 = vmatpush1.bf16.msra.mxu0 %v1698
        %1719 = vmatprep.subr.bf16.mxu0 %v1701
        %1720 = vmatpush1.bf16.msra.mxu0 %v1700
        %1721 = vmatprep.subr.bf16.mxu0 0
        %1722 = vmatpush1.bf16.msra.mxu0 0
        %1723 = vmatprep.subr.bf16.mxu0 0
        %1724 = vmatpush1.bf16.msra.mxu0 0
        %1725 = vmatprep.subr.bf16.mxu0 0
        %1726 = vmatpush1.bf16.msra.mxu0 0
        %1727 = vmatprep.subr.bf16.mxu0 0
        %1728 = vmatpush1.bf16.msra.mxu0 0
        %1729 = vmatprep.subr.bf16.mxu0 0
        %1730 = vmatpush1.bf16.msra.mxu0 0
        %1731 = vmatprep.subr.bf16.mxu0 0
        %1732 = vmatpush1.bf16.msra.mxu0 0
        %1733 = vmatprep.subr.bf16.mxu0 0
        %1734 = vmatpush1.bf16.msra.mxu0 0
        %1735 = vmatprep.subr.bf16.mxu0 0
        %1736 = vmatpush1.bf16.msra.mxu0 0
        %1737 = vmatprep.subr.bf16.mxu0 0
        %1738 = vmatpush1.bf16.msra.mxu0 0
        %1739 = vmatprep.subr.bf16.mxu0 0
        %1740 = vmatpush1.bf16.msra.mxu0 0
        %1741 = vmatprep.subr.bf16.mxu0 0
        %1742 = vmatpush1.bf16.msra.mxu0 0
        %1743 = vmatprep.subr.bf16.mxu0 0
        %1744 = vmatpush1.bf16.msra.mxu0 0
        %1745 = vmatprep.mubr.bf16.mxu0 0
        %1746 = vmatmul.mubr.bf16.gmra.mrb[0].mxu0 %v1711
        %v1747 = vpop.f32.mrb[0].mxu0
        %v1748 = vadd.f32 0.0, %v1747
        %v1749 = vpop.f32.mrb[0].mxu0
        %v1750 = vadd.f32 0.0, %v1749
        %v1751 = vpop.f32.mrb[0].mxu0
        %v1752 = vpop.f32.mrb[0].mxu0
        %1753 = vdwg.mxu0
        %v1756 = vcombine.low %v1748, %v1750
        %v1758 = vunpack.c.l.s4 1966171168
        %v1759 = vunpack.c.0.s8 %v1758
        %v1760 = vlaneseq
        %v1761 = vshrl.u32 %v1760, 7
        %v1762 = vsub.s32 %v1759, %v1761
        %v1763 = vrot.slane %v1756, %v1762
        %v1765 = vunpack.c.l.s4 1966171168
        %v1766 = vunpack.c.0.s8 %v1765
        %v1767 = vlaneseq
        %v1768 = vshrl.u32 %v1767, 7
        %v1769 = vsub.s32 %v1766, %v1768
        %v1770 = vrot.slane %v1763, %v1769
        %v1772 = vadd.f32 %v1659, %v1770
        %s1773 = scalar_lea.vmem %s3, 576
        %v1774 = vld [vmem:[%s1773] sm:$0xff]
        %v1775 = vld [vmem:[%s1773 + $0x8] sm:$0xff]
        %v1776 = vld [vmem:[%s1773 + $0x10] sm:$0xff]
        %v1777 = vld [vmem:[%s1773 + $0x18] sm:$0xff]
        %v1778 = vld [vmem:[%s1773 + $0x20] sm:$0xff]
        %v1779 = vld [vmem:[%s1773 + $0x28] sm:$0xff]
        %v1780 = vld [vmem:[%s1773 + $0x30] sm:$0xff]
        %v1781 = vld [vmem:[%s1773 + $0x38] sm:$0xff]
        %v1782 = vrot.slane %v876, 4
        %v1791 = vunpack.c.l.b16 %v1774
        %v1792 = vunpack.c.h.b16 %v1774
        %v1793 = vunpack.c.l.b16 %v1775
        %v1794 = vunpack.c.h.b16 %v1775
        %v1795 = vunpack.c.l.b16 %v1776
        %v1796 = vunpack.c.h.b16 %v1776
        %v1797 = vunpack.c.l.b16 %v1777
        %v1798 = vunpack.c.h.b16 %v1777
        %v1799 = vunpack.c.l.b16 %v1778
        %v1800 = vunpack.c.h.b16 %v1778
        %v1801 = vunpack.c.l.b16 %v1779
        %v1802 = vunpack.c.h.b16 %v1779
        %v1803 = vunpack.c.l.b16 %v1780
        %v1804 = vunpack.c.h.b16 %v1780
        %v1805 = vunpack.c.l.b16 %v1781
        %v1806 = vunpack.c.h.b16 %v1781
        %v1807 = vpack.c.b16 %v1793, %v1791
        %v1808 = vpack.c.b16 %v1794, %v1792
        %v1809 = vpack.c.b16 %v1797, %v1795
        %v1810 = vpack.c.b16 %v1798, %v1796
        %v1811 = vpack.c.b16 %v1801, %v1799
        %v1812 = vpack.c.b16 %v1802, %v1800
        %v1813 = vpack.c.b16 %v1805, %v1803
        %v1814 = vpack.c.b16 %v1806, %v1804
        %v1824 = vsel %vm803, %v1782, 0
        %1826 = vmatprep.subr.bf16.mxu0 %v1808
        %1827 = vmatpush1.bf16.msra.mxu0 %v1807
        %1828 = vmatprep.subr.bf16.mxu0 %v1810
        %1829 = vmatpush1.bf16.msra.mxu0 %v1809
        %1830 = vmatprep.subr.bf16.mxu0 %v1812
        %1831 = vmatpush1.bf16.msra.mxu0 %v1811
        %1832 = vmatprep.subr.bf16.mxu0 %v1814
        %1833 = vmatpush1.bf16.msra.mxu0 %v1813
        %1834 = vmatprep.subr.bf16.mxu0 0
        %1835 = vmatpush1.bf16.msra.mxu0 0
        %1836 = vmatprep.subr.bf16.mxu0 0
        %1837 = vmatpush1.bf16.msra.mxu0 0
        %1838 = vmatprep.subr.bf16.mxu0 0
        %1839 = vmatpush1.bf16.msra.mxu0 0
        %1840 = vmatprep.subr.bf16.mxu0 0
        %1841 = vmatpush1.bf16.msra.mxu0 0
        %1842 = vmatprep.subr.bf16.mxu0 0
        %1843 = vmatpush1.bf16.msra.mxu0 0
        %1844 = vmatprep.subr.bf16.mxu0 0
        %1845 = vmatpush1.bf16.msra.mxu0 0
        %1846 = vmatprep.subr.bf16.mxu0 0
        %1847 = vmatpush1.bf16.msra.mxu0 0
        %1848 = vmatprep.subr.bf16.mxu0 0
        %1849 = vmatpush1.bf16.msra.mxu0 0
        %1850 = vmatprep.subr.bf16.mxu0 0
        %1851 = vmatpush1.bf16.msra.mxu0 0
        %1852 = vmatprep.subr.bf16.mxu0 0
        %1853 = vmatpush1.bf16.msra.mxu0 0
        %1854 = vmatprep.subr.bf16.mxu0 0
        %1855 = vmatpush1.bf16.msra.mxu0 0
        %1856 = vmatprep.subr.bf16.mxu0 0
        %1857 = vmatpush1.bf16.msra.mxu0 0
        %1858 = vmatprep.mubr.bf16.mxu0 0
        %1859 = vmatmul.mubr.bf16.gmra.mrb[0].mxu0 %v1824
        %v1860 = vpop.f32.mrb[0].mxu0
        %v1861 = vadd.f32 0.0, %v1860
        %v1862 = vpop.f32.mrb[0].mxu0
        %v1863 = vadd.f32 0.0, %v1862
        %v1864 = vpop.f32.mrb[0].mxu0
        %v1865 = vpop.f32.mrb[0].mxu0
        %1866 = vdwg.mxu0
        %v1869 = vcombine.low %v1861, %v1863
        %v1871 = vunpack.c.l.s4 1966171168
        %v1872 = vunpack.c.0.s8 %v1871
        %v1873 = vlaneseq
        %v1874 = vshrl.u32 %v1873, 7
        %v1875 = vsub.s32 %v1872, %v1874
        %v1876 = vrot.slane %v1869, %v1875
        %v1878 = vunpack.c.l.s4 1966171168
        %v1879 = vunpack.c.0.s8 %v1878
        %v1880 = vlaneseq
        %v1881 = vshrl.u32 %v1880, 7
        %v1882 = vsub.s32 %v1879, %v1881
        %v1883 = vrot.slane %v1876, %v1882
        %v1885 = vadd.f32 %v1772, %v1883
        %s1886 = scalar_lea.vmem %s3, 640
        %v1887 = vld [vmem:[%s1886] sm:$0xff]
        %v1888 = vld [vmem:[%s1886 + $0x8] sm:$0xff]
        %v1889 = vld [vmem:[%s1886 + $0x10] sm:$0xff]
        %v1890 = vld [vmem:[%s1886 + $0x18] sm:$0xff]
        %v1891 = vld [vmem:[%s1886 + $0x20] sm:$0xff]
        %v1892 = vld [vmem:[%s1886 + $0x28] sm:$0xff]
        %v1893 = vld [vmem:[%s1886 + $0x30] sm:$0xff]
        %v1894 = vld [vmem:[%s1886 + $0x38] sm:$0xff]
        %v1895 = vrot.slane %v753, 5
        %v1904 = vunpack.c.l.b16 %v1887
        %v1905 = vunpack.c.h.b16 %v1887
        %v1906 = vunpack.c.l.b16 %v1888
        %v1907 = vunpack.c.h.b16 %v1888
        %v1908 = vunpack.c.l.b16 %v1889
        %v1909 = vunpack.c.h.b16 %v1889
        %v1910 = vunpack.c.l.b16 %v1890
        %v1911 = vunpack.c.h.b16 %v1890
        %v1912 = vunpack.c.l.b16 %v1891
        %v1913 = vunpack.c.h.b16 %v1891
        %v1914 = vunpack.c.l.b16 %v1892
        %v1915 = vunpack.c.h.b16 %v1892
        %v1916 = vunpack.c.l.b16 %v1893
        %v1917 = vunpack.c.h.b16 %v1893
        %v1918 = vunpack.c.l.b16 %v1894
        %v1919 = vunpack.c.h.b16 %v1894
        %v1920 = vpack.c.b16 %v1906, %v1904
        %v1921 = vpack.c.b16 %v1907, %v1905
        %v1922 = vpack.c.b16 %v1910, %v1908
        %v1923 = vpack.c.b16 %v1911, %v1909
        %v1924 = vpack.c.b16 %v1914, %v1912
        %v1925 = vpack.c.b16 %v1915, %v1913
        %v1926 = vpack.c.b16 %v1918, %v1916
        %v1927 = vpack.c.b16 %v1919, %v1917
        %v1937 = vsel %vm803, %v1895, 0
        %1939 = vmatprep.subr.bf16.mxu0 %v1921
        %1940 = vmatpush1.bf16.msra.mxu0 %v1920
        %1941 = vmatprep.subr.bf16.mxu0 %v1923
        %1942 = vmatpush1.bf16.msra.mxu0 %v1922
        %1943 = vmatprep.subr.bf16.mxu0 %v1925
        %1944 = vmatpush1.bf16.msra.mxu0 %v1924
        %1945 = vmatprep.subr.bf16.mxu0 %v1927
        %1946 = vmatpush1.bf16.msra.mxu0 %v1926
        %1947 = vmatprep.subr.bf16.mxu0 0
        %1948 = vmatpush1.bf16.msra.mxu0 0
        %1949 = vmatprep.subr.bf16.mxu0 0
        %1950 = vmatpush1.bf16.msra.mxu0 0
        %1951 = vmatprep.subr.bf16.mxu0 0
        %1952 = vmatpush1.bf16.msra.mxu0 0
        %1953 = vmatprep.subr.bf16.mxu0 0
        %1954 = vmatpush1.bf16.msra.mxu0 0
        %1955 = vmatprep.subr.bf16.mxu0 0
        %1956 = vmatpush1.bf16.msra.mxu0 0
        %1957 = vmatprep.subr.bf16.mxu0 0
        %1958 = vmatpush1.bf16.msra.mxu0 0
        %1959 = vmatprep.subr.bf16.mxu0 0
        %1960 = vmatpush1.bf16.msra.mxu0 0
        %1961 = vmatprep.subr.bf16.mxu0 0
        %1962 = vmatpush1.bf16.msra.mxu0 0
        %1963 = vmatprep.subr.bf16.mxu0 0
        %1964 = vmatpush1.bf16.msra.mxu0 0
        %1965 = vmatprep.subr.bf16.mxu0 0
        %1966 = vmatpush1.bf16.msra.mxu0 0
        %1967 = vmatprep.subr.bf16.mxu0 0
        %1968 = vmatpush1.bf16.msra.mxu0 0
        %1969 = vmatprep.subr.bf16.mxu0 0
        %1970 = vmatpush1.bf16.msra.mxu0 0
        %1971 = vmatprep.mubr.bf16.mxu0 0
        %1972 = vmatmul.mubr.bf16.gmra.mrb[0].mxu0 %v1937
        %v1973 = vpop.f32.mrb[0].mxu0
        %v1974 = vadd.f32 0.0, %v1973
        %v1975 = vpop.f32.mrb[0].mxu0
        %v1976 = vadd.f32 0.0, %v1975
        %v1977 = vpop.f32.mrb[0].mxu0
        %v1978 = vpop.f32.mrb[0].mxu0
        %1979 = vdwg.mxu0
        %v1982 = vcombine.low %v1974, %v1976
        %v1984 = vunpack.c.l.s4 1966171168
        %v1985 = vunpack.c.0.s8 %v1984
        %v1986 = vlaneseq
        %v1987 = vshrl.u32 %v1986, 7
        %v1988 = vsub.s32 %v1985, %v1987
        %v1989 = vrot.slane %v1982, %v1988
        %v1991 = vunpack.c.l.s4 1966171168
        %v1992 = vunpack.c.0.s8 %v1991
        %v1993 = vlaneseq
        %v1994 = vshrl.u32 %v1993, 7
        %v1995 = vsub.s32 %v1992, %v1994
        %v1996 = vrot.slane %v1989, %v1995
        %v1998 = vadd.f32 %v1885, %v1996
        %s1999 = scalar_lea.vmem %s3, 704
        %v2000 = vld [vmem:[%s1999] sm:$0xff]
        %v2001 = vld [vmem:[%s1999 + $0x8] sm:$0xff]
        %v2002 = vld [vmem:[%s1999 + $0x10] sm:$0xff]
        %v2003 = vld [vmem:[%s1999 + $0x18] sm:$0xff]
        %v2004 = vld [vmem:[%s1999 + $0x20] sm:$0xff]
        %v2005 = vld [vmem:[%s1999 + $0x28] sm:$0xff]
        %v2006 = vld [vmem:[%s1999 + $0x30] sm:$0xff]
        %v2007 = vld [vmem:[%s1999 + $0x38] sm:$0xff]
        %v2008 = vrot.slane %v876, 5
        %v2017 = vunpack.c.l.b16 %v2000
        %v2018 = vunpack.c.h.b16 %v2000
        %v2019 = vunpack.c.l.b16 %v2001
        %v2020 = vunpack.c.h.b16 %v2001
        %v2021 = vunpack.c.l.b16 %v2002
        %v2022 = vunpack.c.h.b16 %v2002
        %v2023 = vunpack.c.l.b16 %v2003
        %v2024 = vunpack.c.h.b16 %v2003
        %v2025 = vunpack.c.l.b16 %v2004
        %v2026 = vunpack.c.h.b16 %v2004
        %v2027 = vunpack.c.l.b16 %v2005
        %v2028 = vunpack.c.h.b16 %v2005
        %v2029 = vunpack.c.l.b16 %v2006
        %v2030 = vunpack.c.h.b16 %v2006
        %v2031 = vunpack.c.l.b16 %v2007
        %v2032 = vunpack.c.h.b16 %v2007
        %v2033 = vpack.c.b16 %v2019, %v2017
        %v2034 = vpack.c.b16 %v2020, %v2018
        %v2035 = vpack.c.b16 %v2023, %v2021
        %v2036 = vpack.c.b16 %v2024, %v2022
        %v2037 = vpack.c.b16 %v2027, %v2025
        %v2038 = vpack.c.b16 %v2028, %v2026
        %v2039 = vpack.c.b16 %v2031, %v2029
        %v2040 = vpack.c.b16 %v2032, %v2030
        %v2050 = vsel %vm803, %v2008, 0
        %2052 = vmatprep.subr.bf16.mxu0 %v2034
        %2053 = vmatpush1.bf16.msra.mxu0 %v2033
        %2054 = vmatprep.subr.bf16.mxu0 %v2036
        %2055 = vmatpush1.bf16.msra.mxu0 %v2035
        %2056 = vmatprep.subr.bf16.mxu0 %v2038
        %2057 = vmatpush1.bf16.msra.mxu0 %v2037
        %2058 = vmatprep.subr.bf16.mxu0 %v2040
        %2059 = vmatpush1.bf16.msra.mxu0 %v2039
        %2060 = vmatprep.subr.bf16.mxu0 0
        %2061 = vmatpush1.bf16.msra.mxu0 0
        %2062 = vmatprep.subr.bf16.mxu0 0
        %2063 = vmatpush1.bf16.msra.mxu0 0
        %2064 = vmatprep.subr.bf16.mxu0 0
        %2065 = vmatpush1.bf16.msra.mxu0 0
        %2066 = vmatprep.subr.bf16.mxu0 0
        %2067 = vmatpush1.bf16.msra.mxu0 0
        %2068 = vmatprep.subr.bf16.mxu0 0
        %2069 = vmatpush1.bf16.msra.mxu0 0
        %2070 = vmatprep.subr.bf16.mxu0 0
        %2071 = vmatpush1.bf16.msra.mxu0 0
        %2072 = vmatprep.subr.bf16.mxu0 0
        %2073 = vmatpush1.bf16.msra.mxu0 0
        %2074 = vmatprep.subr.bf16.mxu0 0
        %2075 = vmatpush1.bf16.msra.mxu0 0
        %2076 = vmatprep.subr.bf16.mxu0 0
        %2077 = vmatpush1.bf16.msra.mxu0 0
        %2078 = vmatprep.subr.bf16.mxu0 0
        %2079 = vmatpush1.bf16.msra.mxu0 0
        %2080 = vmatprep.subr.bf16.mxu0 0
        %2081 = vmatpush1.bf16.msra.mxu0 0
        %2082 = vmatprep.subr.bf16.mxu0 0
        %2083 = vmatpush1.bf16.msra.mxu0 0
        %2084 = vmatprep.mubr.bf16.mxu0 0
        %2085 = vmatmul.mubr.bf16.gmra.mrb[0].mxu0 %v2050
        %v2086 = vpop.f32.mrb[0].mxu0
        %v2087 = vadd.f32 0.0, %v2086
        %v2088 = vpop.f32.mrb[0].mxu0
        %v2089 = vadd.f32 0.0, %v2088
        %v2090 = vpop.f32.mrb[0].mxu0
        %v2091 = vpop.f32.mrb[0].mxu0
        %2092 = vdwg.mxu0
        %v2095 = vcombine.low %v2087, %v2089
        %v2097 = vunpack.c.l.s4 1966171168
        %v2098 = vunpack.c.0.s8 %v2097
        %v2099 = vlaneseq
        %v2100 = vshrl.u32 %v2099, 7
        %v2101 = vsub.s32 %v2098, %v2100
        %v2102 = vrot.slane %v2095, %v2101
        %v2104 = vunpack.c.l.s4 1966171168
        %v2105 = vunpack.c.0.s8 %v2104
        %v2106 = vlaneseq
        %v2107 = vshrl.u32 %v2106, 7
        %v2108 = vsub.s32 %v2105, %v2107
        %v2109 = vrot.slane %v2102, %v2108
        %v2111 = vadd.f32 %v1998, %v2109
        %s2112 = scalar_lea.vmem %s3, 768
        %v2113 = vld [vmem:[%s2112] sm:$0xff]
        %v2114 = vld [vmem:[%s2112 + $0x8] sm:$0xff]
        %v2115 = vld [vmem:[%s2112 + $0x10] sm:$0xff]
        %v2116 = vld [vmem:[%s2112 + $0x18] sm:$0xff]
        %v2117 = vld [vmem:[%s2112 + $0x20] sm:$0xff]
        %v2118 = vld [vmem:[%s2112 + $0x28] sm:$0xff]
        %v2119 = vld [vmem:[%s2112 + $0x30] sm:$0xff]
        %v2120 = vld [vmem:[%s2112 + $0x38] sm:$0xff]
        %v2121 = vrot.slane %v753, 6
        %v2130 = vunpack.c.l.b16 %v2113
        %v2131 = vunpack.c.h.b16 %v2113
        %v2132 = vunpack.c.l.b16 %v2114
        %v2133 = vunpack.c.h.b16 %v2114
        %v2134 = vunpack.c.l.b16 %v2115
        %v2135 = vunpack.c.h.b16 %v2115
        %v2136 = vunpack.c.l.b16 %v2116
        %v2137 = vunpack.c.h.b16 %v2116
        %v2138 = vunpack.c.l.b16 %v2117
        %v2139 = vunpack.c.h.b16 %v2117
        %v2140 = vunpack.c.l.b16 %v2118
        %v2141 = vunpack.c.h.b16 %v2118
        %v2142 = vunpack.c.l.b16 %v2119
        %v2143 = vunpack.c.h.b16 %v2119
        %v2144 = vunpack.c.l.b16 %v2120
        %v2145 = vunpack.c.h.b16 %v2120
        %v2146 = vpack.c.b16 %v2132, %v2130
        %v2147 = vpack.c.b16 %v2133, %v2131
        %v2148 = vpack.c.b16 %v2136, %v2134
        %v2149 = vpack.c.b16 %v2137, %v2135
        %v2150 = vpack.c.b16 %v2140, %v2138
        %v2151 = vpack.c.b16 %v2141, %v2139
        %v2152 = vpack.c.b16 %v2144, %v2142
        %v2153 = vpack.c.b16 %v2145, %v2143
        %v2163 = vsel %vm803, %v2121, 0
        %2165 = vmatprep.subr.bf16.mxu0 %v2147
        %2166 = vmatpush1.bf16.msra.mxu0 %v2146
        %2167 = vmatprep.subr.bf16.mxu0 %v2149
        %2168 = vmatpush1.bf16.msra.mxu0 %v2148
        %2169 = vmatprep.subr.bf16.mxu0 %v2151
        %2170 = vmatpush1.bf16.msra.mxu0 %v2150
        %2171 = vmatprep.subr.bf16.mxu0 %v2153
        %2172 = vmatpush1.bf16.msra.mxu0 %v2152
        %2173 = vmatprep.subr.bf16.mxu0 0
        %2174 = vmatpush1.bf16.msra.mxu0 0
        %2175 = vmatprep.subr.bf16.mxu0 0
        %2176 = vmatpush1.bf16.msra.mxu0 0
        %2177 = vmatprep.subr.bf16.mxu0 0
        %2178 = vmatpush1.bf16.msra.mxu0 0
        %2179 = vmatprep.subr.bf16.mxu0 0
        %2180 = vmatpush1.bf16.msra.mxu0 0
        %2181 = vmatprep.subr.bf16.mxu0 0
        %2182 = vmatpush1.bf16.msra.mxu0 0
        %2183 = vmatprep.subr.bf16.mxu0 0
        %2184 = vmatpush1.bf16.msra.mxu0 0
        %2185 = vmatprep.subr.bf16.mxu0 0
        %2186 = vmatpush1.bf16.msra.mxu0 0
        %2187 = vmatprep.subr.bf16.mxu0 0
        %2188 = vmatpush1.bf16.msra.mxu0 0
        %2189 = vmatprep.subr.bf16.mxu0 0
        %2190 = vmatpush1.bf16.msra.mxu0 0
        %2191 = vmatprep.subr.bf16.mxu0 0
        %2192 = vmatpush1.bf16.msra.mxu0 0
        %2193 = vmatprep.subr.bf16.mxu0 0
        %2194 = vmatpush1.bf16.msra.mxu0 0
        %2195 = vmatprep.subr.bf16.mxu0 0
        %2196 = vmatpush1.bf16.msra.mxu0 0
        %2197 = vmatprep.mubr.bf16.mxu0 0
        %2198 = vmatmul.mubr.bf16.gmra.mrb[0].mxu0 %v2163
        %v2199 = vpop.f32.mrb[0].mxu0
        %v2200 = vadd.f32 0.0, %v2199
        %v2201 = vpop.f32.mrb[0].mxu0
        %v2202 = vadd.f32 0.0, %v2201
        %v2203 = vpop.f32.mrb[0].mxu0
        %v2204 = vpop.f32.mrb[0].mxu0
        %2205 = vdwg.mxu0
        %v2208 = vcombine.low %v2200, %v2202
        %v2210 = vunpack.c.l.s4 1966171168
        %v2211 = vunpack.c.0.s8 %v2210
        %v2212 = vlaneseq
        %v2213 = vshrl.u32 %v2212, 7
        %v2214 = vsub.s32 %v2211, %v2213
        %v2215 = vrot.slane %v2208, %v2214
        %v2217 = vunpack.c.l.s4 1966171168
        %v2218 = vunpack.c.0.s8 %v2217
        %v2219 = vlaneseq
        %v2220 = vshrl.u32 %v2219, 7
        %v2221 = vsub.s32 %v2218, %v2220
        %v2222 = vrot.slane %v2215, %v2221
        %v2224 = vadd.f32 %v2111, %v2222
        %s2225 = scalar_lea.vmem %s3, 832
        %v2226 = vld [vmem:[%s2225] sm:$0xff]
        %v2227 = vld [vmem:[%s2225 + $0x8] sm:$0xff]
        %v2228 = vld [vmem:[%s2225 + $0x10] sm:$0xff]
        %v2229 = vld [vmem:[%s2225 + $0x18] sm:$0xff]
        %v2230 = vld [vmem:[%s2225 + $0x20] sm:$0xff]
        %v2231 = vld [vmem:[%s2225 + $0x28] sm:$0xff]
        %v2232 = vld [vmem:[%s2225 + $0x30] sm:$0xff]
        %v2233 = vld [vmem:[%s2225 + $0x38] sm:$0xff]
        %v2234 = vrot.slane %v876, 6
        %v2243 = vunpack.c.l.b16 %v2226
        %v2244 = vunpack.c.h.b16 %v2226
        %v2245 = vunpack.c.l.b16 %v2227
        %v2246 = vunpack.c.h.b16 %v2227
        %v2247 = vunpack.c.l.b16 %v2228
        %v2248 = vunpack.c.h.b16 %v2228
        %v2249 = vunpack.c.l.b16 %v2229
        %v2250 = vunpack.c.h.b16 %v2229
        %v2251 = vunpack.c.l.b16 %v2230
        %v2252 = vunpack.c.h.b16 %v2230
        %v2253 = vunpack.c.l.b16 %v2231
        %v2254 = vunpack.c.h.b16 %v2231
        %v2255 = vunpack.c.l.b16 %v2232
        %v2256 = vunpack.c.h.b16 %v2232
        %v2257 = vunpack.c.l.b16 %v2233
        %v2258 = vunpack.c.h.b16 %v2233
        %v2259 = vpack.c.b16 %v2245, %v2243
        %v2260 = vpack.c.b16 %v2246, %v2244
        %v2261 = vpack.c.b16 %v2249, %v2247
        %v2262 = vpack.c.b16 %v2250, %v2248
        %v2263 = vpack.c.b16 %v2253, %v2251
        %v2264 = vpack.c.b16 %v2254, %v2252
        %v2265 = vpack.c.b16 %v2257, %v2255
        %v2266 = vpack.c.b16 %v2258, %v2256
        %v2276 = vsel %vm803, %v2234, 0
        %2278 = vmatprep.subr.bf16.mxu0 %v2260
        %2279 = vmatpush1.bf16.msra.mxu0 %v2259
        %2280 = vmatprep.subr.bf16.mxu0 %v2262
        %2281 = vmatpush1.bf16.msra.mxu0 %v2261
        %2282 = vmatprep.subr.bf16.mxu0 %v2264
        %2283 = vmatpush1.bf16.msra.mxu0 %v2263
        %2284 = vmatprep.subr.bf16.mxu0 %v2266
        %2285 = vmatpush1.bf16.msra.mxu0 %v2265
        %2286 = vmatprep.subr.bf16.mxu0 0
        %2287 = vmatpush1.bf16.msra.mxu0 0
        %2288 = vmatprep.subr.bf16.mxu0 0
        %2289 = vmatpush1.bf16.msra.mxu0 0
        %2290 = vmatprep.subr.bf16.mxu0 0
        %2291 = vmatpush1.bf16.msra.mxu0 0
        %2292 = vmatprep.subr.bf16.mxu0 0
        %2293 = vmatpush1.bf16.msra.mxu0 0
        %2294 = vmatprep.subr.bf16.mxu0 0
        %2295 = vmatpush1.bf16.msra.mxu0 0
        %2296 = vmatprep.subr.bf16.mxu0 0
        %2297 = vmatpush1.bf16.msra.mxu0 0
        %2298 = vmatprep.subr.bf16.mxu0 0
        %2299 = vmatpush1.bf16.msra.mxu0 0
        %2300 = vmatprep.subr.bf16.mxu0 0
        %2301 = vmatpush1.bf16.msra.mxu0 0
        %2302 = vmatprep.subr.bf16.mxu0 0
        %2303 = vmatpush1.bf16.msra.mxu0 0
        %2304 = vmatprep.subr.bf16.mxu0 0
        %2305 = vmatpush1.bf16.msra.mxu0 0
        %2306 = vmatprep.subr.bf16.mxu0 0
        %2307 = vmatpush1.bf16.msra.mxu0 0
        %2308 = vmatprep.subr.bf16.mxu0 0
        %2309 = vmatpush1.bf16.msra.mxu0 0
        %2310 = vmatprep.mubr.bf16.mxu0 0
        %2311 = vmatmul.mubr.bf16.gmra.mrb[0].mxu0 %v2276
        %v2312 = vpop.f32.mrb[0].mxu0
        %v2313 = vadd.f32 0.0, %v2312
        %v2314 = vpop.f32.mrb[0].mxu0
        %v2315 = vadd.f32 0.0, %v2314
        %v2316 = vpop.f32.mrb[0].mxu0
        %v2317 = vpop.f32.mrb[0].mxu0
        %2318 = vdwg.mxu0
        %v2321 = vcombine.low %v2313, %v2315
        %v2323 = vunpack.c.l.s4 1966171168
        %v2324 = vunpack.c.0.s8 %v2323
        %v2325 = vlaneseq
        %v2326 = vshrl.u32 %v2325, 7
        %v2327 = vsub.s32 %v2324, %v2326
        %v2328 = vrot.slane %v2321, %v2327
        %v2330 = vunpack.c.l.s4 1966171168
        %v2331 = vunpack.c.0.s8 %v2330
        %v2332 = vlaneseq
        %v2333 = vshrl.u32 %v2332, 7
        %v2334 = vsub.s32 %v2331, %v2333
        %v2335 = vrot.slane %v2328, %v2334
        %v2337 = vadd.f32 %v2224, %v2335
        %s2338 = scalar_lea.vmem %s3, 896
        %v2339 = vld [vmem:[%s2338] sm:$0xff]
        %v2340 = vld [vmem:[%s2338 + $0x8] sm:$0xff]
        %v2341 = vld [vmem:[%s2338 + $0x10] sm:$0xff]
        %v2342 = vld [vmem:[%s2338 + $0x18] sm:$0xff]
        %v2343 = vld [vmem:[%s2338 + $0x20] sm:$0xff]
        %v2344 = vld [vmem:[%s2338 + $0x28] sm:$0xff]
        %v2345 = vld [vmem:[%s2338 + $0x30] sm:$0xff]
        %v2346 = vld [vmem:[%s2338 + $0x38] sm:$0xff]
        %v2347 = vrot.slane %v753, 7
        %v2356 = vunpack.c.l.b16 %v2339
        %v2357 = vunpack.c.h.b16 %v2339
        %v2358 = vunpack.c.l.b16 %v2340
        %v2359 = vunpack.c.h.b16 %v2340
        %v2360 = vunpack.c.l.b16 %v2341
        %v2361 = vunpack.c.h.b16 %v2341
        %v2362 = vunpack.c.l.b16 %v2342
        %v2363 = vunpack.c.h.b16 %v2342
        %v2364 = vunpack.c.l.b16 %v2343
        %v2365 = vunpack.c.h.b16 %v2343
        %v2366 = vunpack.c.l.b16 %v2344
        %v2367 = vunpack.c.h.b16 %v2344
        %v2368 = vunpack.c.l.b16 %v2345
        %v2369 = vunpack.c.h.b16 %v2345
        %v2370 = vunpack.c.l.b16 %v2346
        %v2371 = vunpack.c.h.b16 %v2346
        %v2372 = vpack.c.b16 %v2358, %v2356
        %v2373 = vpack.c.b16 %v2359, %v2357
        %v2374 = vpack.c.b16 %v2362, %v2360
        %v2375 = vpack.c.b16 %v2363, %v2361
        %v2376 = vpack.c.b16 %v2366, %v2364
        %v2377 = vpack.c.b16 %v2367, %v2365
        %v2378 = vpack.c.b16 %v2370, %v2368
        %v2379 = vpack.c.b16 %v2371, %v2369
        %v2389 = vsel %vm803, %v2347, 0
        %2391 = vmatprep.subr.bf16.mxu0 %v2373
        %2392 = vmatpush1.bf16.msra.mxu0 %v2372
        %2393 = vmatprep.subr.bf16.mxu0 %v2375
        %2394 = vmatpush1.bf16.msra.mxu0 %v2374
        %2395 = vmatprep.subr.bf16.mxu0 %v2377
        %2396 = vmatpush1.bf16.msra.mxu0 %v2376
        %2397 = vmatprep.subr.bf16.mxu0 %v2379
        %2398 = vmatpush1.bf16.msra.mxu0 %v2378
        %2399 = vmatprep.subr.bf16.mxu0 0
        %2400 = vmatpush1.bf16.msra.mxu0 0
        %2401 = vmatprep.subr.bf16.mxu0 0
        %2402 = vmatpush1.bf16.msra.mxu0 0
        %2403 = vmatprep.subr.bf16.mxu0 0
        %2404 = vmatpush1.bf16.msra.mxu0 0
        %2405 = vmatprep.subr.bf16.mxu0 0
        %2406 = vmatpush1.bf16.msra.mxu0 0
        %2407 = vmatprep.subr.bf16.mxu0 0
        %2408 = vmatpush1.bf16.msra.mxu0 0
        %2409 = vmatprep.subr.bf16.mxu0 0
        %2410 = vmatpush1.bf16.msra.mxu0 0
        %2411 = vmatprep.subr.bf16.mxu0 0
        %2412 = vmatpush1.bf16.msra.mxu0 0
        %2413 = vmatprep.subr.bf16.mxu0 0
        %2414 = vmatpush1.bf16.msra.mxu0 0
        %2415 = vmatprep.subr.bf16.mxu0 0
        %2416 = vmatpush1.bf16.msra.mxu0 0
        %2417 = vmatprep.subr.bf16.mxu0 0
        %2418 = vmatpush1.bf16.msra.mxu0 0
        %2419 = vmatprep.subr.bf16.mxu0 0
        %2420 = vmatpush1.bf16.msra.mxu0 0
        %2421 = vmatprep.subr.bf16.mxu0 0
        %2422 = vmatpush1.bf16.msra.mxu0 0
        %2423 = vmatprep.mubr.bf16.mxu0 0
        %2424 = vmatmul.mubr.bf16.gmra.mrb[0].mxu0 %v2389
        %v2425 = vpop.f32.mrb[0].mxu0
        %v2426 = vadd.f32 0.0, %v2425
        %v2427 = vpop.f32.mrb[0].mxu0
        %v2428 = vadd.f32 0.0, %v2427
        %v2429 = vpop.f32.mrb[0].mxu0
        %v2430 = vpop.f32.mrb[0].mxu0
        %2431 = vdwg.mxu0
        %v2434 = vcombine.low %v2426, %v2428
        %v2436 = vunpack.c.l.s4 1966171168
        %v2437 = vunpack.c.0.s8 %v2436
        %v2438 = vlaneseq
        %v2439 = vshrl.u32 %v2438, 7
        %v2440 = vsub.s32 %v2437, %v2439
        %v2441 = vrot.slane %v2434, %v2440
        %v2443 = vunpack.c.l.s4 1966171168
        %v2444 = vunpack.c.0.s8 %v2443
        %v2445 = vlaneseq
        %v2446 = vshrl.u32 %v2445, 7
        %v2447 = vsub.s32 %v2444, %v2446
        %v2448 = vrot.slane %v2441, %v2447
        %v2450 = vadd.f32 %v2337, %v2448
        %s2451 = scalar_lea.vmem %s3, 960
        %v2452 = vld [vmem:[%s2451] sm:$0xff]
        %v2453 = vld [vmem:[%s2451 + $0x8] sm:$0xff]
        %v2454 = vld [vmem:[%s2451 + $0x10] sm:$0xff]
        %v2455 = vld [vmem:[%s2451 + $0x18] sm:$0xff]
        %v2456 = vld [vmem:[%s2451 + $0x20] sm:$0xff]
        %v2457 = vld [vmem:[%s2451 + $0x28] sm:$0xff]
        %v2458 = vld [vmem:[%s2451 + $0x30] sm:$0xff]
        %v2459 = vld [vmem:[%s2451 + $0x38] sm:$0xff]
        %v2460 = vrot.slane %v876, 7
        %v2469 = vunpack.c.l.b16 %v2452
        %v2470 = vunpack.c.h.b16 %v2452
        %v2471 = vunpack.c.l.b16 %v2453
        %v2472 = vunpack.c.h.b16 %v2453
        %v2473 = vunpack.c.l.b16 %v2454
        %v2474 = vunpack.c.h.b16 %v2454
        %v2475 = vunpack.c.l.b16 %v2455
        %v2476 = vunpack.c.h.b16 %v2455
        %v2477 = vunpack.c.l.b16 %v2456
        %v2478 = vunpack.c.h.b16 %v2456
        %v2479 = vunpack.c.l.b16 %v2457
        %v2480 = vunpack.c.h.b16 %v2457
        %v2481 = vunpack.c.l.b16 %v2458
        %v2482 = vunpack.c.h.b16 %v2458
        %v2483 = vunpack.c.l.b16 %v2459
        %v2484 = vunpack.c.h.b16 %v2459
        %v2485 = vpack.c.b16 %v2471, %v2469
        %v2486 = vpack.c.b16 %v2472, %v2470
        %v2487 = vpack.c.b16 %v2475, %v2473
        %v2488 = vpack.c.b16 %v2476, %v2474
        %v2489 = vpack.c.b16 %v2479, %v2477
        %v2490 = vpack.c.b16 %v2480, %v2478
        %v2491 = vpack.c.b16 %v2483, %v2481
        %v2492 = vpack.c.b16 %v2484, %v2482
        %v2502 = vsel %vm803, %v2460, 0
        %2504 = vmatprep.subr.bf16.mxu0 %v2486
        %2505 = vmatpush1.bf16.msra.mxu0 %v2485
        %2506 = vmatprep.subr.bf16.mxu0 %v2488
        %2507 = vmatpush1.bf16.msra.mxu0 %v2487
        %2508 = vmatprep.subr.bf16.mxu0 %v2490
        %2509 = vmatpush1.bf16.msra.mxu0 %v2489
        %2510 = vmatprep.subr.bf16.mxu0 %v2492
        %2511 = vmatpush1.bf16.msra.mxu0 %v2491
        %2512 = vmatprep.subr.bf16.mxu0 0
        %2513 = vmatpush1.bf16.msra.mxu0 0
        %2514 = vmatprep.subr.bf16.mxu0 0
        %2515 = vmatpush1.bf16.msra.mxu0 0
        %2516 = vmatprep.subr.bf16.mxu0 0
        %2517 = vmatpush1.bf16.msra.mxu0 0
        %2518 = vmatprep.subr.bf16.mxu0 0
        %2519 = vmatpush1.bf16.msra.mxu0 0
        %2520 = vmatprep.subr.bf16.mxu0 0
        %2521 = vmatpush1.bf16.msra.mxu0 0
        %2522 = vmatprep.subr.bf16.mxu0 0
        %2523 = vmatpush1.bf16.msra.mxu0 0
        %2524 = vmatprep.subr.bf16.mxu0 0
        %2525 = vmatpush1.bf16.msra.mxu0 0
        %2526 = vmatprep.subr.bf16.mxu0 0
        %2527 = vmatpush1.bf16.msra.mxu0 0
        %2528 = vmatprep.subr.bf16.mxu0 0
        %2529 = vmatpush1.bf16.msra.mxu0 0
        %2530 = vmatprep.subr.bf16.mxu0 0
        %2531 = vmatpush1.bf16.msra.mxu0 0
        %2532 = vmatprep.subr.bf16.mxu0 0
        %2533 = vmatpush1.bf16.msra.mxu0 0
        %2534 = vmatprep.subr.bf16.mxu0 0
        %2535 = vmatpush1.bf16.msra.mxu0 0
        %2536 = vmatprep.mubr.bf16.mxu0 0
        %2537 = vmatmul.mubr.bf16.gmra.mrb[0].mxu0 %v2502
        %v2538 = vpop.f32.mrb[0].mxu0
        %v2539 = vadd.f32 0.0, %v2538
        %v2540 = vpop.f32.mrb[0].mxu0
        %v2541 = vadd.f32 0.0, %v2540
        %v2542 = vpop.f32.mrb[0].mxu0
        %v2543 = vpop.f32.mrb[0].mxu0
        %2544 = vdwg.mxu0
        %v2547 = vcombine.low %v2539, %v2541
        %v2549 = vunpack.c.l.s4 1966171168
        %v2550 = vunpack.c.0.s8 %v2549
        %v2551 = vlaneseq
        %v2552 = vshrl.u32 %v2551, 7
        %v2553 = vsub.s32 %v2550, %v2552
        %v2554 = vrot.slane %v2547, %v2553
        %v2556 = vunpack.c.l.s4 1966171168
        %v2557 = vunpack.c.0.s8 %v2556
        %v2558 = vlaneseq
        %v2559 = vshrl.u32 %v2558, 7
        %v2560 = vsub.s32 %v2557, %v2559
        %v2561 = vrot.slane %v2554, %v2560
        %v2563 = vadd.f32 %v2450, %v2561
        %v2564 = vmax.f32 %v2563, 0.0
        %v2566 = vlaneseq
        %v2567 = vshrl.u32 %v2566, 7
        %v2568 = vsub.s32 0, %v2567
        %v2569 = vrot.slane %v2564, %v2568
        %v2570 = vlaneseq
        %v2571 = vshrl.u32 %v2570, 7
        %v2572 = vsub.s32 1, %v2571
        %v2573 = vrot.slane %v2564, %v2572
        %v2576 = vpack.c.bf16 %v2569, %v2569
        %v2577 = vpack.c.bf16 %v2573, %v2573
        %v2578 = vld [vmem:[%s5] sm:$0xf]
        %v2579 = vld [vmem:[%s5 + $0x4] sm:$0xf]
        %v2580 = vld [vmem:[%s5 + $0x8] sm:$0xf]
        %v2581 = vld [vmem:[%s5 + $0xc] sm:$0xf]
        %v2582 = vld [vmem:[%s5 + $0x10] sm:$0xf]
        %v2583 = vld [vmem:[%s5 + $0x14] sm:$0xf]
        %v2584 = vld [vmem:[%s5 + $0x18] sm:$0xf]
        %v2585 = vld [vmem:[%s5 + $0x1c] sm:$0xf]
        %v2586 = vld [vmem:[%s5 + $0x20] sm:$0xf]
        %v2587 = vld [vmem:[%s5 + $0x24] sm:$0xf]
        %v2588 = vld [vmem:[%s5 + $0x28] sm:$0xf]
        %v2589 = vld [vmem:[%s5 + $0x2c] sm:$0xf]
        %v2590 = vld [vmem:[%s5 + $0x30] sm:$0xf]
        %v2591 = vld [vmem:[%s5 + $0x34] sm:$0xf]
        %v2592 = vld [vmem:[%s5 + $0x38] sm:$0xf]
        %v2593 = vld [vmem:[%s5 + $0x3c] sm:$0xf]
        %v2594 = vld [vmem:[%s5 + $0x40] sm:$0xf]
        %v2595 = vld [vmem:[%s5 + $0x44] sm:$0xf]
        %v2596 = vld [vmem:[%s5 + $0x48] sm:$0xf]
        %v2597 = vld [vmem:[%s5 + $0x4c] sm:$0xf]
        %v2598 = vld [vmem:[%s5 + $0x50] sm:$0xf]
        %v2599 = vld [vmem:[%s5 + $0x54] sm:$0xf]
        %v2600 = vld [vmem:[%s5 + $0x58] sm:$0xf]
        %v2601 = vld [vmem:[%s5 + $0x5c] sm:$0xf]
        %v2602 = vld [vmem:[%s5 + $0x60] sm:$0xf]
        %v2603 = vld [vmem:[%s5 + $0x64] sm:$0xf]
        %v2604 = vld [vmem:[%s5 + $0x68] sm:$0xf]
        %v2605 = vld [vmem:[%s5 + $0x6c] sm:$0xf]
        %v2606 = vld [vmem:[%s5 + $0x70] sm:$0xf]
        %v2607 = vld [vmem:[%s5 + $0x74] sm:$0xf]
        %v2608 = vld [vmem:[%s5 + $0x78] sm:$0xf]
        %v2609 = vld [vmem:[%s5 + $0x7c] sm:$0xf]
        %v2610 = vld [vmem:[%s6] sm:$0x1]
        %v2643 = vunpack.c.l.b16 %v2578
        %v2644 = vunpack.c.l.b16 %v2579
        %v2645 = vunpack.c.l.b16 %v2580
        %v2646 = vunpack.c.l.b16 %v2581
        %v2647 = vunpack.c.l.b16 %v2582
        %v2648 = vunpack.c.l.b16 %v2583
        %v2649 = vunpack.c.l.b16 %v2584
        %v2650 = vunpack.c.l.b16 %v2585
        %v2651 = vunpack.c.l.b16 %v2586
        %v2652 = vunpack.c.l.b16 %v2587
        %v2653 = vunpack.c.l.b16 %v2588
        %v2654 = vunpack.c.l.b16 %v2589
        %v2655 = vunpack.c.l.b16 %v2590
        %v2656 = vunpack.c.l.b16 %v2591
        %v2657 = vunpack.c.l.b16 %v2592
        %v2658 = vunpack.c.l.b16 %v2593
        %v2659 = vunpack.c.l.b16 %v2594
        %v2660 = vunpack.c.l.b16 %v2595
        %v2661 = vunpack.c.l.b16 %v2596
        %v2662 = vunpack.c.l.b16 %v2597
        %v2663 = vunpack.c.l.b16 %v2598
        %v2664 = vunpack.c.l.b16 %v2599
        %v2665 = vunpack.c.l.b16 %v2600
        %v2666 = vunpack.c.l.b16 %v2601
        %v2667 = vunpack.c.l.b16 %v2602
        %v2668 = vunpack.c.l.b16 %v2603
        %v2669 = vunpack.c.l.b16 %v2604
        %v2670 = vunpack.c.l.b16 %v2605
        %v2671 = vunpack.c.l.b16 %v2606
        %v2672 = vunpack.c.l.b16 %v2607
        %v2673 = vunpack.c.l.b16 %v2608
        %v2674 = vunpack.c.l.b16 %v2609
        %v2675 = vpack.c.b16 %v2644, %v2643
        %v2676 = vpack.c.b16 %v2646, %v2645
        %v2677 = vpack.c.b16 %v2648, %v2647
        %v2678 = vpack.c.b16 %v2650, %v2649
        %v2679 = vpack.c.b16 %v2652, %v2651
        %v2680 = vpack.c.b16 %v2654, %v2653
        %v2681 = vpack.c.b16 %v2656, %v2655
        %v2682 = vpack.c.b16 %v2658, %v2657
        %v2683 = vpack.c.b16 %v2660, %v2659
        %v2684 = vpack.c.b16 %v2662, %v2661
        %v2685 = vpack.c.b16 %v2664, %v2663
        %v2686 = vpack.c.b16 %v2666, %v2665
        %v2687 = vpack.c.b16 %v2668, %v2667
        %v2688 = vpack.c.b16 %v2670, %v2669
        %v2689 = vpack.c.b16 %v2672, %v2671
        %v2690 = vpack.c.b16 %v2674, %v2673
        %2707 = vmatprep.subr.bf16.mxu0 0
        %2708 = vmatpush1.bf16.msra.mxu0 %v2675
        %2709 = vmatprep.subr.bf16.mxu0 0
        %2710 = vmatpush1.bf16.msra.mxu0 %v2676
        %2711 = vmatprep.subr.bf16.mxu0 0
        %2712 = vmatpush1.bf16.msra.mxu0 %v2677
        %2713 = vmatprep.subr.bf16.mxu0 0
        %2714 = vmatpush1.bf16.msra.mxu0 %v2678
        %2715 = vmatprep.subr.bf16.mxu0 0
        %2716 = vmatpush1.bf16.msra.mxu0 %v2679
        %2717 = vmatprep.subr.bf16.mxu0 0
        %2718 = vmatpush1.bf16.msra.mxu0 %v2680
        %2719 = vmatprep.subr.bf16.mxu0 0
        %2720 = vmatpush1.bf16.msra.mxu0 %v2681
        %2721 = vmatprep.subr.bf16.mxu0 0
        %2722 = vmatpush1.bf16.msra.mxu0 %v2682
        %2723 = vmatprep.subr.bf16.mxu0 0
        %2724 = vmatpush1.bf16.msra.mxu0 %v2683
        %2725 = vmatprep.subr.bf16.mxu0 0
        %2726 = vmatpush1.bf16.msra.mxu0 %v2684
        %2727 = vmatprep.subr.bf16.mxu0 0
        %2728 = vmatpush1.bf16.msra.mxu0 %v2685
        %2729 = vmatprep.subr.bf16.mxu0 0
        %2730 = vmatpush1.bf16.msra.mxu0 %v2686
        %2731 = vmatprep.subr.bf16.mxu0 0
        %2732 = vmatpush1.bf16.msra.mxu0 %v2687
        %2733 = vmatprep.subr.bf16.mxu0 0
        %2734 = vmatpush1.bf16.msra.mxu0 %v2688
        %2735 = vmatprep.subr.bf16.mxu0 0
        %2736 = vmatpush1.bf16.msra.mxu0 %v2689
        %2737 = vmatprep.subr.bf16.mxu0 0
        %2738 = vmatpush1.bf16.msra.mxu0 %v2690
        %2739 = vmatprep.mubr.bf16.mxu0 %v2577
        %2740 = vmatmul.mubr.bf16.gmra.mrb[0].mxu0 %v2576
        %v2741 = vpop.f32.mrb[0].mxu0
        %v2742 = vadd.f32 %v2610, %v2741
        %v2743 = vpop.f32.mrb[0].mxu0
        %v2744 = vpop.f32.mrb[0].mxu0
        %v2745 = vpop.f32.mrb[0].mxu0
        %2746 = vdwg.mxu0
        %v2747 = vmax.f32 %v2742, 0.0
        %v2748 = vpack.c.bf16 %v2747, %v2747
        %v2749 = vld [vmem:[%s7] sm:$0xf]
        %v2750 = vld [vmem:[%s7 + $0x4] sm:$0xf]
        %v2751 = vld [vmem:[%s7 + $0x8] sm:$0xf]
        %v2752 = vld [vmem:[%s7 + $0xc] sm:$0xf]
        %v2753 = vld [vmem:[%s7 + $0x10] sm:$0xf]
        %v2754 = vld [vmem:[%s7 + $0x14] sm:$0xf]
        %v2755 = vld [vmem:[%s7 + $0x18] sm:$0xf]
        %v2756 = vld [vmem:[%s7 + $0x1c] sm:$0xf]
        %v2757 = vld [vmem:[%s8] sm:$0x1]
        %v2766 = vunpack.c.l.b16 %v2749
        %v2767 = vunpack.c.l.b16 %v2750
        %v2768 = vunpack.c.l.b16 %v2751
        %v2769 = vunpack.c.l.b16 %v2752
        %v2770 = vunpack.c.l.b16 %v2753
        %v2771 = vunpack.c.l.b16 %v2754
        %v2772 = vunpack.c.l.b16 %v2755
        %v2773 = vunpack.c.l.b16 %v2756
        %v2774 = vpack.c.b16 %v2767, %v2766
        %v2775 = vpack.c.b16 %v2769, %v2768
        %v2776 = vpack.c.b16 %v2771, %v2770
        %v2777 = vpack.c.b16 %v2773, %v2772
        %v2783 = vsel %vm803, %v2748, 0
        %2785 = vmatprep.subr.bf16.mxu0 0
        %2786 = vmatpush1.bf16.msra.mxu0 %v2774
        %2787 = vmatprep.subr.bf16.mxu0 0
        %2788 = vmatpush1.bf16.msra.mxu0 %v2775
        %2789 = vmatprep.subr.bf16.mxu0 0
        %2790 = vmatpush1.bf16.msra.mxu0 %v2776
        %2791 = vmatprep.subr.bf16.mxu0 0
        %2792 = vmatpush1.bf16.msra.mxu0 %v2777
        %2793 = vmatprep.subr.bf16.mxu0 0
        %2794 = vmatpush1.bf16.msra.mxu0 0
        %2795 = vmatprep.subr.bf16.mxu0 0
        %2796 = vmatpush1.bf16.msra.mxu0 0
        %2797 = vmatprep.subr.bf16.mxu0 0
        %2798 = vmatpush1.bf16.msra.mxu0 0
        %2799 = vmatprep.subr.bf16.mxu0 0
        %2800 = vmatpush1.bf16.msra.mxu0 0
        %2801 = vmatprep.subr.bf16.mxu0 0
        %2802 = vmatpush1.bf16.msra.mxu0 0
        %2803 = vmatprep.subr.bf16.mxu0 0
        %2804 = vmatpush1.bf16.msra.mxu0 0
        %2805 = vmatprep.subr.bf16.mxu0 0
        %2806 = vmatpush1.bf16.msra.mxu0 0
        %2807 = vmatprep.subr.bf16.mxu0 0
        %2808 = vmatpush1.bf16.msra.mxu0 0
        %2809 = vmatprep.subr.bf16.mxu0 0
        %2810 = vmatpush1.bf16.msra.mxu0 0
        %2811 = vmatprep.subr.bf16.mxu0 0
        %2812 = vmatpush1.bf16.msra.mxu0 0
        %2813 = vmatprep.subr.bf16.mxu0 0
        %2814 = vmatpush1.bf16.msra.mxu0 0
        %2815 = vmatprep.subr.bf16.mxu0 0
        %2816 = vmatpush1.bf16.msra.mxu0 0
        %2817 = vmatprep.mubr.bf16.mxu0 0
        %2818 = vmatmul.mubr.bf16.gmra.mrb[0].mxu0 %v2783
        %v2819 = vpop.f32.mrb[0].mxu0
        %v2820 = vadd.f32 %v2757, %v2819
        %v2821 = vpop.f32.mrb[0].mxu0
        %v2822 = vpop.f32.mrb[0].mxu0
        %v2823 = vpop.f32.mrb[0].mxu0
        %2824 = vdwg.mxu0
        %vm2825 = vcmask 1040384
        %v2826 = vsel %vm2825, %v2820, -inf
        %2827 = vmax.xlane.f32.xlu0 %v2826
        %v2828 = vpop.xlane.xlu0 %2827
        %v2829 = vsub.f32 %v2820, %v2828
        %v2830 = vmul.f32 %v2829, 1.442695
        %v2831 = vpow.pop %v2830
        %v2832 = vsel %vm2825, %v2831, 0.0
        %2833 = vadd.xlane.f32.xlu0 %v2832
        %v2834 = vpop.xlane.xlu0 %2833
        %v2835 = vrcp.pop %v2834
        %v2836 = vmul.f32 %v2831, %v2835
        %2837 = vst [vmem:[%s352] sm:$0x1] %v2820
        %2838 = vst [vmem:[%s365] sm:$0x1] %v2836
        %s2839 = sand.u32 %s227, 1
        %s2840 = scalar_lea.sflag [#allocation3], %s2839
        %s2841 = sand.u32 %s227, 1
        %s2842 = scalar_lea.vmem [#allocation2], %s2841
        %p2843 = scmp.lt.s32.totalorder %s25, 1
        %s2844 = scalar_select %p2843, %s25, 1
        %s2845 = scalar_lea.vmem %s10, %s2844
        // Predicated region
        $region57: #{image_router_moe_forward.3} parent=55 // pred_check
          %p2846 = pneg %p237
        $region58: #{image_router_moe_forward.3} parent=55 // pred_check_branch
          %2848 = sbr.rel (%p2846) target = $region60
        $region59: #{image_router_moe_forward.3} parent=55 // pred_region
          %s2850 = ssub.s32 16, 16
          %2851 = vsyncadd %s2840, %s2850
          %s2852 = smul.addr %s25, 16
          %s2853 = scalar_lea.hbm %s9, %s2852
          %s2855 = sshll.u32 %s2842, 4
          %s2856 = int_to_ptr.vmem [resolvable:$true] %s2855
          %2858 = dma.vmem_to_hbm [thread:$0]  %s2856, 16, %s2853, %s2840
        $region60: #{image_router_moe_forward.3} parent=55 // pred_fallthru
          _
        // Predicated region
        $region61: #{image_router_moe_forward.3} parent=55 // pred_check
          %p2859 = pneg %p263
        $region62: #{image_router_moe_forward.3} parent=55 // pred_check_branch
          %2861 = sbr.rel (%p2859) target = $region64
        $region63: #{image_router_moe_forward.3} parent=55 // pred_region
          _
        $region64: #{image_router_moe_forward.3} parent=55 // pred_fallthru
          _
      $region56: #{image_router_moe_forward.3} parent=5 // pred_fallthru
        _
      %p2862 = scmp.le.s32.totalorder 2, %s20
      // Predicated region
      $region65: #{image_router_moe_forward.3} parent=5 // pred_check
        %p2863 = pneg %p2862
      $region66: #{image_router_moe_forward.3} parent=5 // pred_check_branch
        %2865 = sbr.rel (%p2863) target = $region68
      $region67: #{image_router_moe_forward.3} parent=5 // pred_region
        %s2866 = ssub.s32 %s20, 2
        // Predicated region
        $region69: #{image_router_moe_forward.3} parent=67 // pred_check
          %p2867 = pneg %p243
        $region70: #{image_router_moe_forward.3} parent=67 // pred_check_branch
          %2869 = sbr.rel (%p2867) target = $region72
        $region71: #{image_router_moe_forward.3} parent=67 // pred_region
          %s2870 = sand.u32 %s228, 1
          %s2871 = scalar_lea.sflag [#allocation3], %s2870
          %s2872 = sand.u32 %s228, 1
          %s2873 = scalar_lea.vmem [#allocation2], %s2872
          %2874 = dma.done %s2871, 16
        $region72: #{image_router_moe_forward.3} parent=67 // pred_fallthru
          _
        // Predicated region
        $region73: #{image_router_moe_forward.3} parent=67 // pred_check
          %p2875 = pneg %p269
        $region74: #{image_router_moe_forward.3} parent=67 // pred_check_branch
          %2877 = sbr.rel (%p2875) target = $region76
        $region75: #{image_router_moe_forward.3} parent=67 // pred_region
          %p2878 = scmp.lt.s32.totalorder %s26, 1
          %s2879 = scalar_select %p2878, %s26, 1
          %s2880 = scalar_lea.vmem %s10, %s2879
        $region76: #{image_router_moe_forward.3} parent=67 // pred_fallthru
          _
      $region68: #{image_router_moe_forward.3} parent=5 // pred_fallthru
        _
    $region6: #{image_router_moe_forward.3} parent=1 // loop_footer
      %s24 = sadd.s32 1, %s20
    $region7: #{image_router_moe_forward.3} parent=1 // loop_footer_branch
      %19 = sbr.rel target = $region3
    $region8: #{image_router_moe_forward.3} parent=1 // loop_exit
      _
    %2881 = vsyncpa [#allocation3], 1
    %s2882 = scalar_lea.sflag [#allocation3], 1
    %2883 = vsyncpa %s2882, 1

</llo_original>
